<compile_context>
chip_gen: v7x
topology: tpu7x:2x2x1
jax: 0.10.0
libtpu: 0.0.40
codegen_flags: <defaults>
</compile_context>

<pallas_src>
import jax
import jax.numpy as jnp
from jax.experimental import pallas as pl
from jax.experimental.pallas import tpu as pltpu

IN_DIM = 11
HID = 8
G4 = 4 * HID          # 32
FC1 = 4
FC2 = 1

BP = 8                # padded batch (one sublane group)
SLAB_ROWS = 48        # packed-weight slab rows (multiple of 8)
SLAB_COLS = 128       # one lane group

# Row layout inside the packed weight slab (8-row aligned where it matters):
R_W1I = 0     # w1_ih^T            (11, 32)   g columns pre-scaled by 2
R_W1H = 16    # w1_hh^T            ( 8, 32)   g columns pre-scaled by 2
R_W2I = 24    # w2_ih^T            ( 8, 32)   g columns pre-scaled by 2
R_W2H = 32    # w2_hh^T            ( 8, 32)   g columns pre-scaled by 2
R_B1 = 40     # b1_ih + b1_hh      ( 1, 32)   g columns pre-scaled by 2
R_B2 = 41     # b2_ih + b2_hh      ( 1, 32)   g columns pre-scaled by 2
R_WF = 42     # wf2 @ wf1          ( 1,  8)   folded fc1*fc2 (row form)
R_BF = 43     # bf1 @ wf2^T + bf2  ( 1,  1)
R_SCALE = 44  # per-lane act scale ( 1, 32)   2 on g lanes, 1 elsewhere
R_OFF = 45    # per-lane act offset( 1, 32)  -1 on g lanes, 0 elsewhere


def model2_kernel(x_ref, w_ref, out_ref):
    # x_ref: (T*BP, IN_DIM), w_ref: (SLAB_ROWS, SLAB_COLS), out_ref: (BP, FC2)
    TB = x_ref.shape[0]
    T = TB // BP

    slab = w_ref[...]
    w1i = slab[R_W1I:R_W1I + IN_DIM, 0:G4]       # (11, 32)
    w1h = slab[R_W1H:R_W1H + HID, 0:G4]          # (8, 32)
    w2i = slab[R_W2I:R_W2I + HID, 0:G4]          # (8, 32)
    w2h = slab[R_W2H:R_W2H + HID, 0:G4]          # (8, 32)
    b1 = slab[R_B1:R_B1 + 1, 0:G4]               # (1, 32)
    b2 = slab[R_B2:R_B2 + 1, 0:G4]               # (1, 32)
    wf_row = slab[R_WF:R_WF + 1, 0:HID]          # (1, 8)
    bf = slab[R_BF:R_BF + 1, 0:FC2]              # (1, 1)
    scale_vec = slab[R_SCALE:R_SCALE + 1, 0:G4]  # (1, 32)
    off_vec = slab[R_OFF:R_OFF + 1, 0:G4]        # (1, 32)

    # Hoisted layer-1 input projection for ALL timesteps (one MXU push),
    # with the layer-1 bias folded in.  g-gate lanes already carry the 2x
    # scale (folded into the weights host-side).
    xg = jnp.dot(x_ref[...], w1i, preferred_element_type=jnp.float32) + b1  # (T*BP, 32)

    # Hoist all broadcasts out of the unrolled loop (JAX does not CSE them).
    b2b = jnp.broadcast_to(b2, (BP, G4))
    scale_b = jnp.broadcast_to(scale_vec, (BP, G4))
    off_b = jnp.broadcast_to(off_vec, (BP, G4))
    wf_b = jnp.broadcast_to(wf_row, (BP, HID))

    h1 = jnp.zeros((BP, HID), jnp.float32)
    c1 = jnp.zeros((BP, HID), jnp.float32)
    h2 = jnp.zeros((BP, HID), jnp.float32)
    c2 = jnp.zeros((BP, HID), jnp.float32)

    def gates_act(gates, c):
        # Single EUP push for the gate block: sigmoid on all 32 lanes; the
        # g-gate tanh is recovered as 2*sigmoid(2x)-1 via per-lane scale/off.
        act = jax.nn.sigmoid(gates) * scale_b + off_b
        i = act[:, 0 * HID:1 * HID]
        f = act[:, 1 * HID:2 * HID]
        g = act[:, 2 * HID:3 * HID]
        o = act[:, 3 * HID:4 * HID]
        c_new = f * c + i * g
        h_new = o * jnp.tanh(c_new)
        return h_new, c_new

    def step(xg_t, h1, c1, h2, c2):
        # Layer-2 recurrent half FIRST: depends only on the previous step's
        # h2, so it schedules under layer-1 compute; also takes the b2 add
        # off the critical path.
        g2_h = jnp.dot(h2, w2h, preferred_element_type=jnp.float32) + b2b
        # Layer 1: only the recurrent matmul remains on the critical path
        # (input projection + bias were hoisted into xg).
        g1 = xg_t + jnp.dot(h1, w1h, preferred_element_type=jnp.float32)
        h1, c1 = gates_act(g1, c1)
        # Layer 2: only the h1-dependent half stays serial.
        g2 = g2_h + jnp.dot(h1, w2i, preferred_element_type=jnp.float32)
        h2, c2 = gates_act(g2, c2)
        return h1, c1, h2, c2

    # Main sequence loop (static unroll; T is a compile-time constant).
    for t in range(T):
        h1, c1, h2, c2 = step(xg[t * BP:(t + 1) * BP, :], h1, c1, h2, c2)
        # fc1/fc2 inside the PyTorch loop are dead code (only last value used)

    # Extra step the PyTorch forward does with input[4].
    h1, c1, h2, c2 = step(xg[4 * BP:5 * BP, :], h1, c1, h2, c2)

    # Folded fc1+fc2 tail: VPU multiply + XLU lane reduce instead of a
    # 1-lane-output MXU push (pure fill/drain latency at the end).
    out = jnp.sum(h2 * wf_b, axis=1, keepdims=True) + bf
    out_ref[...] = out.astype(out_ref.dtype)


def init_params(key):
    """Deterministic synthetic parameters with the same shapes as the PyTorch module."""
    ks = jax.random.split(key, 12)
    u = lambda k, shape, s: jax.random.uniform(k, shape, jnp.float32, -s, s)
    s1 = 1.0 / jnp.sqrt(HID)
    params = {
        # LSTMCell(11, 8)
        "w1_ih": u(ks[0], (4 * HID, IN_DIM), s1),
        "w1_hh": u(ks[1], (4 * HID, HID), s1),
        "b1_ih": u(ks[2], (4 * HID,), s1),
        "b1_hh": u(ks[3], (4 * HID,), s1),
        # LSTMCell(8, 8)
        "w2_ih": u(ks[4], (4 * HID, HID), s1),
        "w2_hh": u(ks[5], (4 * HID, HID), s1),
        "b2_ih": u(ks[6], (4 * HID,), s1),
        "b2_hh": u(ks[7], (4 * HID,), s1),
        # Linear(8, 4)
        "wf1": u(ks[8], (FC1, HID), 1.0 / jnp.sqrt(HID)),
        "bf1": u(ks[9], (FC1,), 1.0 / jnp.sqrt(HID)),
        # Linear(4, 1)
        "wf2": u(ks[10], (FC2, FC1), 1.0 / jnp.sqrt(FC1)),
        "bf2": u(ks[11], (FC2,), 1.0 / jnp.sqrt(FC1)),
    }
    return params


def _pack_weights(params):
    """Host-side: fold biases, the 2x g-gate scale, and fc1+fc2, into one slab."""
    # Per-lane 2x scale on the g-gate columns (PyTorch gate order i, f, g, o)
    # so the kernel can recover tanh(x) as 2*sigmoid(2x) - 1.
    g_scale = jnp.ones((G4,), jnp.float32).at[2 * HID:3 * HID].set(2.0)
    act_scale = jnp.ones((G4,), jnp.float32).at[2 * HID:3 * HID].set(2.0)
    act_off = jnp.zeros((G4,), jnp.float32).at[2 * HID:3 * HID].set(-1.0)

    w1i_t = params["w1_ih"].T * g_scale[None, :]                # (11, 32)
    w1h_t = params["w1_hh"].T * g_scale[None, :]                # (8, 32)
    b1 = (params["b1_ih"] + params["b1_hh"]) * g_scale          # (32,)
    w2i_t = params["w2_ih"].T * g_scale[None, :]                # (8, 32)
    w2h_t = params["w2_hh"].T * g_scale[None, :]                # (8, 32)
    b2 = (params["b2_ih"] + params["b2_hh"]) * g_scale          # (32,)
    wf_row = params["wf2"] @ params["wf1"]                      # (1, 8)  fc2.fc1 fold
    bf_fold = params["bf1"] @ params["wf2"].T + params["bf2"]   # (1,)

    slab = jnp.zeros((SLAB_ROWS, SLAB_COLS), jnp.float32)
    slab = slab.at[R_W1I:R_W1I + IN_DIM, 0:G4].set(w1i_t)
    slab = slab.at[R_W1H:R_W1H + HID, 0:G4].set(w1h_t)
    slab = slab.at[R_W2I:R_W2I + HID, 0:G4].set(w2i_t)
    slab = slab.at[R_W2H:R_W2H + HID, 0:G4].set(w2h_t)
    slab = slab.at[R_B1, 0:G4].set(b1)
    slab = slab.at[R_B2, 0:G4].set(b2)
    slab = slab.at[R_WF, 0:HID].set(wf_row[0])
    slab = slab.at[R_BF, 0].set(bf_fold[0])
    slab = slab.at[R_SCALE, 0:G4].set(act_scale)
    slab = slab.at[R_OFF, 0:G4].set(act_off)
    return slab


def model2_forward(x, params):
    """x: (T, B, 11) float32 -> (B, 1) float32."""
    T, B, _ = x.shape
    assert T >= 5, "forward indexes input[4]; need seq length >= 5"
    assert B <= BP, f"batch {B} exceeds padded batch {BP}"

    # Pad batch to a full sublane group and flatten to a 2-D (T*BP, IN_DIM)
    # slab so the kernel can do ONE hoisted x-projection matmul.
    x_p = (jnp.zeros((T, BP, IN_DIM), jnp.float32)
           .at[:, :B, :].set(x)
           .reshape(T * BP, IN_DIM))
    w_slab = _pack_weights(params)

    # ~30 KB total resident footprint: whole-array VMEM specs, no grid, no
    # pipelining -- correct on v5e/v6e/v7x alike for a latency-bound kernel.
    vmem_spec = pl.BlockSpec(memory_space=pltpu.MemorySpace.VMEM)
    out_p = pl.pallas_call(
        model2_kernel,
        out_shape=jax.ShapeDtypeStruct((BP, FC2), jnp.float32),
        in_specs=[vmem_spec, vmem_spec],
        out_specs=vmem_spec,
    )(x_p, w_slab)
    return out_p[:B]


def model2_reference(x, params):
    """Pure-JAX reference matching the PyTorch forward."""
    T, B, _ = x.shape

    def cell(x_t, h, c, wi, wh, bi, bh):
        g = x_t @ wi.T + bi + h @ wh.T + bh
        i = jax.nn.sigmoid(g[:, 0 * HID:1 * HID])
        f = jax.nn.sigmoid(g[:, 1 * HID:2 * HID])
        gg = jnp.tanh(g[:, 2 * HID:3 * HID])
        o = jax.nn.sigmoid(g[:, 3 * HID:4 * HID])
        c_new = f * c + i * gg
        return o * jnp.tanh(c_new), c_new

    h1 = c1 = h2 = c2 = jnp.zeros((B, HID), jnp.float32)
    for t in range(T):
        h1, c1 = cell(x[t], h1, c1, params["w1_ih"], params["w1_hh"],
                      params["b1_ih"], params["b1_hh"])
        h2, c2 = cell(h1, h2, c2, params["w2_ih"], params["w2_hh"],
                      params["b2_ih"], params["b2_hh"])
    h1, c1 = cell(x[4], h1, c1, params["w1_ih"], params["w1_hh"],
                  params["b1_ih"], params["b1_hh"])
    h2, c2 = cell(h1, h2, c2, params["w2_ih"], params["w2_hh"],
                  params["b2_ih"], params["b2_hh"])
    z = h2 @ params["wf1"].T + params["bf1"]
    return z @ params["wf2"].T + params["bf2"]


if __name__ == "__main__":
    key = jax.random.PRNGKey(0)
    k_x, k_p = jax.random.split(key)

    T, B = 8, 2  # seq >= 5 required because forward indexes input[4]
    x = jax.random.normal(k_x, (T, B, IN_DIM), jnp.float32)
    params = init_params(k_p)

    out = jax.block_until_ready(model2_forward(x, params))
    ref = jax.block_until_ready(model2_reference(x, params))

    assert out.shape == (B, 1), out.shape
    assert jnp.allclose(out, ref, rtol=1e-4, atol=1e-4), (out, ref)
    print("KERNEL_OK")
</pallas_src>

<mosaic_0001>
module attributes {stable_mosaic.version = 11 : i64} {
  func.func @model2_kernel(%arg0: memref<64x11xf32, #tpu.memory_space<vmem>>, %arg1: memref<48x128xf32, #tpu.memory_space<vmem>>, %arg2: memref<8x1xf32, #tpu.memory_space<vmem>>) attributes {dimension_semantics = [], scalar_prefetch = 0 : i64, scratch_operands = 0 : i64, tpu.core_type = #tpu.core_type<tc>} {
    %c0 = arith.constant 0 : index
    %c0_0 = arith.constant 0 : index
    %0 = vector.load %arg1[%c0, %c0_0] : memref<48x128xf32, #tpu.memory_space<vmem>>, vector<48x128xf32>
    %1 = vector.extract_strided_slice %0 {offsets = [0, 0], sizes = [11, 32], strides = [1, 1]} : vector<48x128xf32> to vector<11x32xf32>
    %2 = vector.extract_strided_slice %0 {offsets = [16, 0], sizes = [8, 32], strides = [1, 1]} : vector<48x128xf32> to vector<8x32xf32>
    %3 = vector.extract_strided_slice %0 {offsets = [24, 0], sizes = [8, 32], strides = [1, 1]} : vector<48x128xf32> to vector<8x32xf32>
    %4 = vector.extract_strided_slice %0 {offsets = [32, 0], sizes = [8, 32], strides = [1, 1]} : vector<48x128xf32> to vector<8x32xf32>
    %5 = vector.extract_strided_slice %0 {offsets = [40, 0], sizes = [1, 32], strides = [1, 1]} : vector<48x128xf32> to vector<1x32xf32>
    %6 = vector.extract_strided_slice %0 {offsets = [41, 0], sizes = [1, 32], strides = [1, 1]} : vector<48x128xf32> to vector<1x32xf32>
    %7 = vector.extract_strided_slice %0 {offsets = [42, 0], sizes = [1, 8], strides = [1, 1]} : vector<48x128xf32> to vector<1x8xf32>
    %8 = vector.extract_strided_slice %0 {offsets = [43, 0], sizes = [1, 1], strides = [1, 1]} : vector<48x128xf32> to vector<1x1xf32>
    %9 = vector.extract_strided_slice %0 {offsets = [44, 0], sizes = [1, 32], strides = [1, 1]} : vector<48x128xf32> to vector<1x32xf32>
    %10 = vector.extract_strided_slice %0 {offsets = [45, 0], sizes = [1, 32], strides = [1, 1]} : vector<48x128xf32> to vector<1x32xf32>
    %c0_1 = arith.constant 0 : index
    %c0_2 = arith.constant 0 : index
    %11 = vector.load %arg0[%c0_1, %c0_2] : memref<64x11xf32, #tpu.memory_space<vmem>>, vector<64x11xf32>
    %cst = arith.constant dense<0.000000e+00> : vector<64x32xf32>
    %12 = tpu.matmul %11, %1, %cst {dimension_numbers = #tpu.dot_dimension_numbers<[1], [0], [0], [1], [0, 0, 1, 1], [], []>} : vector<64x11xf32>, vector<11x32xf32>, vector<64x32xf32> -> vector<64x32xf32>
    %13 = vector.broadcast %5 : vector<1x32xf32> to vector<64x32xf32>
    %14 = arith.addf %12, %13 : vector<64x32xf32>
    %15 = vector.shape_cast %6 : vector<1x32xf32> to vector<1x32xf32>
    %16 = vector.broadcast %15 : vector<1x32xf32> to vector<8x32xf32>
    %17 = vector.shape_cast %9 : vector<1x32xf32> to vector<1x32xf32>
    %18 = vector.broadcast %17 : vector<1x32xf32> to vector<8x32xf32>
    %19 = vector.shape_cast %10 : vector<1x32xf32> to vector<1x32xf32>
    %20 = vector.broadcast %19 : vector<1x32xf32> to vector<8x32xf32>
    %21 = vector.shape_cast %7 : vector<1x8xf32> to vector<1x8xf32>
    %22 = vector.broadcast %21 : vector<1x8xf32> to vector<8x8xf32>
    %cst_3 = arith.constant 0.000000e+00 : f32
    %23 = vector.broadcast %cst_3 : f32 to vector<8x8xf32>
    %cst_4 = arith.constant 0.000000e+00 : f32
    %24 = vector.broadcast %cst_4 : f32 to vector<8x8xf32>
    %cst_5 = arith.constant 0.000000e+00 : f32
    %25 = vector.broadcast %cst_5 : f32 to vector<8x8xf32>
    %cst_6 = arith.constant 0.000000e+00 : f32
    %26 = vector.broadcast %cst_6 : f32 to vector<8x8xf32>
    %27 = vector.extract_strided_slice %14 {offsets = [0, 0], sizes = [8, 32], strides = [1, 1]} : vector<64x32xf32> to vector<8x32xf32>
    %cst_7 = arith.constant dense<0.000000e+00> : vector<8x32xf32>
    %28 = tpu.matmul %25, %4, %cst_7 {dimension_numbers = #tpu.dot_dimension_numbers<[1], [0], [0], [1], [0, 0, 1, 1], [], []>} : vector<8x8xf32>, vector<8x32xf32>, vector<8x32xf32> -> vector<8x32xf32>
    %29 = arith.addf %28, %16 : vector<8x32xf32>
    %cst_8 = arith.constant dense<0.000000e+00> : vector<8x32xf32>
    %30 = tpu.matmul %23, %2, %cst_8 {dimension_numbers = #tpu.dot_dimension_numbers<[1], [0], [0], [1], [0, 0, 1, 1], [], []>} : vector<8x8xf32>, vector<8x32xf32>, vector<8x32xf32> -> vector<8x32xf32>
    %31 = arith.addf %27, %30 : vector<8x32xf32>
    %32 = arith.negf %31 : vector<8x32xf32>
    %33 = math.exp %32 : vector<8x32xf32>
    %cst_9 = arith.constant 1.000000e+00 : f32
    %34 = vector.broadcast %cst_9 : f32 to vector<8x32xf32>
    %35 = arith.addf %34, %33 : vector<8x32xf32>
    %36 = arith.divf %34, %35 : vector<8x32xf32>
    %37 = arith.mulf %36, %18 : vector<8x32xf32>
    %38 = arith.addf %37, %20 : vector<8x32xf32>
    %39 = vector.extract_strided_slice %38 {offsets = [0, 0], sizes = [8, 8], strides = [1, 1]} : vector<8x32xf32> to vector<8x8xf32>
    %40 = vector.extract_strided_slice %38 {offsets = [0, 8], sizes = [8, 8], strides = [1, 1]} : vector<8x32xf32> to vector<8x8xf32>
    %41 = vector.extract_strided_slice %38 {offsets = [0, 16], sizes = [8, 8], strides = [1, 1]} : vector<8x32xf32> to vector<8x8xf32>
    %42 = vector.extract_strided_slice %38 {offsets = [0, 24], sizes = [8, 8], strides = [1, 1]} : vector<8x32xf32> to vector<8x8xf32>
    %43 = arith.mulf %40, %24 : vector<8x8xf32>
    %44 = arith.mulf %39, %41 : vector<8x8xf32>
    %45 = arith.addf %43, %44 : vector<8x8xf32>
    %46 = math.tanh %45 : vector<8x8xf32>
    %47 = arith.mulf %42, %46 : vector<8x8xf32>
    %cst_10 = arith.constant dense<0.000000e+00> : vector<8x32xf32>
    %48 = tpu.matmul %47, %3, %cst_10 {dimension_numbers = #tpu.dot_dimension_numbers<[1], [0], [0], [1], [0, 0, 1, 1], [], []>} : vector<8x8xf32>, vector<8x32xf32>, vector<8x32xf32> -> vector<8x32xf32>
    %49 = arith.addf %29, %48 : vector<8x32xf32>
    %50 = arith.negf %49 : vector<8x32xf32>
    %51 = math.exp %50 : vector<8x32xf32>
    %cst_11 = arith.constant 1.000000e+00 : f32
    %52 = vector.broadcast %cst_11 : f32 to vector<8x32xf32>
    %53 = arith.addf %52, %51 : vector<8x32xf32>
    %54 = arith.divf %52, %53 : vector<8x32xf32>
    %55 = arith.mulf %54, %18 : vector<8x32xf32>
    %56 = arith.addf %55, %20 : vector<8x32xf32>
    %57 = vector.extract_strided_slice %56 {offsets = [0, 0], sizes = [8, 8], strides = [1, 1]} : vector<8x32xf32> to vector<8x8xf32>
    %58 = vector.extract_strided_slice %56 {offsets = [0, 8], sizes = [8, 8], strides = [1, 1]} : vector<8x32xf32> to vector<8x8xf32>
    %59 = vector.extract_strided_slice %56 {offsets = [0, 16], sizes = [8, 8], strides = [1, 1]} : vector<8x32xf32> to vector<8x8xf32>
    %60 = vector.extract_strided_slice %56 {offsets = [0, 24], sizes = [8, 8], strides = [1, 1]} : vector<8x32xf32> to vector<8x8xf32>
    %61 = arith.mulf %58, %26 : vector<8x8xf32>
    %62 = arith.mulf %57, %59 : vector<8x8xf32>
    %63 = arith.addf %61, %62 : vector<8x8xf32>
    %64 = math.tanh %63 : vector<8x8xf32>
    %65 = arith.mulf %60, %64 : vector<8x8xf32>
    %66 = vector.extract_strided_slice %14 {offsets = [8, 0], sizes = [8, 32], strides = [1, 1]} : vector<64x32xf32> to vector<8x32xf32>
    %cst_12 = arith.constant dense<0.000000e+00> : vector<8x32xf32>
    %67 = tpu.matmul %65, %4, %cst_12 {dimension_numbers = #tpu.dot_dimension_numbers<[1], [0], [0], [1], [0, 0, 1, 1], [], []>} : vector<8x8xf32>, vector<8x32xf32>, vector<8x32xf32> -> vector<8x32xf32>
    %68 = arith.addf %67, %16 : vector<8x32xf32>
    %cst_13 = arith.constant dense<0.000000e+00> : vector<8x32xf32>
    %69 = tpu.matmul %47, %2, %cst_13 {dimension_numbers = #tpu.dot_dimension_numbers<[1], [0], [0], [1], [0, 0, 1, 1], [], []>} : vector<8x8xf32>, vector<8x32xf32>, vector<8x32xf32> -> vector<8x32xf32>
    %70 = arith.addf %66, %69 : vector<8x32xf32>
    %71 = arith.negf %70 : vector<8x32xf32>
    %72 = math.exp %71 : vector<8x32xf32>
    %cst_14 = arith.constant 1.000000e+00 : f32
    %73 = vector.broadcast %cst_14 : f32 to vector<8x32xf32>
    %74 = arith.addf %73, %72 : vector<8x32xf32>
    %75 = arith.divf %73, %74 : vector<8x32xf32>
    %76 = arith.mulf %75, %18 : vector<8x32xf32>
    %77 = arith.addf %76, %20 : vector<8x32xf32>
    %78 = vector.extract_strided_slice %77 {offsets = [0, 0], sizes = [8, 8], strides = [1, 1]} : vector<8x32xf32> to vector<8x8xf32>
    %79 = vector.extract_strided_slice %77 {offsets = [0, 8], sizes = [8, 8], strides = [1, 1]} : vector<8x32xf32> to vector<8x8xf32>
    %80 = vector.extract_strided_slice %77 {offsets = [0, 16], sizes = [8, 8], strides = [1, 1]} : vector<8x32xf32> to vector<8x8xf32>
    %81 = vector.extract_strided_slice %77 {offsets = [0, 24], sizes = [8, 8], strides = [1, 1]} : vector<8x32xf32> to vector<8x8xf32>
    %82 = arith.mulf %79, %45 : vector<8x8xf32>
    %83 = arith.mulf %78, %80 : vector<8x8xf32>
    %84 = arith.addf %82, %83 : vector<8x8xf32>
    %85 = math.tanh %84 : vector<8x8xf32>
    %86 = arith.mulf %81, %85 : vector<8x8xf32>
    %cst_15 = arith.constant dense<0.000000e+00> : vector<8x32xf32>
    %87 = tpu.matmul %86, %3, %cst_15 {dimension_numbers = #tpu.dot_dimension_numbers<[1], [0], [0], [1], [0, 0, 1, 1], [], []>} : vector<8x8xf32>, vector<8x32xf32>, vector<8x32xf32> -> vector<8x32xf32>
    %88 = arith.addf %68, %87 : vector<8x32xf32>
    %89 = arith.negf %88 : vector<8x32xf32>
    %90 = math.exp %89 : vector<8x32xf32>
    %cst_16 = arith.constant 1.000000e+00 : f32
    %91 = vector.broadcast %cst_16 : f32 to vector<8x32xf32>
    %92 = arith.addf %91, %90 : vector<8x32xf32>
    %93 = arith.divf %91, %92 : vector<8x32xf32>
    %94 = arith.mulf %93, %18 : vector<8x32xf32>
    %95 = arith.addf %94, %20 : vector<8x32xf32>
    %96 = vector.extract_strided_slice %95 {offsets = [0, 0], sizes = [8, 8], strides = [1, 1]} : vector<8x32xf32> to vector<8x8xf32>
    %97 = vector.extract_strided_slice %95 {offsets = [0, 8], sizes = [8, 8], strides = [1, 1]} : vector<8x32xf32> to vector<8x8xf32>
    %98 = vector.extract_strided_slice %95 {offsets = [0, 16], sizes = [8, 8], strides = [1, 1]} : vector<8x32xf32> to vector<8x8xf32>
    %99 = vector.extract_strided_slice %95 {offsets = [0, 24], sizes = [8, 8], strides = [1, 1]} : vector<8x32xf32> to vector<8x8xf32>
    %100 = arith.mulf %97, %63 : vector<8x8xf32>
    %101 = arith.mulf %96, %98 : vector<8x8xf32>
    %102 = arith.addf %100, %101 : vector<8x8xf32>
    %103 = math.tanh %102 : vector<8x8xf32>
    %104 = arith.mulf %99, %103 : vector<8x8xf32>
    %105 = vector.extract_strided_slice %14 {offsets = [16, 0], sizes = [8, 32], strides = [1, 1]} : vector<64x32xf32> to vector<8x32xf32>
    %cst_17 = arith.constant dense<0.000000e+00> : vector<8x32xf32>
    %106 = tpu.matmul %104, %4, %cst_17 {dimension_numbers = #tpu.dot_dimension_numbers<[1], [0], [0], [1], [0, 0, 1, 1], [], []>} : vector<8x8xf32>, vector<8x32xf32>, vector<8x32xf32> -> vector<8x32xf32>
    %107 = arith.addf %106, %16 : vector<8x32xf32>
    %cst_18 = arith.constant dense<0.000000e+00> : vector<8x32xf32>
    %108 = tpu.matmul %86, %2, %cst_18 {dimension_numbers = #tpu.dot_dimension_numbers<[1], [0], [0], [1], [0, 0, 1, 1], [], []>} : vector<8x8xf32>, vector<8x32xf32>, vector<8x32xf32> -> vector<8x32xf32>
    %109 = arith.addf %105, %108 : vector<8x32xf32>
    %110 = arith.negf %109 : vector<8x32xf32>
    %111 = math.exp %110 : vector<8x32xf32>
    %cst_19 = arith.constant 1.000000e+00 : f32
    %112 = vector.broadcast %cst_19 : f32 to vector<8x32xf32>
    %113 = arith.addf %112, %111 : vector<8x32xf32>
    %114 = arith.divf %112, %113 : vector<8x32xf32>
    %115 = arith.mulf %114, %18 : vector<8x32xf32>
    %116 = arith.addf %115, %20 : vector<8x32xf32>
    %117 = vector.extract_strided_slice %116 {offsets = [0, 0], sizes = [8, 8], strides = [1, 1]} : vector<8x32xf32> to vector<8x8xf32>
    %118 = vector.extract_strided_slice %116 {offsets = [0, 8], sizes = [8, 8], strides = [1, 1]} : vector<8x32xf32> to vector<8x8xf32>
    %119 = vector.extract_strided_slice %116 {offsets = [0, 16], sizes = [8, 8], strides = [1, 1]} : vector<8x32xf32> to vector<8x8xf32>
    %120 = vector.extract_strided_slice %116 {offsets = [0, 24], sizes = [8, 8], strides = [1, 1]} : vector<8x32xf32> to vector<8x8xf32>
    %121 = arith.mulf %118, %84 : vector<8x8xf32>
    %122 = arith.mulf %117, %119 : vector<8x8xf32>
    %123 = arith.addf %121, %122 : vector<8x8xf32>
    %124 = math.tanh %123 : vector<8x8xf32>
    %125 = arith.mulf %120, %124 : vector<8x8xf32>
    %cst_20 = arith.constant dense<0.000000e+00> : vector<8x32xf32>
    %126 = tpu.matmul %125, %3, %cst_20 {dimension_numbers = #tpu.dot_dimension_numbers<[1], [0], [0], [1], [0, 0, 1, 1], [], []>} : vector<8x8xf32>, vector<8x32xf32>, vector<8x32xf32> -> vector<8x32xf32>
    %127 = arith.addf %107, %126 : vector<8x32xf32>
    %128 = arith.negf %127 : vector<8x32xf32>
    %129 = math.exp %128 : vector<8x32xf32>
    %cst_21 = arith.constant 1.000000e+00 : f32
    %130 = vector.broadcast %cst_21 : f32 to vector<8x32xf32>
    %131 = arith.addf %130, %129 : vector<8x32xf32>
    %132 = arith.divf %130, %131 : vector<8x32xf32>
    %133 = arith.mulf %132, %18 : vector<8x32xf32>
    %134 = arith.addf %133, %20 : vector<8x32xf32>
    %135 = vector.extract_strided_slice %134 {offsets = [0, 0], sizes = [8, 8], strides = [1, 1]} : vector<8x32xf32> to vector<8x8xf32>
    %136 = vector.extract_strided_slice %134 {offsets = [0, 8], sizes = [8, 8], strides = [1, 1]} : vector<8x32xf32> to vector<8x8xf32>
    %137 = vector.extract_strided_slice %134 {offsets = [0, 16], sizes = [8, 8], strides = [1, 1]} : vector<8x32xf32> to vector<8x8xf32>
    %138 = vector.extract_strided_slice %134 {offsets = [0, 24], sizes = [8, 8], strides = [1, 1]} : vector<8x32xf32> to vector<8x8xf32>
    %139 = arith.mulf %136, %102 : vector<8x8xf32>
    %140 = arith.mulf %135, %137 : vector<8x8xf32>
    %141 = arith.addf %139, %140 : vector<8x8xf32>
    %142 = math.tanh %141 : vector<8x8xf32>
    %143 = arith.mulf %138, %142 : vector<8x8xf32>
    %144 = vector.extract_strided_slice %14 {offsets = [24, 0], sizes = [8, 32], strides = [1, 1]} : vector<64x32xf32> to vector<8x32xf32>
    %cst_22 = arith.constant dense<0.000000e+00> : vector<8x32xf32>
    %145 = tpu.matmul %143, %4, %cst_22 {dimension_numbers = #tpu.dot_dimension_numbers<[1], [0], [0], [1], [0, 0, 1, 1], [], []>} : vector<8x8xf32>, vector<8x32xf32>, vector<8x32xf32> -> vector<8x32xf32>
    %146 = arith.addf %145, %16 : vector<8x32xf32>
    %cst_23 = arith.constant dense<0.000000e+00> : vector<8x32xf32>
    %147 = tpu.matmul %125, %2, %cst_23 {dimension_numbers = #tpu.dot_dimension_numbers<[1], [0], [0], [1], [0, 0, 1, 1], [], []>} : vector<8x8xf32>, vector<8x32xf32>, vector<8x32xf32> -> vector<8x32xf32>
    %148 = arith.addf %144, %147 : vector<8x32xf32>
    %149 = arith.negf %148 : vector<8x32xf32>
    %150 = math.exp %149 : vector<8x32xf32>
    %cst_24 = arith.constant 1.000000e+00 : f32
    %151 = vector.broadcast %cst_24 : f32 to vector<8x32xf32>
    %152 = arith.addf %151, %150 : vector<8x32xf32>
    %153 = arith.divf %151, %152 : vector<8x32xf32>
    %154 = arith.mulf %153, %18 : vector<8x32xf32>
    %155 = arith.addf %154, %20 : vector<8x32xf32>
    %156 = vector.extract_strided_slice %155 {offsets = [0, 0], sizes = [8, 8], strides = [1, 1]} : vector<8x32xf32> to vector<8x8xf32>
    %157 = vector.extract_strided_slice %155 {offsets = [0, 8], sizes = [8, 8], strides = [1, 1]} : vector<8x32xf32> to vector<8x8xf32>
    %158 = vector.extract_strided_slice %155 {offsets = [0, 16], sizes = [8, 8], strides = [1, 1]} : vector<8x32xf32> to vector<8x8xf32>
    %159 = vector.extract_strided_slice %155 {offsets = [0, 24], sizes = [8, 8], strides = [1, 1]} : vector<8x32xf32> to vector<8x8xf32>
    %160 = arith.mulf %157, %123 : vector<8x8xf32>
    %161 = arith.mulf %156, %158 : vector<8x8xf32>
    %162 = arith.addf %160, %161 : vector<8x8xf32>
    %163 = math.tanh %162 : vector<8x8xf32>
    %164 = arith.mulf %159, %163 : vector<8x8xf32>
    %cst_25 = arith.constant dense<0.000000e+00> : vector<8x32xf32>
    %165 = tpu.matmul %164, %3, %cst_25 {dimension_numbers = #tpu.dot_dimension_numbers<[1], [0], [0], [1], [0, 0, 1, 1], [], []>} : vector<8x8xf32>, vector<8x32xf32>, vector<8x32xf32> -> vector<8x32xf32>
    %166 = arith.addf %146, %165 : vector<8x32xf32>
    %167 = arith.negf %166 : vector<8x32xf32>
    %168 = math.exp %167 : vector<8x32xf32>
    %cst_26 = arith.constant 1.000000e+00 : f32
    %169 = vector.broadcast %cst_26 : f32 to vector<8x32xf32>
    %170 = arith.addf %169, %168 : vector<8x32xf32>
    %171 = arith.divf %169, %170 : vector<8x32xf32>
    %172 = arith.mulf %171, %18 : vector<8x32xf32>
    %173 = arith.addf %172, %20 : vector<8x32xf32>
    %174 = vector.extract_strided_slice %173 {offsets = [0, 0], sizes = [8, 8], strides = [1, 1]} : vector<8x32xf32> to vector<8x8xf32>
    %175 = vector.extract_strided_slice %173 {offsets = [0, 8], sizes = [8, 8], strides = [1, 1]} : vector<8x32xf32> to vector<8x8xf32>
    %176 = vector.extract_strided_slice %173 {offsets = [0, 16], sizes = [8, 8], strides = [1, 1]} : vector<8x32xf32> to vector<8x8xf32>
    %177 = vector.extract_strided_slice %173 {offsets = [0, 24], sizes = [8, 8], strides = [1, 1]} : vector<8x32xf32> to vector<8x8xf32>
    %178 = arith.mulf %175, %141 : vector<8x8xf32>
    %179 = arith.mulf %174, %176 : vector<8x8xf32>
    %180 = arith.addf %178, %179 : vector<8x8xf32>
    %181 = math.tanh %180 : vector<8x8xf32>
    %182 = arith.mulf %177, %181 : vector<8x8xf32>
    %183 = vector.extract_strided_slice %14 {offsets = [32, 0], sizes = [8, 32], strides = [1, 1]} : vector<64x32xf32> to vector<8x32xf32>
    %cst_27 = arith.constant dense<0.000000e+00> : vector<8x32xf32>
    %184 = tpu.matmul %182, %4, %cst_27 {dimension_numbers = #tpu.dot_dimension_numbers<[1], [0], [0], [1], [0, 0, 1, 1], [], []>} : vector<8x8xf32>, vector<8x32xf32>, vector<8x32xf32> -> vector<8x32xf32>
    %185 = arith.addf %184, %16 : vector<8x32xf32>
    %cst_28 = arith.constant dense<0.000000e+00> : vector<8x32xf32>
    %186 = tpu.matmul %164, %2, %cst_28 {dimension_numbers = #tpu.dot_dimension_numbers<[1], [0], [0], [1], [0, 0, 1, 1], [], []>} : vector<8x8xf32>, vector<8x32xf32>, vector<8x32xf32> -> vector<8x32xf32>
    %187 = arith.addf %183, %186 : vector<8x32xf32>
    %188 = arith.negf %187 : vector<8x32xf32>
    %189 = math.exp %188 : vector<8x32xf32>
    %cst_29 = arith.constant 1.000000e+00 : f32
    %190 = vector.broadcast %cst_29 : f32 to vector<8x32xf32>
    %191 = arith.addf %190, %189 : vector<8x32xf32>
    %192 = arith.divf %190, %191 : vector<8x32xf32>
    %193 = arith.mulf %192, %18 : vector<8x32xf32>
    %194 = arith.addf %193, %20 : vector<8x32xf32>
    %195 = vector.extract_strided_slice %194 {offsets = [0, 0], sizes = [8, 8], strides = [1, 1]} : vector<8x32xf32> to vector<8x8xf32>
    %196 = vector.extract_strided_slice %194 {offsets = [0, 8], sizes = [8, 8], strides = [1, 1]} : vector<8x32xf32> to vector<8x8xf32>
    %197 = vector.extract_strided_slice %194 {offsets = [0, 16], sizes = [8, 8], strides = [1, 1]} : vector<8x32xf32> to vector<8x8xf32>
    %198 = vector.extract_strided_slice %194 {offsets = [0, 24], sizes = [8, 8], strides = [1, 1]} : vector<8x32xf32> to vector<8x8xf32>
    %199 = arith.mulf %196, %162 : vector<8x8xf32>
    %200 = arith.mulf %195, %197 : vector<8x8xf32>
    %201 = arith.addf %199, %200 : vector<8x8xf32>
    %202 = math.tanh %201 : vector<8x8xf32>
    %203 = arith.mulf %198, %202 : vector<8x8xf32>
    %cst_30 = arith.constant dense<0.000000e+00> : vector<8x32xf32>
    %204 = tpu.matmul %203, %3, %cst_30 {dimension_numbers = #tpu.dot_dimension_numbers<[1], [0], [0], [1], [0, 0, 1, 1], [], []>} : vector<8x8xf32>, vector<8x32xf32>, vector<8x32xf32> -> vector<8x32xf32>
    %205 = arith.addf %185, %204 : vector<8x32xf32>
    %206 = arith.negf %205 : vector<8x32xf32>
    %207 = math.exp %206 : vector<8x32xf32>
    %cst_31 = arith.constant 1.000000e+00 : f32
    %208 = vector.broadcast %cst_31 : f32 to vector<8x32xf32>
    %209 = arith.addf %208, %207 : vector<8x32xf32>
    %210 = arith.divf %208, %209 : vector<8x32xf32>
    %211 = arith.mulf %210, %18 : vector<8x32xf32>
    %212 = arith.addf %211, %20 : vector<8x32xf32>
    %213 = vector.extract_strided_slice %212 {offsets = [0, 0], sizes = [8, 8], strides = [1, 1]} : vector<8x32xf32> to vector<8x8xf32>
    %214 = vector.extract_strided_slice %212 {offsets = [0, 8], sizes = [8, 8], strides = [1, 1]} : vector<8x32xf32> to vector<8x8xf32>
    %215 = vector.extract_strided_slice %212 {offsets = [0, 16], sizes = [8, 8], strides = [1, 1]} : vector<8x32xf32> to vector<8x8xf32>
    %216 = vector.extract_strided_slice %212 {offsets = [0, 24], sizes = [8, 8], strides = [1, 1]} : vector<8x32xf32> to vector<8x8xf32>
    %217 = arith.mulf %214, %180 : vector<8x8xf32>
    %218 = arith.mulf %213, %215 : vector<8x8xf32>
    %219 = arith.addf %217, %218 : vector<8x8xf32>
    %220 = math.tanh %219 : vector<8x8xf32>
    %221 = arith.mulf %216, %220 : vector<8x8xf32>
    %222 = vector.extract_strided_slice %14 {offsets = [40, 0], sizes = [8, 32], strides = [1, 1]} : vector<64x32xf32> to vector<8x32xf32>
    %cst_32 = arith.constant dense<0.000000e+00> : vector<8x32xf32>
    %223 = tpu.matmul %221, %4, %cst_32 {dimension_numbers = #tpu.dot_dimension_numbers<[1], [0], [0], [1], [0, 0, 1, 1], [], []>} : vector<8x8xf32>, vector<8x32xf32>, vector<8x32xf32> -> vector<8x32xf32>
    %224 = arith.addf %223, %16 : vector<8x32xf32>
    %cst_33 = arith.constant dense<0.000000e+00> : vector<8x32xf32>
    %225 = tpu.matmul %203, %2, %cst_33 {dimension_numbers = #tpu.dot_dimension_numbers<[1], [0], [0], [1], [0, 0, 1, 1], [], []>} : vector<8x8xf32>, vector<8x32xf32>, vector<8x32xf32> -> vector<8x32xf32>
    %226 = arith.addf %222, %225 : vector<8x32xf32>
    %227 = arith.negf %226 : vector<8x32xf32>
    %228 = math.exp %227 : vector<8x32xf32>
    %cst_34 = arith.constant 1.000000e+00 : f32
    %229 = vector.broadcast %cst_34 : f32 to vector<8x32xf32>
    %230 = arith.addf %229, %228 : vector<8x32xf32>
    %231 = arith.divf %229, %230 : vector<8x32xf32>
    %232 = arith.mulf %231, %18 : vector<8x32xf32>
    %233 = arith.addf %232, %20 : vector<8x32xf32>
    %234 = vector.extract_strided_slice %233 {offsets = [0, 0], sizes = [8, 8], strides = [1, 1]} : vector<8x32xf32> to vector<8x8xf32>
    %235 = vector.extract_strided_slice %233 {offsets = [0, 8], sizes = [8, 8], strides = [1, 1]} : vector<8x32xf32> to vector<8x8xf32>
    %236 = vector.extract_strided_slice %233 {offsets = [0, 16], sizes = [8, 8], strides = [1, 1]} : vector<8x32xf32> to vector<8x8xf32>
    %237 = vector.extract_strided_slice %233 {offsets = [0, 24], sizes = [8, 8], strides = [1, 1]} : vector<8x32xf32> to vector<8x8xf32>
    %238 = arith.mulf %235, %201 : vector<8x8xf32>
    %239 = arith.mulf %234, %236 : vector<8x8xf32>
    %240 = arith.addf %238, %239 : vector<8x8xf32>
    %241 = math.tanh %240 : vector<8x8xf32>
    %242 = arith.mulf %237, %241 : vector<8x8xf32>
    %cst_35 = arith.constant dense<0.000000e+00> : vector<8x32xf32>
    %243 = tpu.matmul %242, %3, %cst_35 {dimension_numbers = #tpu.dot_dimension_numbers<[1], [0], [0], [1], [0, 0, 1, 1], [], []>} : vector<8x8xf32>, vector<8x32xf32>, vector<8x32xf32> -> vector<8x32xf32>
    %244 = arith.addf %224, %243 : vector<8x32xf32>
    %245 = arith.negf %244 : vector<8x32xf32>
    %246 = math.exp %245 : vector<8x32xf32>
    %cst_36 = arith.constant 1.000000e+00 : f32
    %247 = vector.broadcast %cst_36 : f32 to vector<8x32xf32>
    %248 = arith.addf %247, %246 : vector<8x32xf32>
    %249 = arith.divf %247, %248 : vector<8x32xf32>
    %250 = arith.mulf %249, %18 : vector<8x32xf32>
    %251 = arith.addf %250, %20 : vector<8x32xf32>
    %252 = vector.extract_strided_slice %251 {offsets = [0, 0], sizes = [8, 8], strides = [1, 1]} : vector<8x32xf32> to vector<8x8xf32>
    %253 = vector.extract_strided_slice %251 {offsets = [0, 8], sizes = [8, 8], strides = [1, 1]} : vector<8x32xf32> to vector<8x8xf32>
    %254 = vector.extract_strided_slice %251 {offsets = [0, 16], sizes = [8, 8], strides = [1, 1]} : vector<8x32xf32> to vector<8x8xf32>
    %255 = vector.extract_strided_slice %251 {offsets = [0, 24], sizes = [8, 8], strides = [1, 1]} : vector<8x32xf32> to vector<8x8xf32>
    %256 = arith.mulf %253, %219 : vector<8x8xf32>
    %257 = arith.mulf %252, %254 : vector<8x8xf32>
    %258 = arith.addf %256, %257 : vector<8x8xf32>
    %259 = math.tanh %258 : vector<8x8xf32>
    %260 = arith.mulf %255, %259 : vector<8x8xf32>
    %261 = vector.extract_strided_slice %14 {offsets = [48, 0], sizes = [8, 32], strides = [1, 1]} : vector<64x32xf32> to vector<8x32xf32>
    %cst_37 = arith.constant dense<0.000000e+00> : vector<8x32xf32>
    %262 = tpu.matmul %260, %4, %cst_37 {dimension_numbers = #tpu.dot_dimension_numbers<[1], [0], [0], [1], [0, 0, 1, 1], [], []>} : vector<8x8xf32>, vector<8x32xf32>, vector<8x32xf32> -> vector<8x32xf32>
    %263 = arith.addf %262, %16 : vector<8x32xf32>
    %cst_38 = arith.constant dense<0.000000e+00> : vector<8x32xf32>
    %264 = tpu.matmul %242, %2, %cst_38 {dimension_numbers = #tpu.dot_dimension_numbers<[1], [0], [0], [1], [0, 0, 1, 1], [], []>} : vector<8x8xf32>, vector<8x32xf32>, vector<8x32xf32> -> vector<8x32xf32>
    %265 = arith.addf %261, %264 : vector<8x32xf32>
    %266 = arith.negf %265 : vector<8x32xf32>
    %267 = math.exp %266 : vector<8x32xf32>
    %cst_39 = arith.constant 1.000000e+00 : f32
    %268 = vector.broadcast %cst_39 : f32 to vector<8x32xf32>
    %269 = arith.addf %268, %267 : vector<8x32xf32>
    %270 = arith.divf %268, %269 : vector<8x32xf32>
    %271 = arith.mulf %270, %18 : vector<8x32xf32>
    %272 = arith.addf %271, %20 : vector<8x32xf32>
    %273 = vector.extract_strided_slice %272 {offsets = [0, 0], sizes = [8, 8], strides = [1, 1]} : vector<8x32xf32> to vector<8x8xf32>
    %274 = vector.extract_strided_slice %272 {offsets = [0, 8], sizes = [8, 8], strides = [1, 1]} : vector<8x32xf32> to vector<8x8xf32>
    %275 = vector.extract_strided_slice %272 {offsets = [0, 16], sizes = [8, 8], strides = [1, 1]} : vector<8x32xf32> to vector<8x8xf32>
    %276 = vector.extract_strided_slice %272 {offsets = [0, 24], sizes = [8, 8], strides = [1, 1]} : vector<8x32xf32> to vector<8x8xf32>
    %277 = arith.mulf %274, %240 : vector<8x8xf32>
    %278 = arith.mulf %273, %275 : vector<8x8xf32>
    %279 = arith.addf %277, %278 : vector<8x8xf32>
    %280 = math.tanh %279 : vector<8x8xf32>
    %281 = arith.mulf %276, %280 : vector<8x8xf32>
    %cst_40 = arith.constant dense<0.000000e+00> : vector<8x32xf32>
    %282 = tpu.matmul %281, %3, %cst_40 {dimension_numbers = #tpu.dot_dimension_numbers<[1], [0], [0], [1], [0, 0, 1, 1], [], []>} : vector<8x8xf32>, vector<8x32xf32>, vector<8x32xf32> -> vector<8x32xf32>
    %283 = arith.addf %263, %282 : vector<8x32xf32>
    %284 = arith.negf %283 : vector<8x32xf32>
    %285 = math.exp %284 : vector<8x32xf32>
    %cst_41 = arith.constant 1.000000e+00 : f32
    %286 = vector.broadcast %cst_41 : f32 to vector<8x32xf32>
    %287 = arith.addf %286, %285 : vector<8x32xf32>
    %288 = arith.divf %286, %287 : vector<8x32xf32>
    %289 = arith.mulf %288, %18 : vector<8x32xf32>
    %290 = arith.addf %289, %20 : vector<8x32xf32>
    %291 = vector.extract_strided_slice %290 {offsets = [0, 0], sizes = [8, 8], strides = [1, 1]} : vector<8x32xf32> to vector<8x8xf32>
    %292 = vector.extract_strided_slice %290 {offsets = [0, 8], sizes = [8, 8], strides = [1, 1]} : vector<8x32xf32> to vector<8x8xf32>
    %293 = vector.extract_strided_slice %290 {offsets = [0, 16], sizes = [8, 8], strides = [1, 1]} : vector<8x32xf32> to vector<8x8xf32>
    %294 = vector.extract_strided_slice %290 {offsets = [0, 24], sizes = [8, 8], strides = [1, 1]} : vector<8x32xf32> to vector<8x8xf32>
    %295 = arith.mulf %292, %258 : vector<8x8xf32>
    %296 = arith.mulf %291, %293 : vector<8x8xf32>
    %297 = arith.addf %295, %296 : vector<8x8xf32>
    %298 = math.tanh %297 : vector<8x8xf32>
    %299 = arith.mulf %294, %298 : vector<8x8xf32>
    %300 = vector.extract_strided_slice %14 {offsets = [56, 0], sizes = [8, 32], strides = [1, 1]} : vector<64x32xf32> to vector<8x32xf32>
    %cst_42 = arith.constant dense<0.000000e+00> : vector<8x32xf32>
    %301 = tpu.matmul %299, %4, %cst_42 {dimension_numbers = #tpu.dot_dimension_numbers<[1], [0], [0], [1], [0, 0, 1, 1], [], []>} : vector<8x8xf32>, vector<8x32xf32>, vector<8x32xf32> -> vector<8x32xf32>
    %302 = arith.addf %301, %16 : vector<8x32xf32>
    %cst_43 = arith.constant dense<0.000000e+00> : vector<8x32xf32>
    %303 = tpu.matmul %281, %2, %cst_43 {dimension_numbers = #tpu.dot_dimension_numbers<[1], [0], [0], [1], [0, 0, 1, 1], [], []>} : vector<8x8xf32>, vector<8x32xf32>, vector<8x32xf32> -> vector<8x32xf32>
    %304 = arith.addf %300, %303 : vector<8x32xf32>
    %305 = arith.negf %304 : vector<8x32xf32>
    %306 = math.exp %305 : vector<8x32xf32>
    %cst_44 = arith.constant 1.000000e+00 : f32
    %307 = vector.broadcast %cst_44 : f32 to vector<8x32xf32>
    %308 = arith.addf %307, %306 : vector<8x32xf32>
    %309 = arith.divf %307, %308 : vector<8x32xf32>
    %310 = arith.mulf %309, %18 : vector<8x32xf32>
    %311 = arith.addf %310, %20 : vector<8x32xf32>
    %312 = vector.extract_strided_slice %311 {offsets = [0, 0], sizes = [8, 8], strides = [1, 1]} : vector<8x32xf32> to vector<8x8xf32>
    %313 = vector.extract_strided_slice %311 {offsets = [0, 8], sizes = [8, 8], strides = [1, 1]} : vector<8x32xf32> to vector<8x8xf32>
    %314 = vector.extract_strided_slice %311 {offsets = [0, 16], sizes = [8, 8], strides = [1, 1]} : vector<8x32xf32> to vector<8x8xf32>
    %315 = vector.extract_strided_slice %311 {offsets = [0, 24], sizes = [8, 8], strides = [1, 1]} : vector<8x32xf32> to vector<8x8xf32>
    %316 = arith.mulf %313, %279 : vector<8x8xf32>
    %317 = arith.mulf %312, %314 : vector<8x8xf32>
    %318 = arith.addf %316, %317 : vector<8x8xf32>
    %319 = math.tanh %318 : vector<8x8xf32>
    %320 = arith.mulf %315, %319 : vector<8x8xf32>
    %cst_45 = arith.constant dense<0.000000e+00> : vector<8x32xf32>
    %321 = tpu.matmul %320, %3, %cst_45 {dimension_numbers = #tpu.dot_dimension_numbers<[1], [0], [0], [1], [0, 0, 1, 1], [], []>} : vector<8x8xf32>, vector<8x32xf32>, vector<8x32xf32> -> vector<8x32xf32>
    %322 = arith.addf %302, %321 : vector<8x32xf32>
    %323 = arith.negf %322 : vector<8x32xf32>
    %324 = math.exp %323 : vector<8x32xf32>
    %cst_46 = arith.constant 1.000000e+00 : f32
    %325 = vector.broadcast %cst_46 : f32 to vector<8x32xf32>
    %326 = arith.addf %325, %324 : vector<8x32xf32>
    %327 = arith.divf %325, %326 : vector<8x32xf32>
    %328 = arith.mulf %327, %18 : vector<8x32xf32>
    %329 = arith.addf %328, %20 : vector<8x32xf32>
    %330 = vector.extract_strided_slice %329 {offsets = [0, 0], sizes = [8, 8], strides = [1, 1]} : vector<8x32xf32> to vector<8x8xf32>
    %331 = vector.extract_strided_slice %329 {offsets = [0, 8], sizes = [8, 8], strides = [1, 1]} : vector<8x32xf32> to vector<8x8xf32>
    %332 = vector.extract_strided_slice %329 {offsets = [0, 16], sizes = [8, 8], strides = [1, 1]} : vector<8x32xf32> to vector<8x8xf32>
    %333 = vector.extract_strided_slice %329 {offsets = [0, 24], sizes = [8, 8], strides = [1, 1]} : vector<8x32xf32> to vector<8x8xf32>
    %334 = arith.mulf %331, %297 : vector<8x8xf32>
    %335 = arith.mulf %330, %332 : vector<8x8xf32>
    %336 = arith.addf %334, %335 : vector<8x8xf32>
    %337 = math.tanh %336 : vector<8x8xf32>
    %338 = arith.mulf %333, %337 : vector<8x8xf32>
    %339 = vector.extract_strided_slice %14 {offsets = [32, 0], sizes = [8, 32], strides = [1, 1]} : vector<64x32xf32> to vector<8x32xf32>
    %cst_47 = arith.constant dense<0.000000e+00> : vector<8x32xf32>
    %340 = tpu.matmul %338, %4, %cst_47 {dimension_numbers = #tpu.dot_dimension_numbers<[1], [0], [0], [1], [0, 0, 1, 1], [], []>} : vector<8x8xf32>, vector<8x32xf32>, vector<8x32xf32> -> vector<8x32xf32>
    %341 = arith.addf %340, %16 : vector<8x32xf32>
    %cst_48 = arith.constant dense<0.000000e+00> : vector<8x32xf32>
    %342 = tpu.matmul %320, %2, %cst_48 {dimension_numbers = #tpu.dot_dimension_numbers<[1], [0], [0], [1], [0, 0, 1, 1], [], []>} : vector<8x8xf32>, vector<8x32xf32>, vector<8x32xf32> -> vector<8x32xf32>
    %343 = arith.addf %339, %342 : vector<8x32xf32>
    %344 = arith.negf %343 : vector<8x32xf32>
    %345 = math.exp %344 : vector<8x32xf32>
    %cst_49 = arith.constant 1.000000e+00 : f32
    %346 = vector.broadcast %cst_49 : f32 to vector<8x32xf32>
    %347 = arith.addf %346, %345 : vector<8x32xf32>
    %348 = arith.divf %346, %347 : vector<8x32xf32>
    %349 = arith.mulf %348, %18 : vector<8x32xf32>
    %350 = arith.addf %349, %20 : vector<8x32xf32>
    %351 = vector.extract_strided_slice %350 {offsets = [0, 0], sizes = [8, 8], strides = [1, 1]} : vector<8x32xf32> to vector<8x8xf32>
    %352 = vector.extract_strided_slice %350 {offsets = [0, 8], sizes = [8, 8], strides = [1, 1]} : vector<8x32xf32> to vector<8x8xf32>
    %353 = vector.extract_strided_slice %350 {offsets = [0, 16], sizes = [8, 8], strides = [1, 1]} : vector<8x32xf32> to vector<8x8xf32>
    %354 = vector.extract_strided_slice %350 {offsets = [0, 24], sizes = [8, 8], strides = [1, 1]} : vector<8x32xf32> to vector<8x8xf32>
    %355 = arith.mulf %352, %318 : vector<8x8xf32>
    %356 = arith.mulf %351, %353 : vector<8x8xf32>
    %357 = arith.addf %355, %356 : vector<8x8xf32>
    %358 = math.tanh %357 : vector<8x8xf32>
    %359 = arith.mulf %354, %358 : vector<8x8xf32>
    %cst_50 = arith.constant dense<0.000000e+00> : vector<8x32xf32>
    %360 = tpu.matmul %359, %3, %cst_50 {dimension_numbers = #tpu.dot_dimension_numbers<[1], [0], [0], [1], [0, 0, 1, 1], [], []>} : vector<8x8xf32>, vector<8x32xf32>, vector<8x32xf32> -> vector<8x32xf32>
    %361 = arith.addf %341, %360 : vector<8x32xf32>
    %362 = arith.negf %361 : vector<8x32xf32>
    %363 = math.exp %362 : vector<8x32xf32>
    %cst_51 = arith.constant 1.000000e+00 : f32
    %364 = vector.broadcast %cst_51 : f32 to vector<8x32xf32>
    %365 = arith.addf %364, %363 : vector<8x32xf32>
    %366 = arith.divf %364, %365 : vector<8x32xf32>
    %367 = arith.mulf %366, %18 : vector<8x32xf32>
    %368 = arith.addf %367, %20 : vector<8x32xf32>
    %369 = vector.extract_strided_slice %368 {offsets = [0, 0], sizes = [8, 8], strides = [1, 1]} : vector<8x32xf32> to vector<8x8xf32>
    %370 = vector.extract_strided_slice %368 {offsets = [0, 8], sizes = [8, 8], strides = [1, 1]} : vector<8x32xf32> to vector<8x8xf32>
    %371 = vector.extract_strided_slice %368 {offsets = [0, 16], sizes = [8, 8], strides = [1, 1]} : vector<8x32xf32> to vector<8x8xf32>
    %372 = vector.extract_strided_slice %368 {offsets = [0, 24], sizes = [8, 8], strides = [1, 1]} : vector<8x32xf32> to vector<8x8xf32>
    %373 = arith.mulf %370, %336 : vector<8x8xf32>
    %374 = arith.mulf %369, %371 : vector<8x8xf32>
    %375 = arith.addf %373, %374 : vector<8x8xf32>
    %376 = math.tanh %375 : vector<8x8xf32>
    %377 = arith.mulf %372, %376 : vector<8x8xf32>
    %378 = arith.mulf %377, %22 : vector<8x8xf32>
    %cst_52 = arith.constant dense<0.000000e+00> : vector<8xf32>
    %379 = vector.multi_reduction <add>, %378, %cst_52 [1] : vector<8x8xf32> to vector<8xf32>
    %380 = vector.shape_cast %379 : vector<8xf32> to vector<8x1xf32>
    %381 = vector.broadcast %8 : vector<1x1xf32> to vector<8x1xf32>
    %382 = arith.addf %380, %381 : vector<8x1xf32>
    %c0_53 = arith.constant 0 : index
    %c0_54 = arith.constant 0 : index
    %383 = vector.load %arg2[%c0_53, %c0_54] : memref<8x1xf32, #tpu.memory_space<vmem>>, vector<8x1xf32>
    tpu.vector_store %arg2[%c0_53, %c0_54], %382 {strides = array<i32>} : memref<8x1xf32, #tpu.memory_space<vmem>>, vector<8x1xf32>,
    return
  }
}

</mosaic_0001>

<llo_original>
// kernel: tpu_custom_call.1
$region0: #{tpu_custom_call.1}
  #allocation0 [shape = 'u32[]', space=smem, size = 0x4, offset = 0x4, fixed_abs, tag = 'smem constant byte address 0x4 - core index']
  #allocation1 [shape = 'u32[144,128]{1,0:T(1,128)}', space=vmem, size = 0x12000, scoped, tag = 'internal scratch']
  %s0 = inlined_call_operand.vmem [shape: f32[64,11], index: 0, kind: input, shape index: {}]
  %s1 = inlined_call_operand.vmem [shape: f32[48,128], index: 1, kind: input, shape index: {}]
  %s2 = inlined_call_operand.vmem [shape: f32[8,1], index: 2, kind: output, shape index: {}]
  %s3 = sld [smem:[#allocation0]]
  $region18: #{tpu_custom_call.1} parent=0
    _
  %s5 = ssub.s32 1, %s3
  %s6 = scalar_select 0, %s5, %s3
  // Predicated region
  $region2: #{tpu_custom_call.1} parent=0 // pred_check
    _
  $region3: #{tpu_custom_call.1} parent=0 // pred_check_branch
    %8 = sbr.rel (0) target = $region5
  $region4: #{tpu_custom_call.1} parent=0 // pred_region
    _
  $region5: #{tpu_custom_call.1} parent=0 // pred_fallthru
    _
  // Predicated region
  $region6: #{tpu_custom_call.1} parent=0 // pred_check
    _
  $region7: #{tpu_custom_call.1} parent=0 // pred_check_branch
    %10 = sbr.rel (0) target = $region9
  $region8: #{tpu_custom_call.1} parent=0 // pred_region
    _
  $region9: #{tpu_custom_call.1} parent=0 // pred_fallthru
    _
  %v11 = vld [vmem:[%s1] sm:$0xff]
  %v12 = vld [vmem:[%s1 + $0x8] sm:$0xff]
  %v13 = vld [vmem:[%s1 + $0x10] sm:$0xff]
  %v14 = vld [vmem:[%s1 + $0x18] sm:$0xff]
  %v15 = vld [vmem:[%s1 + $0x20] sm:$0xff]
  %v16 = vld [vmem:[%s1 + $0x28] sm:$0xff]
  %v17 = vld [vmem:[%s0] sm:$0xff]
  %v18 = vld [vmem:[%s0 + $0x8] sm:$0xff]
  %v19 = vld [vmem:[%s0 + $0x10] sm:$0xff]
  %v20 = vld [vmem:[%s0 + $0x18] sm:$0xff]
  %v21 = vld [vmem:[%s0 + $0x20] sm:$0xff]
  %v22 = vld [vmem:[%s0 + $0x28] sm:$0xff]
  %v23 = vld [vmem:[%s0 + $0x30] sm:$0xff]
  %v24 = vld [vmem:[%s0 + $0x38] sm:$0xff]
  %v25 = vlaneseq
  %v26 = vshrl.u32 %v25, 7
  %v27 = vsub.s32 0, %v26
  %v28 = vrot.slane %v16, %v27
  %vm29 = vcmask 89088
  %v31 = vsel %vm29, %v17, 0
  %v34 = vsel %vm29, %v18, 0
  %v37 = vsel %vm29, %v19, 0
  %v40 = vsel %vm29, %v20, 0
  %v43 = vsel %vm29, %v21, 0
  %v46 = vsel %vm29, %v22, 0
  %v49 = vsel %vm29, %v23, 0
  %v52 = vsel %vm29, %v24, 0
  %vm54 = vcmask 1042432
  %v56 = vsel %vm54, %v12, 0
  %58 = vmatprep.subr.mxu0 0.0
  %59 = vmatpush1.msra.mxu0 %v11
  %60 = vmatprep.subr.mxu0 0.0
  %61 = vmatpush1.msra.mxu0 %v56
  %62 = vmatprep.subr.mxu0 0.0
  %63 = vmatpush1.msra.mxu0 0.0
  %64 = vmatprep.subr.mxu0 0.0
  %65 = vmatpush1.msra.mxu0 0.0
  %66 = vmatprep.subr.mxu0 0.0
  %67 = vmatpush1.msra.mxu0 0.0
  %68 = vmatprep.subr.mxu0 0.0
  %69 = vmatpush1.msra.mxu0 0.0
  %70 = vmatprep.subr.mxu0 0.0
  %71 = vmatpush1.msra.mxu0 0.0
  %72 = vmatprep.subr.mxu0 0.0
  %73 = vmatpush1.msra.mxu0 0.0
  %74 = vmatprep.subr.mxu0 0.0
  %75 = vmatpush1.msra.mxu0 0.0
  %76 = vmatprep.subr.mxu0 0.0
  %77 = vmatpush1.msra.mxu0 0.0
  %78 = vmatprep.subr.mxu0 0.0
  %79 = vmatpush1.msra.mxu0 0.0
  %80 = vmatprep.subr.mxu0 0.0
  %81 = vmatpush1.msra.mxu0 0.0
  %82 = vmatprep.subr.mxu0 0.0
  %83 = vmatpush1.msra.mxu0 0.0
  %84 = vmatprep.subr.mxu0 0.0
  %85 = vmatpush1.msra.mxu0 0.0
  %86 = vmatprep.subr.mxu0 0.0
  %87 = vmatpush1.msra.mxu0 0.0
  %88 = vmatprep.subr.mxu0 0.0
  %89 = vmatpush1.msra.mxu0 0.0
  %90 = vmatprep.subr.mxu0 0.0
  %91 = vmatpush1.msra.mxu0 0.0
  %92 = vmatprep.subr.mxu0 0.0
  %93 = vmatpush1.msra.mxu0 0.0
  %94 = vmatprep.subr.mxu0 0.0
  %95 = vmatpush1.msra.mxu0 0.0
  %96 = vmatprep.subr.mxu0 0.0
  %97 = vmatpush1.msra.mxu0 0.0
  %98 = vmatprep.subr.mxu0 0.0
  %99 = vmatpush1.msra.mxu0 0.0
  %100 = vmatprep.subr.mxu0 0.0
  %101 = vmatpush1.msra.mxu0 0.0
  %102 = vmatprep.subr.mxu0 0.0
  %103 = vmatpush1.msra.mxu0 0.0
  %104 = vmatprep.subr.mxu0 0.0
  %105 = vmatpush1.msra.mxu0 0.0
  %106 = vmatprep.subr.mxu0 0.0
  %107 = vmatpush1.msra.mxu0 0.0
  %108 = vmatprep.subr.mxu0 0.0
  %109 = vmatpush1.msra.mxu0 0.0
  %110 = vmatprep.subr.mxu0 0.0
  %111 = vmatpush1.msra.mxu0 0.0
  %112 = vmatprep.subr.mxu0 0.0
  %113 = vmatpush1.msra.mxu0 0.0
  %114 = vmatprep.subr.mxu0 0.0
  %115 = vmatpush1.msra.mxu0 0.0
  %116 = vmatprep.subr.mxu0 0.0
  %117 = vmatpush1.msra.mxu0 0.0
  %118 = vmatprep.subr.mxu0 0.0
  %119 = vmatpush1.msra.mxu0 0.0
  %120 = vmatprep.subr.mxu0 0.0
  %121 = vmatpush1.msra.mxu0 0.0
  %122 = vmatprep.mubr.f32.mxu0 0.0
  %123 = vmatmul.mubr.f32.gmra.mrb[0].mxu0 %v31
  %v124 = vpop.f32.mrb[0].mxu0
  %v125 = vadd.f32 %v28, %v124
  %v126 = vpop.f32.mrb[0].mxu0
  %127 = vmatprep.mubr.f32.mxu0 0.0
  %128 = vmatmul.mubr.f32.gmra.mrb[0].mxu0 %v34
  %v129 = vpop.f32.mrb[0].mxu0
  %v130 = vadd.f32 %v28, %v129
  %v131 = vpop.f32.mrb[0].mxu0
  %132 = vmatprep.mubr.f32.mxu0 0.0
  %133 = vmatmul.mubr.f32.gmra.mrb[0].mxu0 %v37
  %v134 = vpop.f32.mrb[0].mxu0
  %v135 = vadd.f32 %v28, %v134
  %v136 = vpop.f32.mrb[0].mxu0
  %137 = vmatprep.mubr.f32.mxu0 0.0
  %138 = vmatmul.mubr.f32.gmra.mrb[0].mxu0 %v40
  %v139 = vpop.f32.mrb[0].mxu0
  %v140 = vadd.f32 %v28, %v139
  %v141 = vpop.f32.mrb[0].mxu0
  %142 = vmatprep.mubr.f32.mxu0 0.0
  %143 = vmatmul.mubr.f32.gmra.mrb[0].mxu0 %v43
  %v144 = vpop.f32.mrb[0].mxu0
  %v145 = vadd.f32 %v28, %v144
  %v146 = vpop.f32.mrb[0].mxu0
  %147 = vmatprep.mubr.f32.mxu0 0.0
  %148 = vmatmul.mubr.f32.gmra.mrb[0].mxu0 %v46
  %v149 = vpop.f32.mrb[0].mxu0
  %v150 = vadd.f32 %v28, %v149
  %v151 = vpop.f32.mrb[0].mxu0
  %152 = vmatprep.mubr.f32.mxu0 0.0
  %153 = vmatmul.mubr.f32.gmra.mrb[0].mxu0 %v49
  %v154 = vpop.f32.mrb[0].mxu0
  %v155 = vadd.f32 %v28, %v154
  %v156 = vpop.f32.mrb[0].mxu0
  %157 = vmatprep.mubr.f32.mxu0 0.0
  %158 = vmatmul.mubr.f32.gmra.mrb[0].mxu0 %v52
  %v159 = vpop.f32.mrb[0].mxu0
  %v160 = vadd.f32 %v28, %v159
  %v161 = vpop.f32.mrb[0].mxu0
  %162 = vdwg.mxu0
  %v163 = vlaneseq
  %v164 = vshrl.u32 %v163, 7
  %v165 = vsub.s32 1, %v164
  %v166 = vrot.slane %v16, %v165
  %v167 = vlaneseq
  %v168 = vshrl.u32 %v167, 7
  %v169 = vsub.s32 4, %v168
  %v170 = vrot.slane %v16, %v169
  %v171 = vlaneseq
  %v172 = vshrl.u32 %v171, 7
  %v173 = vsub.s32 5, %v172
  %v174 = vrot.slane %v16, %v173
  %v175 = vlaneseq
  %v176 = vshrl.u32 %v175, 7
  %v177 = vsub.s32 2, %v176
  %v178 = vrot.slane %v16, %v177
  %vm179 = vcmask 64512
  %v181 = vsel %vm179, 0.0, 0
  %183 = vmatprep.subr.mxu0 0.0
  %184 = vmatpush1.msra.mxu0 %v15
  %185 = vmatprep.subr.mxu0 0.0
  %186 = vmatpush1.msra.mxu0 0.0
  %187 = vmatprep.subr.mxu0 0.0
  %188 = vmatpush1.msra.mxu0 0.0
  %189 = vmatprep.subr.mxu0 0.0
  %190 = vmatpush1.msra.mxu0 0.0
  %191 = vmatprep.subr.mxu0 0.0
  %192 = vmatpush1.msra.mxu0 0.0
  %193 = vmatprep.subr.mxu0 0.0
  %194 = vmatpush1.msra.mxu0 0.0
  %195 = vmatprep.subr.mxu0 0.0
  %196 = vmatpush1.msra.mxu0 0.0
  %197 = vmatprep.subr.mxu0 0.0
  %198 = vmatpush1.msra.mxu0 0.0
  %199 = vmatprep.subr.mxu0 0.0
  %200 = vmatpush1.msra.mxu0 0.0
  %201 = vmatprep.subr.mxu0 0.0
  %202 = vmatpush1.msra.mxu0 0.0
  %203 = vmatprep.subr.mxu0 0.0
  %204 = vmatpush1.msra.mxu0 0.0
  %205 = vmatprep.subr.mxu0 0.0
  %206 = vmatpush1.msra.mxu0 0.0
  %207 = vmatprep.subr.mxu0 0.0
  %208 = vmatpush1.msra.mxu0 0.0
  %209 = vmatprep.subr.mxu0 0.0
  %210 = vmatpush1.msra.mxu0 0.0
  %211 = vmatprep.subr.mxu0 0.0
  %212 = vmatpush1.msra.mxu0 0.0
  %213 = vmatprep.subr.mxu0 0.0
  %214 = vmatpush1.msra.mxu0 0.0
  %215 = vmatprep.subr.mxu0 0.0
  %216 = vmatpush1.msra.mxu0 0.0
  %217 = vmatprep.subr.mxu0 0.0
  %218 = vmatpush1.msra.mxu0 0.0
  %219 = vmatprep.subr.mxu0 0.0
  %220 = vmatpush1.msra.mxu0 0.0
  %221 = vmatprep.subr.mxu0 0.0
  %222 = vmatpush1.msra.mxu0 0.0
  %223 = vmatprep.subr.mxu0 0.0
  %224 = vmatpush1.msra.mxu0 0.0
  %225 = vmatprep.subr.mxu0 0.0
  %226 = vmatpush1.msra.mxu0 0.0
  %227 = vmatprep.subr.mxu0 0.0
  %228 = vmatpush1.msra.mxu0 0.0
  %229 = vmatprep.subr.mxu0 0.0
  %230 = vmatpush1.msra.mxu0 0.0
  %231 = vmatprep.subr.mxu0 0.0
  %232 = vmatpush1.msra.mxu0 0.0
  %233 = vmatprep.subr.mxu0 0.0
  %234 = vmatpush1.msra.mxu0 0.0
  %235 = vmatprep.subr.mxu0 0.0
  %236 = vmatpush1.msra.mxu0 0.0
  %237 = vmatprep.subr.mxu0 0.0
  %238 = vmatpush1.msra.mxu0 0.0
  %239 = vmatprep.subr.mxu0 0.0
  %240 = vmatpush1.msra.mxu0 0.0
  %241 = vmatprep.subr.mxu0 0.0
  %242 = vmatpush1.msra.mxu0 0.0
  %243 = vmatprep.subr.mxu0 0.0
  %244 = vmatpush1.msra.mxu0 0.0
  %245 = vmatprep.subr.mxu0 0.0
  %246 = vmatpush1.msra.mxu0 0.0
  %247 = vmatprep.mubr.f32.mxu0 0.0
  %248 = vmatmul.mubr.f32.gmra.mrb[0].mxu0 %v181
  %v249 = vpop.f32.mrb[0].mxu0
  %v250 = vadd.f32 %v166, %v249
  %v251 = vpop.f32.mrb[0].mxu0
  %252 = vdwg.mxu0
  %253 = vmatprep.subr.mxu0 0.0
  %254 = vmatpush1.msra.mxu0 %v13
  %255 = vmatprep.subr.mxu0 0.0
  %256 = vmatpush1.msra.mxu0 0.0
  %257 = vmatprep.subr.mxu0 0.0
  %258 = vmatpush1.msra.mxu0 0.0
  %259 = vmatprep.subr.mxu0 0.0
  %260 = vmatpush1.msra.mxu0 0.0
  %261 = vmatprep.subr.mxu0 0.0
  %262 = vmatpush1.msra.mxu0 0.0
  %263 = vmatprep.subr.mxu0 0.0
  %264 = vmatpush1.msra.mxu0 0.0
  %265 = vmatprep.subr.mxu0 0.0
  %266 = vmatpush1.msra.mxu0 0.0
  %267 = vmatprep.subr.mxu0 0.0
  %268 = vmatpush1.msra.mxu0 0.0
  %269 = vmatprep.subr.mxu0 0.0
  %270 = vmatpush1.msra.mxu0 0.0
  %271 = vmatprep.subr.mxu0 0.0
  %272 = vmatpush1.msra.mxu0 0.0
  %273 = vmatprep.subr.mxu0 0.0
  %274 = vmatpush1.msra.mxu0 0.0
  %275 = vmatprep.subr.mxu0 0.0
  %276 = vmatpush1.msra.mxu0 0.0
  %277 = vmatprep.subr.mxu0 0.0
  %278 = vmatpush1.msra.mxu0 0.0
  %279 = vmatprep.subr.mxu0 0.0
  %280 = vmatpush1.msra.mxu0 0.0
  %281 = vmatprep.subr.mxu0 0.0
  %282 = vmatpush1.msra.mxu0 0.0
  %283 = vmatprep.subr.mxu0 0.0
  %284 = vmatpush1.msra.mxu0 0.0
  %285 = vmatprep.subr.mxu0 0.0
  %286 = vmatpush1.msra.mxu0 0.0
  %287 = vmatprep.subr.mxu0 0.0
  %288 = vmatpush1.msra.mxu0 0.0
  %289 = vmatprep.subr.mxu0 0.0
  %290 = vmatpush1.msra.mxu0 0.0
  %291 = vmatprep.subr.mxu0 0.0
  %292 = vmatpush1.msra.mxu0 0.0
  %293 = vmatprep.subr.mxu0 0.0
  %294 = vmatpush1.msra.mxu0 0.0
  %295 = vmatprep.subr.mxu0 0.0
  %296 = vmatpush1.msra.mxu0 0.0
  %297 = vmatprep.subr.mxu0 0.0
  %298 = vmatpush1.msra.mxu0 0.0
  %299 = vmatprep.subr.mxu0 0.0
  %300 = vmatpush1.msra.mxu0 0.0
  %301 = vmatprep.subr.mxu0 0.0
  %302 = vmatpush1.msra.mxu0 0.0
  %303 = vmatprep.subr.mxu0 0.0
  %304 = vmatpush1.msra.mxu0 0.0
  %305 = vmatprep.subr.mxu0 0.0
  %306 = vmatpush1.msra.mxu0 0.0
  %307 = vmatprep.subr.mxu0 0.0
  %308 = vmatpush1.msra.mxu0 0.0
  %309 = vmatprep.subr.mxu0 0.0
  %310 = vmatpush1.msra.mxu0 0.0
  %311 = vmatprep.subr.mxu0 0.0
  %312 = vmatpush1.msra.mxu0 0.0
  %313 = vmatprep.subr.mxu0 0.0
  %314 = vmatpush1.msra.mxu0 0.0
  %315 = vmatprep.subr.mxu0 0.0
  %316 = vmatpush1.msra.mxu0 0.0
  %317 = vmatprep.mubr.f32.mxu0 0.0
  %318 = vmatmul.mubr.f32.gmra.mrb[0].mxu0 %v181
  %v319 = vpop.f32.mrb[0].mxu0
  %v320 = vadd.f32 0.0, %v319
  %v321 = vpop.f32.mrb[0].mxu0
  %322 = vdwg.mxu0
  %v323 = vadd.f32 %v125, %v320
  %v324 = vxor.u32 %v323, 2147483648
  %v325 = vmul.f32 %v324, 1.442695
  %v326 = vpow.pop %v325
  %v327 = vadd.f32 %v326, 1.0
  %v328 = vrcp.pop %v327
  %v329 = vmul.f32 1.0, %v328
  %v330 = vmul.f32 %v329, %v170
  %v331 = vadd.f32 %v330, %v174
  %v332 = vmul.f32 %v331, 0.0
  %334 = vrot.lane.b32.xlu0 %v331, 112
  %v335 = vpop.permute.xlu0 %334
  %v337 = vmul.f32 %v331, %v335
  %339 = vrot.lane.b32.xlu0 %v337, 8
  %v340 = vpop.permute.xlu0 %339
  %v342 = vadd.f32 %v332, %v340
  %v343 = vtanh.pop %v342
  %345 = vrot.lane.b32.xlu0 %v343, 16
  %v346 = vpop.permute.xlu0 %345
  %v348 = vmul.f32 %v331, %v346
  %350 = vrot.lane.b32.xlu0 %v348, 104
  %v351 = vpop.permute.xlu0 %350
  %v352 = vsel %vm179, %v351, 0
  %354 = vmatprep.subr.mxu0 0.0
  %355 = vmatpush1.msra.mxu0 %v14
  %356 = vmatprep.subr.mxu0 0.0
  %357 = vmatpush1.msra.mxu0 0.0
  %358 = vmatprep.subr.mxu0 0.0
  %359 = vmatpush1.msra.mxu0 0.0
  %360 = vmatprep.subr.mxu0 0.0
  %361 = vmatpush1.msra.mxu0 0.0
  %362 = vmatprep.subr.mxu0 0.0
  %363 = vmatpush1.msra.mxu0 0.0
  %364 = vmatprep.subr.mxu0 0.0
  %365 = vmatpush1.msra.mxu0 0.0
  %366 = vmatprep.subr.mxu0 0.0
  %367 = vmatpush1.msra.mxu0 0.0
  %368 = vmatprep.subr.mxu0 0.0
  %369 = vmatpush1.msra.mxu0 0.0
  %370 = vmatprep.subr.mxu0 0.0
  %371 = vmatpush1.msra.mxu0 0.0
  %372 = vmatprep.subr.mxu0 0.0
  %373 = vmatpush1.msra.mxu0 0.0
  %374 = vmatprep.subr.mxu0 0.0
  %375 = vmatpush1.msra.mxu0 0.0
  %376 = vmatprep.subr.mxu0 0.0
  %377 = vmatpush1.msra.mxu0 0.0
  %378 = vmatprep.subr.mxu0 0.0
  %379 = vmatpush1.msra.mxu0 0.0
  %380 = vmatprep.subr.mxu0 0.0
  %381 = vmatpush1.msra.mxu0 0.0
  %382 = vmatprep.subr.mxu0 0.0
  %383 = vmatpush1.msra.mxu0 0.0
  %384 = vmatprep.subr.mxu0 0.0
  %385 = vmatpush1.msra.mxu0 0.0
  %386 = vmatprep.subr.mxu0 0.0
  %387 = vmatpush1.msra.mxu0 0.0
  %388 = vmatprep.subr.mxu0 0.0
  %389 = vmatpush1.msra.mxu0 0.0
  %390 = vmatprep.subr.mxu0 0.0
  %391 = vmatpush1.msra.mxu0 0.0
  %392 = vmatprep.subr.mxu0 0.0
  %393 = vmatpush1.msra.mxu0 0.0
  %394 = vmatprep.subr.mxu0 0.0
  %395 = vmatpush1.msra.mxu0 0.0
  %396 = vmatprep.subr.mxu0 0.0
  %397 = vmatpush1.msra.mxu0 0.0
  %398 = vmatprep.subr.mxu0 0.0
  %399 = vmatpush1.msra.mxu0 0.0
  %400 = vmatprep.subr.mxu0 0.0
  %401 = vmatpush1.msra.mxu0 0.0
  %402 = vmatprep.subr.mxu0 0.0
  %403 = vmatpush1.msra.mxu0 0.0
  %404 = vmatprep.subr.mxu0 0.0
  %405 = vmatpush1.msra.mxu0 0.0
  %406 = vmatprep.subr.mxu0 0.0
  %407 = vmatpush1.msra.mxu0 0.0
  %408 = vmatprep.subr.mxu0 0.0
  %409 = vmatpush1.msra.mxu0 0.0
  %410 = vmatprep.subr.mxu0 0.0
  %411 = vmatpush1.msra.mxu0 0.0
  %412 = vmatprep.subr.mxu0 0.0
  %413 = vmatpush1.msra.mxu0 0.0
  %414 = vmatprep.subr.mxu0 0.0
  %415 = vmatpush1.msra.mxu0 0.0
  %416 = vmatprep.subr.mxu0 0.0
  %417 = vmatpush1.msra.mxu0 0.0
  %418 = vmatprep.mubr.f32.mxu0 0.0
  %419 = vmatmul.mubr.f32.gmra.mrb[0].mxu0 %v352
  %v420 = vpop.f32.mrb[0].mxu0
  %v421 = vadd.f32 0.0, %v420
  %v422 = vpop.f32.mrb[0].mxu0
  %423 = vdwg.mxu0
  %v424 = vadd.f32 %v250, %v421
  %v425 = vxor.u32 %v424, 2147483648
  %v426 = vmul.f32 %v425, 1.442695
  %v427 = vpow.pop %v426
  %v428 = vadd.f32 %v427, 1.0
  %v429 = vrcp.pop %v428
  %v430 = vmul.f32 1.0, %v429
  %v431 = vmul.f32 %v430, %v170
  %v432 = vadd.f32 %v431, %v174
  %v433 = vmul.f32 %v432, 0.0
  %435 = vrot.lane.b32.xlu0 %v432, 112
  %v436 = vpop.permute.xlu0 %435
  %v438 = vmul.f32 %v432, %v436
  %440 = vrot.lane.b32.xlu0 %v438, 8
  %v441 = vpop.permute.xlu0 %440
  %v443 = vadd.f32 %v433, %v441
  %v444 = vtanh.pop %v443
  %446 = vrot.lane.b32.xlu0 %v444, 16
  %v447 = vpop.permute.xlu0 %446
  %v449 = vmul.f32 %v432, %v447
  %451 = vrot.lane.b32.xlu0 %v449, 104
  %v452 = vpop.permute.xlu0 %451
  %v453 = vsel %vm179, %v452, 0
  %455 = vmatprep.subr.mxu0 0.0
  %456 = vmatpush1.msra.mxu0 %v15
  %457 = vmatprep.subr.mxu0 0.0
  %458 = vmatpush1.msra.mxu0 0.0
  %459 = vmatprep.subr.mxu0 0.0
  %460 = vmatpush1.msra.mxu0 0.0
  %461 = vmatprep.subr.mxu0 0.0
  %462 = vmatpush1.msra.mxu0 0.0
  %463 = vmatprep.subr.mxu0 0.0
  %464 = vmatpush1.msra.mxu0 0.0
  %465 = vmatprep.subr.mxu0 0.0
  %466 = vmatpush1.msra.mxu0 0.0
  %467 = vmatprep.subr.mxu0 0.0
  %468 = vmatpush1.msra.mxu0 0.0
  %469 = vmatprep.subr.mxu0 0.0
  %470 = vmatpush1.msra.mxu0 0.0
  %471 = vmatprep.subr.mxu0 0.0
  %472 = vmatpush1.msra.mxu0 0.0
  %473 = vmatprep.subr.mxu0 0.0
  %474 = vmatpush1.msra.mxu0 0.0
  %475 = vmatprep.subr.mxu0 0.0
  %476 = vmatpush1.msra.mxu0 0.0
  %477 = vmatprep.subr.mxu0 0.0
  %478 = vmatpush1.msra.mxu0 0.0
  %479 = vmatprep.subr.mxu0 0.0
  %480 = vmatpush1.msra.mxu0 0.0
  %481 = vmatprep.subr.mxu0 0.0
  %482 = vmatpush1.msra.mxu0 0.0
  %483 = vmatprep.subr.mxu0 0.0
  %484 = vmatpush1.msra.mxu0 0.0
  %485 = vmatprep.subr.mxu0 0.0
  %486 = vmatpush1.msra.mxu0 0.0
  %487 = vmatprep.subr.mxu0 0.0
  %488 = vmatpush1.msra.mxu0 0.0
  %489 = vmatprep.subr.mxu0 0.0
  %490 = vmatpush1.msra.mxu0 0.0
  %491 = vmatprep.subr.mxu0 0.0
  %492 = vmatpush1.msra.mxu0 0.0
  %493 = vmatprep.subr.mxu0 0.0
  %494 = vmatpush1.msra.mxu0 0.0
  %495 = vmatprep.subr.mxu0 0.0
  %496 = vmatpush1.msra.mxu0 0.0
  %497 = vmatprep.subr.mxu0 0.0
  %498 = vmatpush1.msra.mxu0 0.0
  %499 = vmatprep.subr.mxu0 0.0
  %500 = vmatpush1.msra.mxu0 0.0
  %501 = vmatprep.subr.mxu0 0.0
  %502 = vmatpush1.msra.mxu0 0.0
  %503 = vmatprep.subr.mxu0 0.0
  %504 = vmatpush1.msra.mxu0 0.0
  %505 = vmatprep.subr.mxu0 0.0
  %506 = vmatpush1.msra.mxu0 0.0
  %507 = vmatprep.subr.mxu0 0.0
  %508 = vmatpush1.msra.mxu0 0.0
  %509 = vmatprep.subr.mxu0 0.0
  %510 = vmatpush1.msra.mxu0 0.0
  %511 = vmatprep.subr.mxu0 0.0
  %512 = vmatpush1.msra.mxu0 0.0
  %513 = vmatprep.subr.mxu0 0.0
  %514 = vmatpush1.msra.mxu0 0.0
  %515 = vmatprep.subr.mxu0 0.0
  %516 = vmatpush1.msra.mxu0 0.0
  %517 = vmatprep.subr.mxu0 0.0
  %518 = vmatpush1.msra.mxu0 0.0
  %519 = vmatprep.mubr.f32.mxu0 0.0
  %520 = vmatmul.mubr.f32.gmra.mrb[0].mxu0 %v453
  %v521 = vpop.f32.mrb[0].mxu0
  %v522 = vadd.f32 %v166, %v521
  %v523 = vpop.f32.mrb[0].mxu0
  %524 = vdwg.mxu0
  %525 = vmatprep.subr.mxu0 0.0
  %526 = vmatpush1.msra.mxu0 %v13
  %527 = vmatprep.subr.mxu0 0.0
  %528 = vmatpush1.msra.mxu0 0.0
  %529 = vmatprep.subr.mxu0 0.0
  %530 = vmatpush1.msra.mxu0 0.0
  %531 = vmatprep.subr.mxu0 0.0
  %532 = vmatpush1.msra.mxu0 0.0
  %533 = vmatprep.subr.mxu0 0.0
  %534 = vmatpush1.msra.mxu0 0.0
  %535 = vmatprep.subr.mxu0 0.0
  %536 = vmatpush1.msra.mxu0 0.0
  %537 = vmatprep.subr.mxu0 0.0
  %538 = vmatpush1.msra.mxu0 0.0
  %539 = vmatprep.subr.mxu0 0.0
  %540 = vmatpush1.msra.mxu0 0.0
  %541 = vmatprep.subr.mxu0 0.0
  %542 = vmatpush1.msra.mxu0 0.0
  %543 = vmatprep.subr.mxu0 0.0
  %544 = vmatpush1.msra.mxu0 0.0
  %545 = vmatprep.subr.mxu0 0.0
  %546 = vmatpush1.msra.mxu0 0.0
  %547 = vmatprep.subr.mxu0 0.0
  %548 = vmatpush1.msra.mxu0 0.0
  %549 = vmatprep.subr.mxu0 0.0
  %550 = vmatpush1.msra.mxu0 0.0
  %551 = vmatprep.subr.mxu0 0.0
  %552 = vmatpush1.msra.mxu0 0.0
  %553 = vmatprep.subr.mxu0 0.0
  %554 = vmatpush1.msra.mxu0 0.0
  %555 = vmatprep.subr.mxu0 0.0
  %556 = vmatpush1.msra.mxu0 0.0
  %557 = vmatprep.subr.mxu0 0.0
  %558 = vmatpush1.msra.mxu0 0.0
  %559 = vmatprep.subr.mxu0 0.0
  %560 = vmatpush1.msra.mxu0 0.0
  %561 = vmatprep.subr.mxu0 0.0
  %562 = vmatpush1.msra.mxu0 0.0
  %563 = vmatprep.subr.mxu0 0.0
  %564 = vmatpush1.msra.mxu0 0.0
  %565 = vmatprep.subr.mxu0 0.0
  %566 = vmatpush1.msra.mxu0 0.0
  %567 = vmatprep.subr.mxu0 0.0
  %568 = vmatpush1.msra.mxu0 0.0
  %569 = vmatprep.subr.mxu0 0.0
  %570 = vmatpush1.msra.mxu0 0.0
  %571 = vmatprep.subr.mxu0 0.0
  %572 = vmatpush1.msra.mxu0 0.0
  %573 = vmatprep.subr.mxu0 0.0
  %574 = vmatpush1.msra.mxu0 0.0
  %575 = vmatprep.subr.mxu0 0.0
  %576 = vmatpush1.msra.mxu0 0.0
  %577 = vmatprep.subr.mxu0 0.0
  %578 = vmatpush1.msra.mxu0 0.0
  %579 = vmatprep.subr.mxu0 0.0
  %580 = vmatpush1.msra.mxu0 0.0
  %581 = vmatprep.subr.mxu0 0.0
  %582 = vmatpush1.msra.mxu0 0.0
  %583 = vmatprep.subr.mxu0 0.0
  %584 = vmatpush1.msra.mxu0 0.0
  %585 = vmatprep.subr.mxu0 0.0
  %586 = vmatpush1.msra.mxu0 0.0
  %587 = vmatprep.subr.mxu0 0.0
  %588 = vmatpush1.msra.mxu0 0.0
  %589 = vmatprep.mubr.f32.mxu0 0.0
  %590 = vmatmul.mubr.f32.gmra.mrb[0].mxu0 %v352
  %v591 = vpop.f32.mrb[0].mxu0
  %v592 = vadd.f32 0.0, %v591
  %v593 = vpop.f32.mrb[0].mxu0
  %594 = vdwg.mxu0
  %v595 = vadd.f32 %v130, %v592
  %v596 = vxor.u32 %v595, 2147483648
  %v597 = vmul.f32 %v596, 1.442695
  %v598 = vpow.pop %v597
  %v599 = vadd.f32 %v598, 1.0
  %v600 = vrcp.pop %v599
  %v601 = vmul.f32 1.0, %v600
  %v602 = vmul.f32 %v601, %v170
  %v603 = vadd.f32 %v602, %v174
  %v604 = vmul.f32 %v603, %v342
  %606 = vrot.lane.b32.xlu0 %v603, 112
  %v607 = vpop.permute.xlu0 %606
  %v609 = vmul.f32 %v603, %v607
  %611 = vrot.lane.b32.xlu0 %v609, 8
  %v612 = vpop.permute.xlu0 %611
  %v614 = vadd.f32 %v604, %v612
  %v615 = vtanh.pop %v614
  %617 = vrot.lane.b32.xlu0 %v615, 16
  %v618 = vpop.permute.xlu0 %617
  %v620 = vmul.f32 %v603, %v618
  %622 = vrot.lane.b32.xlu0 %v620, 104
  %v623 = vpop.permute.xlu0 %622
  %v624 = vsel %vm179, %v623, 0
  %626 = vmatprep.subr.mxu0 0.0
  %627 = vmatpush1.msra.mxu0 %v14
  %628 = vmatprep.subr.mxu0 0.0
  %629 = vmatpush1.msra.mxu0 0.0
  %630 = vmatprep.subr.mxu0 0.0
  %631 = vmatpush1.msra.mxu0 0.0
  %632 = vmatprep.subr.mxu0 0.0
  %633 = vmatpush1.msra.mxu0 0.0
  %634 = vmatprep.subr.mxu0 0.0
  %635 = vmatpush1.msra.mxu0 0.0
  %636 = vmatprep.subr.mxu0 0.0
  %637 = vmatpush1.msra.mxu0 0.0
  %638 = vmatprep.subr.mxu0 0.0
  %639 = vmatpush1.msra.mxu0 0.0
  %640 = vmatprep.subr.mxu0 0.0
  %641 = vmatpush1.msra.mxu0 0.0
  %642 = vmatprep.subr.mxu0 0.0
  %643 = vmatpush1.msra.mxu0 0.0
  %644 = vmatprep.subr.mxu0 0.0
  %645 = vmatpush1.msra.mxu0 0.0
  %646 = vmatprep.subr.mxu0 0.0
  %647 = vmatpush1.msra.mxu0 0.0
  %648 = vmatprep.subr.mxu0 0.0
  %649 = vmatpush1.msra.mxu0 0.0
  %650 = vmatprep.subr.mxu0 0.0
  %651 = vmatpush1.msra.mxu0 0.0
  %652 = vmatprep.subr.mxu0 0.0
  %653 = vmatpush1.msra.mxu0 0.0
  %654 = vmatprep.subr.mxu0 0.0
  %655 = vmatpush1.msra.mxu0 0.0
  %656 = vmatprep.subr.mxu0 0.0
  %657 = vmatpush1.msra.mxu0 0.0
  %658 = vmatprep.subr.mxu0 0.0
  %659 = vmatpush1.msra.mxu0 0.0
  %660 = vmatprep.subr.mxu0 0.0
  %661 = vmatpush1.msra.mxu0 0.0
  %662 = vmatprep.subr.mxu0 0.0
  %663 = vmatpush1.msra.mxu0 0.0
  %664 = vmatprep.subr.mxu0 0.0
  %665 = vmatpush1.msra.mxu0 0.0
  %666 = vmatprep.subr.mxu0 0.0
  %667 = vmatpush1.msra.mxu0 0.0
  %668 = vmatprep.subr.mxu0 0.0
  %669 = vmatpush1.msra.mxu0 0.0
  %670 = vmatprep.subr.mxu0 0.0
  %671 = vmatpush1.msra.mxu0 0.0
  %672 = vmatprep.subr.mxu0 0.0
  %673 = vmatpush1.msra.mxu0 0.0
  %674 = vmatprep.subr.mxu0 0.0
  %675 = vmatpush1.msra.mxu0 0.0
  %676 = vmatprep.subr.mxu0 0.0
  %677 = vmatpush1.msra.mxu0 0.0
  %678 = vmatprep.subr.mxu0 0.0
  %679 = vmatpush1.msra.mxu0 0.0
  %680 = vmatprep.subr.mxu0 0.0
  %681 = vmatpush1.msra.mxu0 0.0
  %682 = vmatprep.subr.mxu0 0.0
  %683 = vmatpush1.msra.mxu0 0.0
  %684 = vmatprep.subr.mxu0 0.0
  %685 = vmatpush1.msra.mxu0 0.0
  %686 = vmatprep.subr.mxu0 0.0
  %687 = vmatpush1.msra.mxu0 0.0
  %688 = vmatprep.subr.mxu0 0.0
  %689 = vmatpush1.msra.mxu0 0.0
  %690 = vmatprep.mubr.f32.mxu0 0.0
  %691 = vmatmul.mubr.f32.gmra.mrb[0].mxu0 %v624
  %v692 = vpop.f32.mrb[0].mxu0
  %v693 = vadd.f32 0.0, %v692
  %v694 = vpop.f32.mrb[0].mxu0
  %695 = vdwg.mxu0
  %v696 = vadd.f32 %v522, %v693
  %v697 = vxor.u32 %v696, 2147483648
  %v698 = vmul.f32 %v697, 1.442695
  %v699 = vpow.pop %v698
  %v700 = vadd.f32 %v699, 1.0
  %v701 = vrcp.pop %v700
  %v702 = vmul.f32 1.0, %v701
  %v703 = vmul.f32 %v702, %v170
  %v704 = vadd.f32 %v703, %v174
  %v705 = vmul.f32 %v704, %v443
  %707 = vrot.lane.b32.xlu0 %v704, 112
  %v708 = vpop.permute.xlu0 %707
  %v710 = vmul.f32 %v704, %v708
  %712 = vrot.lane.b32.xlu0 %v710, 8
  %v713 = vpop.permute.xlu0 %712
  %v715 = vadd.f32 %v705, %v713
  %v716 = vtanh.pop %v715
  %718 = vrot.lane.b32.xlu0 %v716, 16
  %v719 = vpop.permute.xlu0 %718
  %v721 = vmul.f32 %v704, %v719
  %723 = vrot.lane.b32.xlu0 %v721, 104
  %v724 = vpop.permute.xlu0 %723
  %v725 = vsel %vm179, %v724, 0
  %727 = vmatprep.subr.mxu0 0.0
  %728 = vmatpush1.msra.mxu0 %v15
  %729 = vmatprep.subr.mxu0 0.0
  %730 = vmatpush1.msra.mxu0 0.0
  %731 = vmatprep.subr.mxu0 0.0
  %732 = vmatpush1.msra.mxu0 0.0
  %733 = vmatprep.subr.mxu0 0.0
  %734 = vmatpush1.msra.mxu0 0.0
  %735 = vmatprep.subr.mxu0 0.0
  %736 = vmatpush1.msra.mxu0 0.0
  %737 = vmatprep.subr.mxu0 0.0
  %738 = vmatpush1.msra.mxu0 0.0
  %739 = vmatprep.subr.mxu0 0.0
  %740 = vmatpush1.msra.mxu0 0.0
  %741 = vmatprep.subr.mxu0 0.0
  %742 = vmatpush1.msra.mxu0 0.0
  %743 = vmatprep.subr.mxu0 0.0
  %744 = vmatpush1.msra.mxu0 0.0
  %745 = vmatprep.subr.mxu0 0.0
  %746 = vmatpush1.msra.mxu0 0.0
  %747 = vmatprep.subr.mxu0 0.0
  %748 = vmatpush1.msra.mxu0 0.0
  %749 = vmatprep.subr.mxu0 0.0
  %750 = vmatpush1.msra.mxu0 0.0
  %751 = vmatprep.subr.mxu0 0.0
  %752 = vmatpush1.msra.mxu0 0.0
  %753 = vmatprep.subr.mxu0 0.0
  %754 = vmatpush1.msra.mxu0 0.0
  %755 = vmatprep.subr.mxu0 0.0
  %756 = vmatpush1.msra.mxu0 0.0
  %757 = vmatprep.subr.mxu0 0.0
  %758 = vmatpush1.msra.mxu0 0.0
  %759 = vmatprep.subr.mxu0 0.0
  %760 = vmatpush1.msra.mxu0 0.0
  %761 = vmatprep.subr.mxu0 0.0
  %762 = vmatpush1.msra.mxu0 0.0
  %763 = vmatprep.subr.mxu0 0.0
  %764 = vmatpush1.msra.mxu0 0.0
  %765 = vmatprep.subr.mxu0 0.0
  %766 = vmatpush1.msra.mxu0 0.0
  %767 = vmatprep.subr.mxu0 0.0
  %768 = vmatpush1.msra.mxu0 0.0
  %769 = vmatprep.subr.mxu0 0.0
  %770 = vmatpush1.msra.mxu0 0.0
  %771 = vmatprep.subr.mxu0 0.0
  %772 = vmatpush1.msra.mxu0 0.0
  %773 = vmatprep.subr.mxu0 0.0
  %774 = vmatpush1.msra.mxu0 0.0
  %775 = vmatprep.subr.mxu0 0.0
  %776 = vmatpush1.msra.mxu0 0.0
  %777 = vmatprep.subr.mxu0 0.0
  %778 = vmatpush1.msra.mxu0 0.0
  %779 = vmatprep.subr.mxu0 0.0
  %780 = vmatpush1.msra.mxu0 0.0
  %781 = vmatprep.subr.mxu0 0.0
  %782 = vmatpush1.msra.mxu0 0.0
  %783 = vmatprep.subr.mxu0 0.0
  %784 = vmatpush1.msra.mxu0 0.0
  %785 = vmatprep.subr.mxu0 0.0
  %786 = vmatpush1.msra.mxu0 0.0
  %787 = vmatprep.subr.mxu0 0.0
  %788 = vmatpush1.msra.mxu0 0.0
  %789 = vmatprep.subr.mxu0 0.0
  %790 = vmatpush1.msra.mxu0 0.0
  %791 = vmatprep.mubr.f32.mxu0 0.0
  %792 = vmatmul.mubr.f32.gmra.mrb[0].mxu0 %v725
  %v793 = vpop.f32.mrb[0].mxu0
  %v794 = vadd.f32 %v166, %v793
  %v795 = vpop.f32.mrb[0].mxu0
  %796 = vdwg.mxu0
  %797 = vmatprep.subr.mxu0 0.0
  %798 = vmatpush1.msra.mxu0 %v13
  %799 = vmatprep.subr.mxu0 0.0
  %800 = vmatpush1.msra.mxu0 0.0
  %801 = vmatprep.subr.mxu0 0.0
  %802 = vmatpush1.msra.mxu0 0.0
  %803 = vmatprep.subr.mxu0 0.0
  %804 = vmatpush1.msra.mxu0 0.0
  %805 = vmatprep.subr.mxu0 0.0
  %806 = vmatpush1.msra.mxu0 0.0
  %807 = vmatprep.subr.mxu0 0.0
  %808 = vmatpush1.msra.mxu0 0.0
  %809 = vmatprep.subr.mxu0 0.0
  %810 = vmatpush1.msra.mxu0 0.0
  %811 = vmatprep.subr.mxu0 0.0
  %812 = vmatpush1.msra.mxu0 0.0
  %813 = vmatprep.subr.mxu0 0.0
  %814 = vmatpush1.msra.mxu0 0.0
  %815 = vmatprep.subr.mxu0 0.0
  %816 = vmatpush1.msra.mxu0 0.0
  %817 = vmatprep.subr.mxu0 0.0
  %818 = vmatpush1.msra.mxu0 0.0
  %819 = vmatprep.subr.mxu0 0.0
  %820 = vmatpush1.msra.mxu0 0.0
  %821 = vmatprep.subr.mxu0 0.0
  %822 = vmatpush1.msra.mxu0 0.0
  %823 = vmatprep.subr.mxu0 0.0
  %824 = vmatpush1.msra.mxu0 0.0
  %825 = vmatprep.subr.mxu0 0.0
  %826 = vmatpush1.msra.mxu0 0.0
  %827 = vmatprep.subr.mxu0 0.0
  %828 = vmatpush1.msra.mxu0 0.0
  %829 = vmatprep.subr.mxu0 0.0
  %830 = vmatpush1.msra.mxu0 0.0
  %831 = vmatprep.subr.mxu0 0.0
  %832 = vmatpush1.msra.mxu0 0.0
  %833 = vmatprep.subr.mxu0 0.0
  %834 = vmatpush1.msra.mxu0 0.0
  %835 = vmatprep.subr.mxu0 0.0
  %836 = vmatpush1.msra.mxu0 0.0
  %837 = vmatprep.subr.mxu0 0.0
  %838 = vmatpush1.msra.mxu0 0.0
  %839 = vmatprep.subr.mxu0 0.0
  %840 = vmatpush1.msra.mxu0 0.0
  %841 = vmatprep.subr.mxu0 0.0
  %842 = vmatpush1.msra.mxu0 0.0
  %843 = vmatprep.subr.mxu0 0.0
  %844 = vmatpush1.msra.mxu0 0.0
  %845 = vmatprep.subr.mxu0 0.0
  %846 = vmatpush1.msra.mxu0 0.0
  %847 = vmatprep.subr.mxu0 0.0
  %848 = vmatpush1.msra.mxu0 0.0
  %849 = vmatprep.subr.mxu0 0.0
  %850 = vmatpush1.msra.mxu0 0.0
  %851 = vmatprep.subr.mxu0 0.0
  %852 = vmatpush1.msra.mxu0 0.0
  %853 = vmatprep.subr.mxu0 0.0
  %854 = vmatpush1.msra.mxu0 0.0
  %855 = vmatprep.subr.mxu0 0.0
  %856 = vmatpush1.msra.mxu0 0.0
  %857 = vmatprep.subr.mxu0 0.0
  %858 = vmatpush1.msra.mxu0 0.0
  %859 = vmatprep.subr.mxu0 0.0
  %860 = vmatpush1.msra.mxu0 0.0
  %861 = vmatprep.mubr.f32.mxu0 0.0
  %862 = vmatmul.mubr.f32.gmra.mrb[0].mxu0 %v624
  %v863 = vpop.f32.mrb[0].mxu0
  %v864 = vadd.f32 0.0, %v863
  %v865 = vpop.f32.mrb[0].mxu0
  %866 = vdwg.mxu0
  %v867 = vadd.f32 %v135, %v864
  %v868 = vxor.u32 %v867, 2147483648
  %v869 = vmul.f32 %v868, 1.442695
  %v870 = vpow.pop %v869
  %v871 = vadd.f32 %v870, 1.0
  %v872 = vrcp.pop %v871
  %v873 = vmul.f32 1.0, %v872
  %v874 = vmul.f32 %v873, %v170
  %v875 = vadd.f32 %v874, %v174
  %v876 = vmul.f32 %v875, %v614
  %878 = vrot.lane.b32.xlu0 %v875, 112
  %v879 = vpop.permute.xlu0 %878
  %v881 = vmul.f32 %v875, %v879
  %883 = vrot.lane.b32.xlu0 %v881, 8
  %v884 = vpop.permute.xlu0 %883
  %v886 = vadd.f32 %v876, %v884
  %v887 = vtanh.pop %v886
  %889 = vrot.lane.b32.xlu0 %v887, 16
  %v890 = vpop.permute.xlu0 %889
  %v892 = vmul.f32 %v875, %v890
  %894 = vrot.lane.b32.xlu0 %v892, 104
  %v895 = vpop.permute.xlu0 %894
  %v896 = vsel %vm179, %v895, 0
  %898 = vmatprep.subr.mxu0 0.0
  %899 = vmatpush1.msra.mxu0 %v14
  %900 = vmatprep.subr.mxu0 0.0
  %901 = vmatpush1.msra.mxu0 0.0
  %902 = vmatprep.subr.mxu0 0.0
  %903 = vmatpush1.msra.mxu0 0.0
  %904 = vmatprep.subr.mxu0 0.0
  %905 = vmatpush1.msra.mxu0 0.0
  %906 = vmatprep.subr.mxu0 0.0
  %907 = vmatpush1.msra.mxu0 0.0
  %908 = vmatprep.subr.mxu0 0.0
  %909 = vmatpush1.msra.mxu0 0.0
  %910 = vmatprep.subr.mxu0 0.0
  %911 = vmatpush1.msra.mxu0 0.0
  %912 = vmatprep.subr.mxu0 0.0
  %913 = vmatpush1.msra.mxu0 0.0
  %914 = vmatprep.subr.mxu0 0.0
  %915 = vmatpush1.msra.mxu0 0.0
  %916 = vmatprep.subr.mxu0 0.0
  %917 = vmatpush1.msra.mxu0 0.0
  %918 = vmatprep.subr.mxu0 0.0
  %919 = vmatpush1.msra.mxu0 0.0
  %920 = vmatprep.subr.mxu0 0.0
  %921 = vmatpush1.msra.mxu0 0.0
  %922 = vmatprep.subr.mxu0 0.0
  %923 = vmatpush1.msra.mxu0 0.0
  %924 = vmatprep.subr.mxu0 0.0
  %925 = vmatpush1.msra.mxu0 0.0
  %926 = vmatprep.subr.mxu0 0.0
  %927 = vmatpush1.msra.mxu0 0.0
  %928 = vmatprep.subr.mxu0 0.0
  %929 = vmatpush1.msra.mxu0 0.0
  %930 = vmatprep.subr.mxu0 0.0
  %931 = vmatpush1.msra.mxu0 0.0
  %932 = vmatprep.subr.mxu0 0.0
  %933 = vmatpush1.msra.mxu0 0.0
  %934 = vmatprep.subr.mxu0 0.0
  %935 = vmatpush1.msra.mxu0 0.0
  %936 = vmatprep.subr.mxu0 0.0
  %937 = vmatpush1.msra.mxu0 0.0
  %938 = vmatprep.subr.mxu0 0.0
  %939 = vmatpush1.msra.mxu0 0.0
  %940 = vmatprep.subr.mxu0 0.0
  %941 = vmatpush1.msra.mxu0 0.0
  %942 = vmatprep.subr.mxu0 0.0
  %943 = vmatpush1.msra.mxu0 0.0
  %944 = vmatprep.subr.mxu0 0.0
  %945 = vmatpush1.msra.mxu0 0.0
  %946 = vmatprep.subr.mxu0 0.0
  %947 = vmatpush1.msra.mxu0 0.0
  %948 = vmatprep.subr.mxu0 0.0
  %949 = vmatpush1.msra.mxu0 0.0
  %950 = vmatprep.subr.mxu0 0.0
  %951 = vmatpush1.msra.mxu0 0.0
  %952 = vmatprep.subr.mxu0 0.0
  %953 = vmatpush1.msra.mxu0 0.0
  %954 = vmatprep.subr.mxu0 0.0
  %955 = vmatpush1.msra.mxu0 0.0
  %956 = vmatprep.subr.mxu0 0.0
  %957 = vmatpush1.msra.mxu0 0.0
  %958 = vmatprep.subr.mxu0 0.0
  %959 = vmatpush1.msra.mxu0 0.0
  %960 = vmatprep.subr.mxu0 0.0
  %961 = vmatpush1.msra.mxu0 0.0
  %962 = vmatprep.mubr.f32.mxu0 0.0
  %963 = vmatmul.mubr.f32.gmra.mrb[0].mxu0 %v896
  %v964 = vpop.f32.mrb[0].mxu0
  %v965 = vadd.f32 0.0, %v964
  %v966 = vpop.f32.mrb[0].mxu0
  %967 = vdwg.mxu0
  %v968 = vadd.f32 %v794, %v965
  %v969 = vxor.u32 %v968, 2147483648
  %v970 = vmul.f32 %v969, 1.442695
  %v971 = vpow.pop %v970
  %v972 = vadd.f32 %v971, 1.0
  %v973 = vrcp.pop %v972
  %v974 = vmul.f32 1.0, %v973
  %v975 = vmul.f32 %v974, %v170
  %v976 = vadd.f32 %v975, %v174
  %v977 = vmul.f32 %v976, %v715
  %979 = vrot.lane.b32.xlu0 %v976, 112
  %v980 = vpop.permute.xlu0 %979
  %v982 = vmul.f32 %v976, %v980
  %984 = vrot.lane.b32.xlu0 %v982, 8
  %v985 = vpop.permute.xlu0 %984
  %v987 = vadd.f32 %v977, %v985
  %v988 = vtanh.pop %v987
  %990 = vrot.lane.b32.xlu0 %v988, 16
  %v991 = vpop.permute.xlu0 %990
  %v993 = vmul.f32 %v976, %v991
  %995 = vrot.lane.b32.xlu0 %v993, 104
  %v996 = vpop.permute.xlu0 %995
  %v997 = vsel %vm179, %v996, 0
  %999 = vmatprep.subr.mxu0 0.0
  %1000 = vmatpush1.msra.mxu0 %v15
  %1001 = vmatprep.subr.mxu0 0.0
  %1002 = vmatpush1.msra.mxu0 0.0
  %1003 = vmatprep.subr.mxu0 0.0
  %1004 = vmatpush1.msra.mxu0 0.0
  %1005 = vmatprep.subr.mxu0 0.0
  %1006 = vmatpush1.msra.mxu0 0.0
  %1007 = vmatprep.subr.mxu0 0.0
  %1008 = vmatpush1.msra.mxu0 0.0
  %1009 = vmatprep.subr.mxu0 0.0
  %1010 = vmatpush1.msra.mxu0 0.0
  %1011 = vmatprep.subr.mxu0 0.0
  %1012 = vmatpush1.msra.mxu0 0.0
  %1013 = vmatprep.subr.mxu0 0.0
  %1014 = vmatpush1.msra.mxu0 0.0
  %1015 = vmatprep.subr.mxu0 0.0
  %1016 = vmatpush1.msra.mxu0 0.0
  %1017 = vmatprep.subr.mxu0 0.0
  %1018 = vmatpush1.msra.mxu0 0.0
  %1019 = vmatprep.subr.mxu0 0.0
  %1020 = vmatpush1.msra.mxu0 0.0
  %1021 = vmatprep.subr.mxu0 0.0
  %1022 = vmatpush1.msra.mxu0 0.0
  %1023 = vmatprep.subr.mxu0 0.0
  %1024 = vmatpush1.msra.mxu0 0.0
  %1025 = vmatprep.subr.mxu0 0.0
  %1026 = vmatpush1.msra.mxu0 0.0
  %1027 = vmatprep.subr.mxu0 0.0
  %1028 = vmatpush1.msra.mxu0 0.0
  %1029 = vmatprep.subr.mxu0 0.0
  %1030 = vmatpush1.msra.mxu0 0.0
  %1031 = vmatprep.subr.mxu0 0.0
  %1032 = vmatpush1.msra.mxu0 0.0
  %1033 = vmatprep.subr.mxu0 0.0
  %1034 = vmatpush1.msra.mxu0 0.0
  %1035 = vmatprep.subr.mxu0 0.0
  %1036 = vmatpush1.msra.mxu0 0.0
  %1037 = vmatprep.subr.mxu0 0.0
  %1038 = vmatpush1.msra.mxu0 0.0
  %1039 = vmatprep.subr.mxu0 0.0
  %1040 = vmatpush1.msra.mxu0 0.0
  %1041 = vmatprep.subr.mxu0 0.0
  %1042 = vmatpush1.msra.mxu0 0.0
  %1043 = vmatprep.subr.mxu0 0.0
  %1044 = vmatpush1.msra.mxu0 0.0
  %1045 = vmatprep.subr.mxu0 0.0
  %1046 = vmatpush1.msra.mxu0 0.0
  %1047 = vmatprep.subr.mxu0 0.0
  %1048 = vmatpush1.msra.mxu0 0.0
  %1049 = vmatprep.subr.mxu0 0.0
  %1050 = vmatpush1.msra.mxu0 0.0
  %1051 = vmatprep.subr.mxu0 0.0
  %1052 = vmatpush1.msra.mxu0 0.0
  %1053 = vmatprep.subr.mxu0 0.0
  %1054 = vmatpush1.msra.mxu0 0.0
  %1055 = vmatprep.subr.mxu0 0.0
  %1056 = vmatpush1.msra.mxu0 0.0
  %1057 = vmatprep.subr.mxu0 0.0
  %1058 = vmatpush1.msra.mxu0 0.0
  %1059 = vmatprep.subr.mxu0 0.0
  %1060 = vmatpush1.msra.mxu0 0.0
  %1061 = vmatprep.subr.mxu0 0.0
  %1062 = vmatpush1.msra.mxu0 0.0
  %1063 = vmatprep.mubr.f32.mxu0 0.0
  %1064 = vmatmul.mubr.f32.gmra.mrb[0].mxu0 %v997
  %v1065 = vpop.f32.mrb[0].mxu0
  %v1066 = vadd.f32 %v166, %v1065
  %v1067 = vpop.f32.mrb[0].mxu0
  %1068 = vdwg.mxu0
  %1069 = vmatprep.subr.mxu0 0.0
  %1070 = vmatpush1.msra.mxu0 %v13
  %1071 = vmatprep.subr.mxu0 0.0
  %1072 = vmatpush1.msra.mxu0 0.0
  %1073 = vmatprep.subr.mxu0 0.0
  %1074 = vmatpush1.msra.mxu0 0.0
  %1075 = vmatprep.subr.mxu0 0.0
  %1076 = vmatpush1.msra.mxu0 0.0
  %1077 = vmatprep.subr.mxu0 0.0
  %1078 = vmatpush1.msra.mxu0 0.0
  %1079 = vmatprep.subr.mxu0 0.0
  %1080 = vmatpush1.msra.mxu0 0.0
  %1081 = vmatprep.subr.mxu0 0.0
  %1082 = vmatpush1.msra.mxu0 0.0
  %1083 = vmatprep.subr.mxu0 0.0
  %1084 = vmatpush1.msra.mxu0 0.0
  %1085 = vmatprep.subr.mxu0 0.0
  %1086 = vmatpush1.msra.mxu0 0.0
  %1087 = vmatprep.subr.mxu0 0.0
  %1088 = vmatpush1.msra.mxu0 0.0
  %1089 = vmatprep.subr.mxu0 0.0
  %1090 = vmatpush1.msra.mxu0 0.0
  %1091 = vmatprep.subr.mxu0 0.0
  %1092 = vmatpush1.msra.mxu0 0.0
  %1093 = vmatprep.subr.mxu0 0.0
  %1094 = vmatpush1.msra.mxu0 0.0
  %1095 = vmatprep.subr.mxu0 0.0
  %1096 = vmatpush1.msra.mxu0 0.0
  %1097 = vmatprep.subr.mxu0 0.0
  %1098 = vmatpush1.msra.mxu0 0.0
  %1099 = vmatprep.subr.mxu0 0.0
  %1100 = vmatpush1.msra.mxu0 0.0
  %1101 = vmatprep.subr.mxu0 0.0
  %1102 = vmatpush1.msra.mxu0 0.0
  %1103 = vmatprep.subr.mxu0 0.0
  %1104 = vmatpush1.msra.mxu0 0.0
  %1105 = vmatprep.subr.mxu0 0.0
  %1106 = vmatpush1.msra.mxu0 0.0
  %1107 = vmatprep.subr.mxu0 0.0
  %1108 = vmatpush1.msra.mxu0 0.0
  %1109 = vmatprep.subr.mxu0 0.0
  %1110 = vmatpush1.msra.mxu0 0.0
  %1111 = vmatprep.subr.mxu0 0.0
  %1112 = vmatpush1.msra.mxu0 0.0
  %1113 = vmatprep.subr.mxu0 0.0
  %1114 = vmatpush1.msra.mxu0 0.0
  %1115 = vmatprep.subr.mxu0 0.0
  %1116 = vmatpush1.msra.mxu0 0.0
  %1117 = vmatprep.subr.mxu0 0.0
  %1118 = vmatpush1.msra.mxu0 0.0
  %1119 = vmatprep.subr.mxu0 0.0
  %1120 = vmatpush1.msra.mxu0 0.0
  %1121 = vmatprep.subr.mxu0 0.0
  %1122 = vmatpush1.msra.mxu0 0.0
  %1123 = vmatprep.subr.mxu0 0.0
  %1124 = vmatpush1.msra.mxu0 0.0
  %1125 = vmatprep.subr.mxu0 0.0
  %1126 = vmatpush1.msra.mxu0 0.0
  %1127 = vmatprep.subr.mxu0 0.0
  %1128 = vmatpush1.msra.mxu0 0.0
  %1129 = vmatprep.subr.mxu0 0.0
  %1130 = vmatpush1.msra.mxu0 0.0
  %1131 = vmatprep.subr.mxu0 0.0
  %1132 = vmatpush1.msra.mxu0 0.0
  %1133 = vmatprep.mubr.f32.mxu0 0.0
  %1134 = vmatmul.mubr.f32.gmra.mrb[0].mxu0 %v896
  %v1135 = vpop.f32.mrb[0].mxu0
  %v1136 = vadd.f32 0.0, %v1135
  %v1137 = vpop.f32.mrb[0].mxu0
  %1138 = vdwg.mxu0
  %v1139 = vadd.f32 %v140, %v1136
  %v1140 = vxor.u32 %v1139, 2147483648
  %v1141 = vmul.f32 %v1140, 1.442695
  %v1142 = vpow.pop %v1141
  %v1143 = vadd.f32 %v1142, 1.0
  %v1144 = vrcp.pop %v1143
  %v1145 = vmul.f32 1.0, %v1144
  %v1146 = vmul.f32 %v1145, %v170
  %v1147 = vadd.f32 %v1146, %v174
  %v1148 = vmul.f32 %v1147, %v886
  %1150 = vrot.lane.b32.xlu0 %v1147, 112
  %v1151 = vpop.permute.xlu0 %1150
  %v1153 = vmul.f32 %v1147, %v1151
  %1155 = vrot.lane.b32.xlu0 %v1153, 8
  %v1156 = vpop.permute.xlu0 %1155
  %v1158 = vadd.f32 %v1148, %v1156
  %v1159 = vtanh.pop %v1158
  %1161 = vrot.lane.b32.xlu0 %v1159, 16
  %v1162 = vpop.permute.xlu0 %1161
  %v1164 = vmul.f32 %v1147, %v1162
  %1166 = vrot.lane.b32.xlu0 %v1164, 104
  %v1167 = vpop.permute.xlu0 %1166
  %v1168 = vsel %vm179, %v1167, 0
  %1170 = vmatprep.subr.mxu0 0.0
  %1171 = vmatpush1.msra.mxu0 %v14
  %1172 = vmatprep.subr.mxu0 0.0
  %1173 = vmatpush1.msra.mxu0 0.0
  %1174 = vmatprep.subr.mxu0 0.0
  %1175 = vmatpush1.msra.mxu0 0.0
  %1176 = vmatprep.subr.mxu0 0.0
  %1177 = vmatpush1.msra.mxu0 0.0
  %1178 = vmatprep.subr.mxu0 0.0
  %1179 = vmatpush1.msra.mxu0 0.0
  %1180 = vmatprep.subr.mxu0 0.0
  %1181 = vmatpush1.msra.mxu0 0.0
  %1182 = vmatprep.subr.mxu0 0.0
  %1183 = vmatpush1.msra.mxu0 0.0
  %1184 = vmatprep.subr.mxu0 0.0
  %1185 = vmatpush1.msra.mxu0 0.0
  %1186 = vmatprep.subr.mxu0 0.0
  %1187 = vmatpush1.msra.mxu0 0.0
  %1188 = vmatprep.subr.mxu0 0.0
  %1189 = vmatpush1.msra.mxu0 0.0
  %1190 = vmatprep.subr.mxu0 0.0
  %1191 = vmatpush1.msra.mxu0 0.0
  %1192 = vmatprep.subr.mxu0 0.0
  %1193 = vmatpush1.msra.mxu0 0.0
  %1194 = vmatprep.subr.mxu0 0.0
  %1195 = vmatpush1.msra.mxu0 0.0
  %1196 = vmatprep.subr.mxu0 0.0
  %1197 = vmatpush1.msra.mxu0 0.0
  %1198 = vmatprep.subr.mxu0 0.0
  %1199 = vmatpush1.msra.mxu0 0.0
  %1200 = vmatprep.subr.mxu0 0.0
  %1201 = vmatpush1.msra.mxu0 0.0
  %1202 = vmatprep.subr.mxu0 0.0
  %1203 = vmatpush1.msra.mxu0 0.0
  %1204 = vmatprep.subr.mxu0 0.0
  %1205 = vmatpush1.msra.mxu0 0.0
  %1206 = vmatprep.subr.mxu0 0.0
  %1207 = vmatpush1.msra.mxu0 0.0
  %1208 = vmatprep.subr.mxu0 0.0
  %1209 = vmatpush1.msra.mxu0 0.0
  %1210 = vmatprep.subr.mxu0 0.0
  %1211 = vmatpush1.msra.mxu0 0.0
  %1212 = vmatprep.subr.mxu0 0.0
  %1213 = vmatpush1.msra.mxu0 0.0
  %1214 = vmatprep.subr.mxu0 0.0
  %1215 = vmatpush1.msra.mxu0 0.0
  %1216 = vmatprep.subr.mxu0 0.0
  %1217 = vmatpush1.msra.mxu0 0.0
  %1218 = vmatprep.subr.mxu0 0.0
  %1219 = vmatpush1.msra.mxu0 0.0
  %1220 = vmatprep.subr.mxu0 0.0
  %1221 = vmatpush1.msra.mxu0 0.0
  %1222 = vmatprep.subr.mxu0 0.0
  %1223 = vmatpush1.msra.mxu0 0.0
  %1224 = vmatprep.subr.mxu0 0.0
  %1225 = vmatpush1.msra.mxu0 0.0
  %1226 = vmatprep.subr.mxu0 0.0
  %1227 = vmatpush1.msra.mxu0 0.0
  %1228 = vmatprep.subr.mxu0 0.0
  %1229 = vmatpush1.msra.mxu0 0.0
  %1230 = vmatprep.subr.mxu0 0.0
  %1231 = vmatpush1.msra.mxu0 0.0
  %1232 = vmatprep.subr.mxu0 0.0
  %1233 = vmatpush1.msra.mxu0 0.0
  %1234 = vmatprep.mubr.f32.mxu0 0.0
  %1235 = vmatmul.mubr.f32.gmra.mrb[0].mxu0 %v1168
  %v1236 = vpop.f32.mrb[0].mxu0
  %v1237 = vadd.f32 0.0, %v1236
  %v1238 = vpop.f32.mrb[0].mxu0
  %1239 = vdwg.mxu0
  %v1240 = vadd.f32 %v1066, %v1237
  %v1241 = vxor.u32 %v1240, 2147483648
  %v1242 = vmul.f32 %v1241, 1.442695
  %v1243 = vpow.pop %v1242
  %v1244 = vadd.f32 %v1243, 1.0
  %v1245 = vrcp.pop %v1244
  %v1246 = vmul.f32 1.0, %v1245
  %v1247 = vmul.f32 %v1246, %v170
  %v1248 = vadd.f32 %v1247, %v174
  %v1249 = vmul.f32 %v1248, %v987
  %1251 = vrot.lane.b32.xlu0 %v1248, 112
  %v1252 = vpop.permute.xlu0 %1251
  %v1254 = vmul.f32 %v1248, %v1252
  %1256 = vrot.lane.b32.xlu0 %v1254, 8
  %v1257 = vpop.permute.xlu0 %1256
  %v1259 = vadd.f32 %v1249, %v1257
  %v1260 = vtanh.pop %v1259
  %1262 = vrot.lane.b32.xlu0 %v1260, 16
  %v1263 = vpop.permute.xlu0 %1262
  %v1265 = vmul.f32 %v1248, %v1263
  %1267 = vrot.lane.b32.xlu0 %v1265, 104
  %v1268 = vpop.permute.xlu0 %1267
  %v1269 = vsel %vm179, %v1268, 0
  %1271 = vmatprep.subr.mxu0 0.0
  %1272 = vmatpush1.msra.mxu0 %v15
  %1273 = vmatprep.subr.mxu0 0.0
  %1274 = vmatpush1.msra.mxu0 0.0
  %1275 = vmatprep.subr.mxu0 0.0
  %1276 = vmatpush1.msra.mxu0 0.0
  %1277 = vmatprep.subr.mxu0 0.0
  %1278 = vmatpush1.msra.mxu0 0.0
  %1279 = vmatprep.subr.mxu0 0.0
  %1280 = vmatpush1.msra.mxu0 0.0
  %1281 = vmatprep.subr.mxu0 0.0
  %1282 = vmatpush1.msra.mxu0 0.0
  %1283 = vmatprep.subr.mxu0 0.0
  %1284 = vmatpush1.msra.mxu0 0.0
  %1285 = vmatprep.subr.mxu0 0.0
  %1286 = vmatpush1.msra.mxu0 0.0
  %1287 = vmatprep.subr.mxu0 0.0
  %1288 = vmatpush1.msra.mxu0 0.0
  %1289 = vmatprep.subr.mxu0 0.0
  %1290 = vmatpush1.msra.mxu0 0.0
  %1291 = vmatprep.subr.mxu0 0.0
  %1292 = vmatpush1.msra.mxu0 0.0
  %1293 = vmatprep.subr.mxu0 0.0
  %1294 = vmatpush1.msra.mxu0 0.0
  %1295 = vmatprep.subr.mxu0 0.0
  %1296 = vmatpush1.msra.mxu0 0.0
  %1297 = vmatprep.subr.mxu0 0.0
  %1298 = vmatpush1.msra.mxu0 0.0
  %1299 = vmatprep.subr.mxu0 0.0
  %1300 = vmatpush1.msra.mxu0 0.0
  %1301 = vmatprep.subr.mxu0 0.0
  %1302 = vmatpush1.msra.mxu0 0.0
  %1303 = vmatprep.subr.mxu0 0.0
  %1304 = vmatpush1.msra.mxu0 0.0
  %1305 = vmatprep.subr.mxu0 0.0
  %1306 = vmatpush1.msra.mxu0 0.0
  %1307 = vmatprep.subr.mxu0 0.0
  %1308 = vmatpush1.msra.mxu0 0.0
  %1309 = vmatprep.subr.mxu0 0.0
  %1310 = vmatpush1.msra.mxu0 0.0
  %1311 = vmatprep.subr.mxu0 0.0
  %1312 = vmatpush1.msra.mxu0 0.0
  %1313 = vmatprep.subr.mxu0 0.0
  %1314 = vmatpush1.msra.mxu0 0.0
  %1315 = vmatprep.subr.mxu0 0.0
  %1316 = vmatpush1.msra.mxu0 0.0
  %1317 = vmatprep.subr.mxu0 0.0
  %1318 = vmatpush1.msra.mxu0 0.0
  %1319 = vmatprep.subr.mxu0 0.0
  %1320 = vmatpush1.msra.mxu0 0.0
  %1321 = vmatprep.subr.mxu0 0.0
  %1322 = vmatpush1.msra.mxu0 0.0
  %1323 = vmatprep.subr.mxu0 0.0
  %1324 = vmatpush1.msra.mxu0 0.0
  %1325 = vmatprep.subr.mxu0 0.0
  %1326 = vmatpush1.msra.mxu0 0.0
  %1327 = vmatprep.subr.mxu0 0.0
  %1328 = vmatpush1.msra.mxu0 0.0
  %1329 = vmatprep.subr.mxu0 0.0
  %1330 = vmatpush1.msra.mxu0 0.0
  %1331 = vmatprep.subr.mxu0 0.0
  %1332 = vmatpush1.msra.mxu0 0.0
  %1333 = vmatprep.subr.mxu0 0.0
  %1334 = vmatpush1.msra.mxu0 0.0
  %1335 = vmatprep.mubr.f32.mxu0 0.0
  %1336 = vmatmul.mubr.f32.gmra.mrb[0].mxu0 %v1269
  %v1337 = vpop.f32.mrb[0].mxu0
  %v1338 = vadd.f32 %v166, %v1337
  %v1339 = vpop.f32.mrb[0].mxu0
  %1340 = vdwg.mxu0
  %1341 = vmatprep.subr.mxu0 0.0
  %1342 = vmatpush1.msra.mxu0 %v13
  %1343 = vmatprep.subr.mxu0 0.0
  %1344 = vmatpush1.msra.mxu0 0.0
  %1345 = vmatprep.subr.mxu0 0.0
  %1346 = vmatpush1.msra.mxu0 0.0
  %1347 = vmatprep.subr.mxu0 0.0
  %1348 = vmatpush1.msra.mxu0 0.0
  %1349 = vmatprep.subr.mxu0 0.0
  %1350 = vmatpush1.msra.mxu0 0.0
  %1351 = vmatprep.subr.mxu0 0.0
  %1352 = vmatpush1.msra.mxu0 0.0
  %1353 = vmatprep.subr.mxu0 0.0
  %1354 = vmatpush1.msra.mxu0 0.0
  %1355 = vmatprep.subr.mxu0 0.0
  %1356 = vmatpush1.msra.mxu0 0.0
  %1357 = vmatprep.subr.mxu0 0.0
  %1358 = vmatpush1.msra.mxu0 0.0
  %1359 = vmatprep.subr.mxu0 0.0
  %1360 = vmatpush1.msra.mxu0 0.0
  %1361 = vmatprep.subr.mxu0 0.0
  %1362 = vmatpush1.msra.mxu0 0.0
  %1363 = vmatprep.subr.mxu0 0.0
  %1364 = vmatpush1.msra.mxu0 0.0
  %1365 = vmatprep.subr.mxu0 0.0
  %1366 = vmatpush1.msra.mxu0 0.0
  %1367 = vmatprep.subr.mxu0 0.0
  %1368 = vmatpush1.msra.mxu0 0.0
  %1369 = vmatprep.subr.mxu0 0.0
  %1370 = vmatpush1.msra.mxu0 0.0
  %1371 = vmatprep.subr.mxu0 0.0
  %1372 = vmatpush1.msra.mxu0 0.0
  %1373 = vmatprep.subr.mxu0 0.0
  %1374 = vmatpush1.msra.mxu0 0.0
  %1375 = vmatprep.subr.mxu0 0.0
  %1376 = vmatpush1.msra.mxu0 0.0
  %1377 = vmatprep.subr.mxu0 0.0
  %1378 = vmatpush1.msra.mxu0 0.0
  %1379 = vmatprep.subr.mxu0 0.0
  %1380 = vmatpush1.msra.mxu0 0.0
  %1381 = vmatprep.subr.mxu0 0.0
  %1382 = vmatpush1.msra.mxu0 0.0
  %1383 = vmatprep.subr.mxu0 0.0
  %1384 = vmatpush1.msra.mxu0 0.0
  %1385 = vmatprep.subr.mxu0 0.0
  %1386 = vmatpush1.msra.mxu0 0.0
  %1387 = vmatprep.subr.mxu0 0.0
  %1388 = vmatpush1.msra.mxu0 0.0
  %1389 = vmatprep.subr.mxu0 0.0
  %1390 = vmatpush1.msra.mxu0 0.0
  %1391 = vmatprep.subr.mxu0 0.0
  %1392 = vmatpush1.msra.mxu0 0.0
  %1393 = vmatprep.subr.mxu0 0.0
  %1394 = vmatpush1.msra.mxu0 0.0
  %1395 = vmatprep.subr.mxu0 0.0
  %1396 = vmatpush1.msra.mxu0 0.0
  %1397 = vmatprep.subr.mxu0 0.0
  %1398 = vmatpush1.msra.mxu0 0.0
  %1399 = vmatprep.subr.mxu0 0.0
  %1400 = vmatpush1.msra.mxu0 0.0
  %1401 = vmatprep.subr.mxu0 0.0
  %1402 = vmatpush1.msra.mxu0 0.0
  %1403 = vmatprep.subr.mxu0 0.0
  %1404 = vmatpush1.msra.mxu0 0.0
  %1405 = vmatprep.mubr.f32.mxu0 0.0
  %1406 = vmatmul.mubr.f32.gmra.mrb[0].mxu0 %v1168
  %v1407 = vpop.f32.mrb[0].mxu0
  %v1408 = vadd.f32 0.0, %v1407
  %v1409 = vpop.f32.mrb[0].mxu0
  %1410 = vdwg.mxu0
  %v1411 = vadd.f32 %v145, %v1408
  %v1412 = vxor.u32 %v1411, 2147483648
  %v1413 = vmul.f32 %v1412, 1.442695
  %v1414 = vpow.pop %v1413
  %v1415 = vadd.f32 %v1414, 1.0
  %v1416 = vrcp.pop %v1415
  %v1417 = vmul.f32 1.0, %v1416
  %v1418 = vmul.f32 %v1417, %v170
  %v1419 = vadd.f32 %v1418, %v174
  %v1420 = vmul.f32 %v1419, %v1158
  %1422 = vrot.lane.b32.xlu0 %v1419, 112
  %v1423 = vpop.permute.xlu0 %1422
  %v1425 = vmul.f32 %v1419, %v1423
  %1427 = vrot.lane.b32.xlu0 %v1425, 8
  %v1428 = vpop.permute.xlu0 %1427
  %v1430 = vadd.f32 %v1420, %v1428
  %v1431 = vtanh.pop %v1430
  %1433 = vrot.lane.b32.xlu0 %v1431, 16
  %v1434 = vpop.permute.xlu0 %1433
  %v1436 = vmul.f32 %v1419, %v1434
  %1438 = vrot.lane.b32.xlu0 %v1436, 104
  %v1439 = vpop.permute.xlu0 %1438
  %v1440 = vsel %vm179, %v1439, 0
  %1442 = vmatprep.subr.mxu0 0.0
  %1443 = vmatpush1.msra.mxu0 %v14
  %1444 = vmatprep.subr.mxu0 0.0
  %1445 = vmatpush1.msra.mxu0 0.0
  %1446 = vmatprep.subr.mxu0 0.0
  %1447 = vmatpush1.msra.mxu0 0.0
  %1448 = vmatprep.subr.mxu0 0.0
  %1449 = vmatpush1.msra.mxu0 0.0
  %1450 = vmatprep.subr.mxu0 0.0
  %1451 = vmatpush1.msra.mxu0 0.0
  %1452 = vmatprep.subr.mxu0 0.0
  %1453 = vmatpush1.msra.mxu0 0.0
  %1454 = vmatprep.subr.mxu0 0.0
  %1455 = vmatpush1.msra.mxu0 0.0
  %1456 = vmatprep.subr.mxu0 0.0
  %1457 = vmatpush1.msra.mxu0 0.0
  %1458 = vmatprep.subr.mxu0 0.0
  %1459 = vmatpush1.msra.mxu0 0.0
  %1460 = vmatprep.subr.mxu0 0.0
  %1461 = vmatpush1.msra.mxu0 0.0
  %1462 = vmatprep.subr.mxu0 0.0
  %1463 = vmatpush1.msra.mxu0 0.0
  %1464 = vmatprep.subr.mxu0 0.0
  %1465 = vmatpush1.msra.mxu0 0.0
  %1466 = vmatprep.subr.mxu0 0.0
  %1467 = vmatpush1.msra.mxu0 0.0
  %1468 = vmatprep.subr.mxu0 0.0
  %1469 = vmatpush1.msra.mxu0 0.0
  %1470 = vmatprep.subr.mxu0 0.0
  %1471 = vmatpush1.msra.mxu0 0.0
  %1472 = vmatprep.subr.mxu0 0.0
  %1473 = vmatpush1.msra.mxu0 0.0
  %1474 = vmatprep.subr.mxu0 0.0
  %1475 = vmatpush1.msra.mxu0 0.0
  %1476 = vmatprep.subr.mxu0 0.0
  %1477 = vmatpush1.msra.mxu0 0.0
  %1478 = vmatprep.subr.mxu0 0.0
  %1479 = vmatpush1.msra.mxu0 0.0
  %1480 = vmatprep.subr.mxu0 0.0
  %1481 = vmatpush1.msra.mxu0 0.0
  %1482 = vmatprep.subr.mxu0 0.0
  %1483 = vmatpush1.msra.mxu0 0.0
  %1484 = vmatprep.subr.mxu0 0.0
  %1485 = vmatpush1.msra.mxu0 0.0
  %1486 = vmatprep.subr.mxu0 0.0
  %1487 = vmatpush1.msra.mxu0 0.0
  %1488 = vmatprep.subr.mxu0 0.0
  %1489 = vmatpush1.msra.mxu0 0.0
  %1490 = vmatprep.subr.mxu0 0.0
  %1491 = vmatpush1.msra.mxu0 0.0
  %1492 = vmatprep.subr.mxu0 0.0
  %1493 = vmatpush1.msra.mxu0 0.0
  %1494 = vmatprep.subr.mxu0 0.0
  %1495 = vmatpush1.msra.mxu0 0.0
  %1496 = vmatprep.subr.mxu0 0.0
  %1497 = vmatpush1.msra.mxu0 0.0
  %1498 = vmatprep.subr.mxu0 0.0
  %1499 = vmatpush1.msra.mxu0 0.0
  %1500 = vmatprep.subr.mxu0 0.0
  %1501 = vmatpush1.msra.mxu0 0.0
  %1502 = vmatprep.subr.mxu0 0.0
  %1503 = vmatpush1.msra.mxu0 0.0
  %1504 = vmatprep.subr.mxu0 0.0
  %1505 = vmatpush1.msra.mxu0 0.0
  %1506 = vmatprep.mubr.f32.mxu0 0.0
  %1507 = vmatmul.mubr.f32.gmra.mrb[0].mxu0 %v1440
  %v1508 = vpop.f32.mrb[0].mxu0
  %v1509 = vadd.f32 0.0, %v1508
  %v1510 = vpop.f32.mrb[0].mxu0
  %1511 = vdwg.mxu0
  %v1512 = vadd.f32 %v1338, %v1509
  %v1513 = vxor.u32 %v1512, 2147483648
  %v1514 = vmul.f32 %v1513, 1.442695
  %v1515 = vpow.pop %v1514
  %v1516 = vadd.f32 %v1515, 1.0
  %v1517 = vrcp.pop %v1516
  %v1518 = vmul.f32 1.0, %v1517
  %v1519 = vmul.f32 %v1518, %v170
  %v1520 = vadd.f32 %v1519, %v174
  %v1521 = vmul.f32 %v1520, %v1259
  %1523 = vrot.lane.b32.xlu0 %v1520, 112
  %v1524 = vpop.permute.xlu0 %1523
  %v1526 = vmul.f32 %v1520, %v1524
  %1528 = vrot.lane.b32.xlu0 %v1526, 8
  %v1529 = vpop.permute.xlu0 %1528
  %v1531 = vadd.f32 %v1521, %v1529
  %v1532 = vtanh.pop %v1531
  %1534 = vrot.lane.b32.xlu0 %v1532, 16
  %v1535 = vpop.permute.xlu0 %1534
  %v1537 = vmul.f32 %v1520, %v1535
  %1539 = vrot.lane.b32.xlu0 %v1537, 104
  %v1540 = vpop.permute.xlu0 %1539
  %v1541 = vsel %vm179, %v1540, 0
  %1543 = vmatprep.subr.mxu0 0.0
  %1544 = vmatpush1.msra.mxu0 %v15
  %1545 = vmatprep.subr.mxu0 0.0
  %1546 = vmatpush1.msra.mxu0 0.0
  %1547 = vmatprep.subr.mxu0 0.0
  %1548 = vmatpush1.msra.mxu0 0.0
  %1549 = vmatprep.subr.mxu0 0.0
  %1550 = vmatpush1.msra.mxu0 0.0
  %1551 = vmatprep.subr.mxu0 0.0
  %1552 = vmatpush1.msra.mxu0 0.0
  %1553 = vmatprep.subr.mxu0 0.0
  %1554 = vmatpush1.msra.mxu0 0.0
  %1555 = vmatprep.subr.mxu0 0.0
  %1556 = vmatpush1.msra.mxu0 0.0
  %1557 = vmatprep.subr.mxu0 0.0
  %1558 = vmatpush1.msra.mxu0 0.0
  %1559 = vmatprep.subr.mxu0 0.0
  %1560 = vmatpush1.msra.mxu0 0.0
  %1561 = vmatprep.subr.mxu0 0.0
  %1562 = vmatpush1.msra.mxu0 0.0
  %1563 = vmatprep.subr.mxu0 0.0
  %1564 = vmatpush1.msra.mxu0 0.0
  %1565 = vmatprep.subr.mxu0 0.0
  %1566 = vmatpush1.msra.mxu0 0.0
  %1567 = vmatprep.subr.mxu0 0.0
  %1568 = vmatpush1.msra.mxu0 0.0
  %1569 = vmatprep.subr.mxu0 0.0
  %1570 = vmatpush1.msra.mxu0 0.0
  %1571 = vmatprep.subr.mxu0 0.0
  %1572 = vmatpush1.msra.mxu0 0.0
  %1573 = vmatprep.subr.mxu0 0.0
  %1574 = vmatpush1.msra.mxu0 0.0
  %1575 = vmatprep.subr.mxu0 0.0
  %1576 = vmatpush1.msra.mxu0 0.0
  %1577 = vmatprep.subr.mxu0 0.0
  %1578 = vmatpush1.msra.mxu0 0.0
  %1579 = vmatprep.subr.mxu0 0.0
  %1580 = vmatpush1.msra.mxu0 0.0
  %1581 = vmatprep.subr.mxu0 0.0
  %1582 = vmatpush1.msra.mxu0 0.0
  %1583 = vmatprep.subr.mxu0 0.0
  %1584 = vmatpush1.msra.mxu0 0.0
  %1585 = vmatprep.subr.mxu0 0.0
  %1586 = vmatpush1.msra.mxu0 0.0
  %1587 = vmatprep.subr.mxu0 0.0
  %1588 = vmatpush1.msra.mxu0 0.0
  %1589 = vmatprep.subr.mxu0 0.0
  %1590 = vmatpush1.msra.mxu0 0.0
  %1591 = vmatprep.subr.mxu0 0.0
  %1592 = vmatpush1.msra.mxu0 0.0
  %1593 = vmatprep.subr.mxu0 0.0
  %1594 = vmatpush1.msra.mxu0 0.0
  %1595 = vmatprep.subr.mxu0 0.0
  %1596 = vmatpush1.msra.mxu0 0.0
  %1597 = vmatprep.subr.mxu0 0.0
  %1598 = vmatpush1.msra.mxu0 0.0
  %1599 = vmatprep.subr.mxu0 0.0
  %1600 = vmatpush1.msra.mxu0 0.0
  %1601 = vmatprep.subr.mxu0 0.0
  %1602 = vmatpush1.msra.mxu0 0.0
  %1603 = vmatprep.subr.mxu0 0.0
  %1604 = vmatpush1.msra.mxu0 0.0
  %1605 = vmatprep.subr.mxu0 0.0
  %1606 = vmatpush1.msra.mxu0 0.0
  %1607 = vmatprep.mubr.f32.mxu0 0.0
  %1608 = vmatmul.mubr.f32.gmra.mrb[0].mxu0 %v1541
  %v1609 = vpop.f32.mrb[0].mxu0
  %v1610 = vadd.f32 %v166, %v1609
  %v1611 = vpop.f32.mrb[0].mxu0
  %1612 = vdwg.mxu0
  %1613 = vmatprep.subr.mxu0 0.0
  %1614 = vmatpush1.msra.mxu0 %v13
  %1615 = vmatprep.subr.mxu0 0.0
  %1616 = vmatpush1.msra.mxu0 0.0
  %1617 = vmatprep.subr.mxu0 0.0
  %1618 = vmatpush1.msra.mxu0 0.0
  %1619 = vmatprep.subr.mxu0 0.0
  %1620 = vmatpush1.msra.mxu0 0.0
  %1621 = vmatprep.subr.mxu0 0.0
  %1622 = vmatpush1.msra.mxu0 0.0
  %1623 = vmatprep.subr.mxu0 0.0
  %1624 = vmatpush1.msra.mxu0 0.0
  %1625 = vmatprep.subr.mxu0 0.0
  %1626 = vmatpush1.msra.mxu0 0.0
  %1627 = vmatprep.subr.mxu0 0.0
  %1628 = vmatpush1.msra.mxu0 0.0
  %1629 = vmatprep.subr.mxu0 0.0
  %1630 = vmatpush1.msra.mxu0 0.0
  %1631 = vmatprep.subr.mxu0 0.0
  %1632 = vmatpush1.msra.mxu0 0.0
  %1633 = vmatprep.subr.mxu0 0.0
  %1634 = vmatpush1.msra.mxu0 0.0
  %1635 = vmatprep.subr.mxu0 0.0
  %1636 = vmatpush1.msra.mxu0 0.0
  %1637 = vmatprep.subr.mxu0 0.0
  %1638 = vmatpush1.msra.mxu0 0.0
  %1639 = vmatprep.subr.mxu0 0.0
  %1640 = vmatpush1.msra.mxu0 0.0
  %1641 = vmatprep.subr.mxu0 0.0
  %1642 = vmatpush1.msra.mxu0 0.0
  %1643 = vmatprep.subr.mxu0 0.0
  %1644 = vmatpush1.msra.mxu0 0.0
  %1645 = vmatprep.subr.mxu0 0.0
  %1646 = vmatpush1.msra.mxu0 0.0
  %1647 = vmatprep.subr.mxu0 0.0
  %1648 = vmatpush1.msra.mxu0 0.0
  %1649 = vmatprep.subr.mxu0 0.0
  %1650 = vmatpush1.msra.mxu0 0.0
  %1651 = vmatprep.subr.mxu0 0.0
  %1652 = vmatpush1.msra.mxu0 0.0
  %1653 = vmatprep.subr.mxu0 0.0
  %1654 = vmatpush1.msra.mxu0 0.0
  %1655 = vmatprep.subr.mxu0 0.0
  %1656 = vmatpush1.msra.mxu0 0.0
  %1657 = vmatprep.subr.mxu0 0.0
  %1658 = vmatpush1.msra.mxu0 0.0
  %1659 = vmatprep.subr.mxu0 0.0
  %1660 = vmatpush1.msra.mxu0 0.0
  %1661 = vmatprep.subr.mxu0 0.0
  %1662 = vmatpush1.msra.mxu0 0.0
  %1663 = vmatprep.subr.mxu0 0.0
  %1664 = vmatpush1.msra.mxu0 0.0
  %1665 = vmatprep.subr.mxu0 0.0
  %1666 = vmatpush1.msra.mxu0 0.0
  %1667 = vmatprep.subr.mxu0 0.0
  %1668 = vmatpush1.msra.mxu0 0.0
  %1669 = vmatprep.subr.mxu0 0.0
  %1670 = vmatpush1.msra.mxu0 0.0
  %1671 = vmatprep.subr.mxu0 0.0
  %1672 = vmatpush1.msra.mxu0 0.0
  %1673 = vmatprep.subr.mxu0 0.0
  %1674 = vmatpush1.msra.mxu0 0.0
  %1675 = vmatprep.subr.mxu0 0.0
  %1676 = vmatpush1.msra.mxu0 0.0
  %1677 = vmatprep.mubr.f32.mxu0 0.0
  %1678 = vmatmul.mubr.f32.gmra.mrb[0].mxu0 %v1440
  %v1679 = vpop.f32.mrb[0].mxu0
  %v1680 = vadd.f32 0.0, %v1679
  %v1681 = vpop.f32.mrb[0].mxu0
  %1682 = vdwg.mxu0
  %v1683 = vadd.f32 %v150, %v1680
  %v1684 = vxor.u32 %v1683, 2147483648
  %v1685 = vmul.f32 %v1684, 1.442695
  %v1686 = vpow.pop %v1685
  %v1687 = vadd.f32 %v1686, 1.0
  %v1688 = vrcp.pop %v1687
  %v1689 = vmul.f32 1.0, %v1688
  %v1690 = vmul.f32 %v1689, %v170
  %v1691 = vadd.f32 %v1690, %v174
  %v1692 = vmul.f32 %v1691, %v1430
  %1694 = vrot.lane.b32.xlu0 %v1691, 112
  %v1695 = vpop.permute.xlu0 %1694
  %v1697 = vmul.f32 %v1691, %v1695
  %1699 = vrot.lane.b32.xlu0 %v1697, 8
  %v1700 = vpop.permute.xlu0 %1699
  %v1702 = vadd.f32 %v1692, %v1700
  %v1703 = vtanh.pop %v1702
  %1705 = vrot.lane.b32.xlu0 %v1703, 16
  %v1706 = vpop.permute.xlu0 %1705
  %v1708 = vmul.f32 %v1691, %v1706
  %1710 = vrot.lane.b32.xlu0 %v1708, 104
  %v1711 = vpop.permute.xlu0 %1710
  %v1712 = vsel %vm179, %v1711, 0
  %1714 = vmatprep.subr.mxu0 0.0
  %1715 = vmatpush1.msra.mxu0 %v14
  %1716 = vmatprep.subr.mxu0 0.0
  %1717 = vmatpush1.msra.mxu0 0.0
  %1718 = vmatprep.subr.mxu0 0.0
  %1719 = vmatpush1.msra.mxu0 0.0
  %1720 = vmatprep.subr.mxu0 0.0
  %1721 = vmatpush1.msra.mxu0 0.0
  %1722 = vmatprep.subr.mxu0 0.0
  %1723 = vmatpush1.msra.mxu0 0.0
  %1724 = vmatprep.subr.mxu0 0.0
  %1725 = vmatpush1.msra.mxu0 0.0
  %1726 = vmatprep.subr.mxu0 0.0
  %1727 = vmatpush1.msra.mxu0 0.0
  %1728 = vmatprep.subr.mxu0 0.0
  %1729 = vmatpush1.msra.mxu0 0.0
  %1730 = vmatprep.subr.mxu0 0.0
  %1731 = vmatpush1.msra.mxu0 0.0
  %1732 = vmatprep.subr.mxu0 0.0
  %1733 = vmatpush1.msra.mxu0 0.0
  %1734 = vmatprep.subr.mxu0 0.0
  %1735 = vmatpush1.msra.mxu0 0.0
  %1736 = vmatprep.subr.mxu0 0.0
  %1737 = vmatpush1.msra.mxu0 0.0
  %1738 = vmatprep.subr.mxu0 0.0
  %1739 = vmatpush1.msra.mxu0 0.0
  %1740 = vmatprep.subr.mxu0 0.0
  %1741 = vmatpush1.msra.mxu0 0.0
  %1742 = vmatprep.subr.mxu0 0.0
  %1743 = vmatpush1.msra.mxu0 0.0
  %1744 = vmatprep.subr.mxu0 0.0
  %1745 = vmatpush1.msra.mxu0 0.0
  %1746 = vmatprep.subr.mxu0 0.0
  %1747 = vmatpush1.msra.mxu0 0.0
  %1748 = vmatprep.subr.mxu0 0.0
  %1749 = vmatpush1.msra.mxu0 0.0
  %1750 = vmatprep.subr.mxu0 0.0
  %1751 = vmatpush1.msra.mxu0 0.0
  %1752 = vmatprep.subr.mxu0 0.0
  %1753 = vmatpush1.msra.mxu0 0.0
  %1754 = vmatprep.subr.mxu0 0.0
  %1755 = vmatpush1.msra.mxu0 0.0
  %1756 = vmatprep.subr.mxu0 0.0
  %1757 = vmatpush1.msra.mxu0 0.0
  %1758 = vmatprep.subr.mxu0 0.0
  %1759 = vmatpush1.msra.mxu0 0.0
  %1760 = vmatprep.subr.mxu0 0.0
  %1761 = vmatpush1.msra.mxu0 0.0
  %1762 = vmatprep.subr.mxu0 0.0
  %1763 = vmatpush1.msra.mxu0 0.0
  %1764 = vmatprep.subr.mxu0 0.0
  %1765 = vmatpush1.msra.mxu0 0.0
  %1766 = vmatprep.subr.mxu0 0.0
  %1767 = vmatpush1.msra.mxu0 0.0
  %1768 = vmatprep.subr.mxu0 0.0
  %1769 = vmatpush1.msra.mxu0 0.0
  %1770 = vmatprep.subr.mxu0 0.0
  %1771 = vmatpush1.msra.mxu0 0.0
  %1772 = vmatprep.subr.mxu0 0.0
  %1773 = vmatpush1.msra.mxu0 0.0
  %1774 = vmatprep.subr.mxu0 0.0
  %1775 = vmatpush1.msra.mxu0 0.0
  %1776 = vmatprep.subr.mxu0 0.0
  %1777 = vmatpush1.msra.mxu0 0.0
  %1778 = vmatprep.mubr.f32.mxu0 0.0
  %1779 = vmatmul.mubr.f32.gmra.mrb[0].mxu0 %v1712
  %v1780 = vpop.f32.mrb[0].mxu0
  %v1781 = vadd.f32 0.0, %v1780
  %v1782 = vpop.f32.mrb[0].mxu0
  %1783 = vdwg.mxu0
  %v1784 = vadd.f32 %v1610, %v1781
  %v1785 = vxor.u32 %v1784, 2147483648
  %v1786 = vmul.f32 %v1785, 1.442695
  %v1787 = vpow.pop %v1786
  %v1788 = vadd.f32 %v1787, 1.0
  %v1789 = vrcp.pop %v1788
  %v1790 = vmul.f32 1.0, %v1789
  %v1791 = vmul.f32 %v1790, %v170
  %v1792 = vadd.f32 %v1791, %v174
  %v1793 = vmul.f32 %v1792, %v1531
  %1795 = vrot.lane.b32.xlu0 %v1792, 112
  %v1796 = vpop.permute.xlu0 %1795
  %v1798 = vmul.f32 %v1792, %v1796
  %1800 = vrot.lane.b32.xlu0 %v1798, 8
  %v1801 = vpop.permute.xlu0 %1800
  %v1803 = vadd.f32 %v1793, %v1801
  %v1804 = vtanh.pop %v1803
  %1806 = vrot.lane.b32.xlu0 %v1804, 16
  %v1807 = vpop.permute.xlu0 %1806
  %v1809 = vmul.f32 %v1792, %v1807
  %1811 = vrot.lane.b32.xlu0 %v1809, 104
  %v1812 = vpop.permute.xlu0 %1811
  %v1813 = vsel %vm179, %v1812, 0
  %1815 = vmatprep.subr.mxu0 0.0
  %1816 = vmatpush1.msra.mxu0 %v15
  %1817 = vmatprep.subr.mxu0 0.0
  %1818 = vmatpush1.msra.mxu0 0.0
  %1819 = vmatprep.subr.mxu0 0.0
  %1820 = vmatpush1.msra.mxu0 0.0
  %1821 = vmatprep.subr.mxu0 0.0
  %1822 = vmatpush1.msra.mxu0 0.0
  %1823 = vmatprep.subr.mxu0 0.0
  %1824 = vmatpush1.msra.mxu0 0.0
  %1825 = vmatprep.subr.mxu0 0.0
  %1826 = vmatpush1.msra.mxu0 0.0
  %1827 = vmatprep.subr.mxu0 0.0
  %1828 = vmatpush1.msra.mxu0 0.0
  %1829 = vmatprep.subr.mxu0 0.0
  %1830 = vmatpush1.msra.mxu0 0.0
  %1831 = vmatprep.subr.mxu0 0.0
  %1832 = vmatpush1.msra.mxu0 0.0
  %1833 = vmatprep.subr.mxu0 0.0
  %1834 = vmatpush1.msra.mxu0 0.0
  %1835 = vmatprep.subr.mxu0 0.0
  %1836 = vmatpush1.msra.mxu0 0.0
  %1837 = vmatprep.subr.mxu0 0.0
  %1838 = vmatpush1.msra.mxu0 0.0
  %1839 = vmatprep.subr.mxu0 0.0
  %1840 = vmatpush1.msra.mxu0 0.0
  %1841 = vmatprep.subr.mxu0 0.0
  %1842 = vmatpush1.msra.mxu0 0.0
  %1843 = vmatprep.subr.mxu0 0.0
  %1844 = vmatpush1.msra.mxu0 0.0
  %1845 = vmatprep.subr.mxu0 0.0
  %1846 = vmatpush1.msra.mxu0 0.0
  %1847 = vmatprep.subr.mxu0 0.0
  %1848 = vmatpush1.msra.mxu0 0.0
  %1849 = vmatprep.subr.mxu0 0.0
  %1850 = vmatpush1.msra.mxu0 0.0
  %1851 = vmatprep.subr.mxu0 0.0
  %1852 = vmatpush1.msra.mxu0 0.0
  %1853 = vmatprep.subr.mxu0 0.0
  %1854 = vmatpush1.msra.mxu0 0.0
  %1855 = vmatprep.subr.mxu0 0.0
  %1856 = vmatpush1.msra.mxu0 0.0
  %1857 = vmatprep.subr.mxu0 0.0
  %1858 = vmatpush1.msra.mxu0 0.0
  %1859 = vmatprep.subr.mxu0 0.0
  %1860 = vmatpush1.msra.mxu0 0.0
  %1861 = vmatprep.subr.mxu0 0.0
  %1862 = vmatpush1.msra.mxu0 0.0
  %1863 = vmatprep.subr.mxu0 0.0
  %1864 = vmatpush1.msra.mxu0 0.0
  %1865 = vmatprep.subr.mxu0 0.0
  %1866 = vmatpush1.msra.mxu0 0.0
  %1867 = vmatprep.subr.mxu0 0.0
  %1868 = vmatpush1.msra.mxu0 0.0
  %1869 = vmatprep.subr.mxu0 0.0
  %1870 = vmatpush1.msra.mxu0 0.0
  %1871 = vmatprep.subr.mxu0 0.0
  %1872 = vmatpush1.msra.mxu0 0.0
  %1873 = vmatprep.subr.mxu0 0.0
  %1874 = vmatpush1.msra.mxu0 0.0
  %1875 = vmatprep.subr.mxu0 0.0
  %1876 = vmatpush1.msra.mxu0 0.0
  %1877 = vmatprep.subr.mxu0 0.0
  %1878 = vmatpush1.msra.mxu0 0.0
  %1879 = vmatprep.mubr.f32.mxu0 0.0
  %1880 = vmatmul.mubr.f32.gmra.mrb[0].mxu0 %v1813
  %v1881 = vpop.f32.mrb[0].mxu0
  %v1882 = vadd.f32 %v166, %v1881
  %v1883 = vpop.f32.mrb[0].mxu0
  %1884 = vdwg.mxu0
  %1885 = vmatprep.subr.mxu0 0.0
  %1886 = vmatpush1.msra.mxu0 %v13
  %1887 = vmatprep.subr.mxu0 0.0
  %1888 = vmatpush1.msra.mxu0 0.0
  %1889 = vmatprep.subr.mxu0 0.0
  %1890 = vmatpush1.msra.mxu0 0.0
  %1891 = vmatprep.subr.mxu0 0.0
  %1892 = vmatpush1.msra.mxu0 0.0
  %1893 = vmatprep.subr.mxu0 0.0
  %1894 = vmatpush1.msra.mxu0 0.0
  %1895 = vmatprep.subr.mxu0 0.0
  %1896 = vmatpush1.msra.mxu0 0.0
  %1897 = vmatprep.subr.mxu0 0.0
  %1898 = vmatpush1.msra.mxu0 0.0
  %1899 = vmatprep.subr.mxu0 0.0
  %1900 = vmatpush1.msra.mxu0 0.0
  %1901 = vmatprep.subr.mxu0 0.0
  %1902 = vmatpush1.msra.mxu0 0.0
  %1903 = vmatprep.subr.mxu0 0.0
  %1904 = vmatpush1.msra.mxu0 0.0
  %1905 = vmatprep.subr.mxu0 0.0
  %1906 = vmatpush1.msra.mxu0 0.0
  %1907 = vmatprep.subr.mxu0 0.0
  %1908 = vmatpush1.msra.mxu0 0.0
  %1909 = vmatprep.subr.mxu0 0.0
  %1910 = vmatpush1.msra.mxu0 0.0
  %1911 = vmatprep.subr.mxu0 0.0
  %1912 = vmatpush1.msra.mxu0 0.0
  %1913 = vmatprep.subr.mxu0 0.0
  %1914 = vmatpush1.msra.mxu0 0.0
  %1915 = vmatprep.subr.mxu0 0.0
  %1916 = vmatpush1.msra.mxu0 0.0
  %1917 = vmatprep.subr.mxu0 0.0
  %1918 = vmatpush1.msra.mxu0 0.0
  %1919 = vmatprep.subr.mxu0 0.0
  %1920 = vmatpush1.msra.mxu0 0.0
  %1921 = vmatprep.subr.mxu0 0.0
  %1922 = vmatpush1.msra.mxu0 0.0
  %1923 = vmatprep.subr.mxu0 0.0
  %1924 = vmatpush1.msra.mxu0 0.0
  %1925 = vmatprep.subr.mxu0 0.0
  %1926 = vmatpush1.msra.mxu0 0.0
  %1927 = vmatprep.subr.mxu0 0.0
  %1928 = vmatpush1.msra.mxu0 0.0
  %1929 = vmatprep.subr.mxu0 0.0
  %1930 = vmatpush1.msra.mxu0 0.0
  %1931 = vmatprep.subr.mxu0 0.0
  %1932 = vmatpush1.msra.mxu0 0.0
  %1933 = vmatprep.subr.mxu0 0.0
  %1934 = vmatpush1.msra.mxu0 0.0
  %1935 = vmatprep.subr.mxu0 0.0
  %1936 = vmatpush1.msra.mxu0 0.0
  %1937 = vmatprep.subr.mxu0 0.0
  %1938 = vmatpush1.msra.mxu0 0.0
  %1939 = vmatprep.subr.mxu0 0.0
  %1940 = vmatpush1.msra.mxu0 0.0
  %1941 = vmatprep.subr.mxu0 0.0
  %1942 = vmatpush1.msra.mxu0 0.0
  %1943 = vmatprep.subr.mxu0 0.0
  %1944 = vmatpush1.msra.mxu0 0.0
  %1945 = vmatprep.subr.mxu0 0.0
  %1946 = vmatpush1.msra.mxu0 0.0
  %1947 = vmatprep.subr.mxu0 0.0
  %1948 = vmatpush1.msra.mxu0 0.0
  %1949 = vmatprep.mubr.f32.mxu0 0.0
  %1950 = vmatmul.mubr.f32.gmra.mrb[0].mxu0 %v1712
  %v1951 = vpop.f32.mrb[0].mxu0
  %v1952 = vadd.f32 0.0, %v1951
  %v1953 = vpop.f32.mrb[0].mxu0
  %1954 = vdwg.mxu0
  %v1955 = vadd.f32 %v155, %v1952
  %v1956 = vxor.u32 %v1955, 2147483648
  %v1957 = vmul.f32 %v1956, 1.442695
  %v1958 = vpow.pop %v1957
  %v1959 = vadd.f32 %v1958, 1.0
  %v1960 = vrcp.pop %v1959
  %v1961 = vmul.f32 1.0, %v1960
  %v1962 = vmul.f32 %v1961, %v170
  %v1963 = vadd.f32 %v1962, %v174
  %v1964 = vmul.f32 %v1963, %v1702
  %1966 = vrot.lane.b32.xlu0 %v1963, 112
  %v1967 = vpop.permute.xlu0 %1966
  %v1969 = vmul.f32 %v1963, %v1967
  %1971 = vrot.lane.b32.xlu0 %v1969, 8
  %v1972 = vpop.permute.xlu0 %1971
  %v1974 = vadd.f32 %v1964, %v1972
  %v1975 = vtanh.pop %v1974
  %1977 = vrot.lane.b32.xlu0 %v1975, 16
  %v1978 = vpop.permute.xlu0 %1977
  %v1980 = vmul.f32 %v1963, %v1978
  %1982 = vrot.lane.b32.xlu0 %v1980, 104
  %v1983 = vpop.permute.xlu0 %1982
  %v1984 = vsel %vm179, %v1983, 0
  %1986 = vmatprep.subr.mxu0 0.0
  %1987 = vmatpush1.msra.mxu0 %v14
  %1988 = vmatprep.subr.mxu0 0.0
  %1989 = vmatpush1.msra.mxu0 0.0
  %1990 = vmatprep.subr.mxu0 0.0
  %1991 = vmatpush1.msra.mxu0 0.0
  %1992 = vmatprep.subr.mxu0 0.0
  %1993 = vmatpush1.msra.mxu0 0.0
  %1994 = vmatprep.subr.mxu0 0.0
  %1995 = vmatpush1.msra.mxu0 0.0
  %1996 = vmatprep.subr.mxu0 0.0
  %1997 = vmatpush1.msra.mxu0 0.0
  %1998 = vmatprep.subr.mxu0 0.0
  %1999 = vmatpush1.msra.mxu0 0.0
  %2000 = vmatprep.subr.mxu0 0.0
  %2001 = vmatpush1.msra.mxu0 0.0
  %2002 = vmatprep.subr.mxu0 0.0
  %2003 = vmatpush1.msra.mxu0 0.0
  %2004 = vmatprep.subr.mxu0 0.0
  %2005 = vmatpush1.msra.mxu0 0.0
  %2006 = vmatprep.subr.mxu0 0.0
  %2007 = vmatpush1.msra.mxu0 0.0
  %2008 = vmatprep.subr.mxu0 0.0
  %2009 = vmatpush1.msra.mxu0 0.0
  %2010 = vmatprep.subr.mxu0 0.0
  %2011 = vmatpush1.msra.mxu0 0.0
  %2012 = vmatprep.subr.mxu0 0.0
  %2013 = vmatpush1.msra.mxu0 0.0
  %2014 = vmatprep.subr.mxu0 0.0
  %2015 = vmatpush1.msra.mxu0 0.0
  %2016 = vmatprep.subr.mxu0 0.0
  %2017 = vmatpush1.msra.mxu0 0.0
  %2018 = vmatprep.subr.mxu0 0.0
  %2019 = vmatpush1.msra.mxu0 0.0
  %2020 = vmatprep.subr.mxu0 0.0
  %2021 = vmatpush1.msra.mxu0 0.0
  %2022 = vmatprep.subr.mxu0 0.0
  %2023 = vmatpush1.msra.mxu0 0.0
  %2024 = vmatprep.subr.mxu0 0.0
  %2025 = vmatpush1.msra.mxu0 0.0
  %2026 = vmatprep.subr.mxu0 0.0
  %2027 = vmatpush1.msra.mxu0 0.0
  %2028 = vmatprep.subr.mxu0 0.0
  %2029 = vmatpush1.msra.mxu0 0.0
  %2030 = vmatprep.subr.mxu0 0.0
  %2031 = vmatpush1.msra.mxu0 0.0
  %2032 = vmatprep.subr.mxu0 0.0
  %2033 = vmatpush1.msra.mxu0 0.0
  %2034 = vmatprep.subr.mxu0 0.0
  %2035 = vmatpush1.msra.mxu0 0.0
  %2036 = vmatprep.subr.mxu0 0.0
  %2037 = vmatpush1.msra.mxu0 0.0
  %2038 = vmatprep.subr.mxu0 0.0
  %2039 = vmatpush1.msra.mxu0 0.0
  %2040 = vmatprep.subr.mxu0 0.0
  %2041 = vmatpush1.msra.mxu0 0.0
  %2042 = vmatprep.subr.mxu0 0.0
  %2043 = vmatpush1.msra.mxu0 0.0
  %2044 = vmatprep.subr.mxu0 0.0
  %2045 = vmatpush1.msra.mxu0 0.0
  %2046 = vmatprep.subr.mxu0 0.0
  %2047 = vmatpush1.msra.mxu0 0.0
  %2048 = vmatprep.subr.mxu0 0.0
  %2049 = vmatpush1.msra.mxu0 0.0
  %2050 = vmatprep.mubr.f32.mxu0 0.0
  %2051 = vmatmul.mubr.f32.gmra.mrb[0].mxu0 %v1984
  %v2052 = vpop.f32.mrb[0].mxu0
  %v2053 = vadd.f32 0.0, %v2052
  %v2054 = vpop.f32.mrb[0].mxu0
  %2055 = vdwg.mxu0
  %v2056 = vadd.f32 %v1882, %v2053
  %v2057 = vxor.u32 %v2056, 2147483648
  %v2058 = vmul.f32 %v2057, 1.442695
  %v2059 = vpow.pop %v2058
  %v2060 = vadd.f32 %v2059, 1.0
  %v2061 = vrcp.pop %v2060
  %v2062 = vmul.f32 1.0, %v2061
  %v2063 = vmul.f32 %v2062, %v170
  %v2064 = vadd.f32 %v2063, %v174
  %v2065 = vmul.f32 %v2064, %v1803
  %2067 = vrot.lane.b32.xlu0 %v2064, 112
  %v2068 = vpop.permute.xlu0 %2067
  %v2070 = vmul.f32 %v2064, %v2068
  %2072 = vrot.lane.b32.xlu0 %v2070, 8
  %v2073 = vpop.permute.xlu0 %2072
  %v2075 = vadd.f32 %v2065, %v2073
  %v2076 = vtanh.pop %v2075
  %2078 = vrot.lane.b32.xlu0 %v2076, 16
  %v2079 = vpop.permute.xlu0 %2078
  %v2081 = vmul.f32 %v2064, %v2079
  %2083 = vrot.lane.b32.xlu0 %v2081, 104
  %v2084 = vpop.permute.xlu0 %2083
  %v2085 = vsel %vm179, %v2084, 0
  %2087 = vmatprep.subr.mxu0 0.0
  %2088 = vmatpush1.msra.mxu0 %v15
  %2089 = vmatprep.subr.mxu0 0.0
  %2090 = vmatpush1.msra.mxu0 0.0
  %2091 = vmatprep.subr.mxu0 0.0
  %2092 = vmatpush1.msra.mxu0 0.0
  %2093 = vmatprep.subr.mxu0 0.0
  %2094 = vmatpush1.msra.mxu0 0.0
  %2095 = vmatprep.subr.mxu0 0.0
  %2096 = vmatpush1.msra.mxu0 0.0
  %2097 = vmatprep.subr.mxu0 0.0
  %2098 = vmatpush1.msra.mxu0 0.0
  %2099 = vmatprep.subr.mxu0 0.0
  %2100 = vmatpush1.msra.mxu0 0.0
  %2101 = vmatprep.subr.mxu0 0.0
  %2102 = vmatpush1.msra.mxu0 0.0
  %2103 = vmatprep.subr.mxu0 0.0
  %2104 = vmatpush1.msra.mxu0 0.0
  %2105 = vmatprep.subr.mxu0 0.0
  %2106 = vmatpush1.msra.mxu0 0.0
  %2107 = vmatprep.subr.mxu0 0.0
  %2108 = vmatpush1.msra.mxu0 0.0
  %2109 = vmatprep.subr.mxu0 0.0
  %2110 = vmatpush1.msra.mxu0 0.0
  %2111 = vmatprep.subr.mxu0 0.0
  %2112 = vmatpush1.msra.mxu0 0.0
  %2113 = vmatprep.subr.mxu0 0.0
  %2114 = vmatpush1.msra.mxu0 0.0
  %2115 = vmatprep.subr.mxu0 0.0
  %2116 = vmatpush1.msra.mxu0 0.0
  %2117 = vmatprep.subr.mxu0 0.0
  %2118 = vmatpush1.msra.mxu0 0.0
  %2119 = vmatprep.subr.mxu0 0.0
  %2120 = vmatpush1.msra.mxu0 0.0
  %2121 = vmatprep.subr.mxu0 0.0
  %2122 = vmatpush1.msra.mxu0 0.0
  %2123 = vmatprep.subr.mxu0 0.0
  %2124 = vmatpush1.msra.mxu0 0.0
  %2125 = vmatprep.subr.mxu0 0.0
  %2126 = vmatpush1.msra.mxu0 0.0
  %2127 = vmatprep.subr.mxu0 0.0
  %2128 = vmatpush1.msra.mxu0 0.0
  %2129 = vmatprep.subr.mxu0 0.0
  %2130 = vmatpush1.msra.mxu0 0.0
  %2131 = vmatprep.subr.mxu0 0.0
  %2132 = vmatpush1.msra.mxu0 0.0
  %2133 = vmatprep.subr.mxu0 0.0
  %2134 = vmatpush1.msra.mxu0 0.0
  %2135 = vmatprep.subr.mxu0 0.0
  %2136 = vmatpush1.msra.mxu0 0.0
  %2137 = vmatprep.subr.mxu0 0.0
  %2138 = vmatpush1.msra.mxu0 0.0
  %2139 = vmatprep.subr.mxu0 0.0
  %2140 = vmatpush1.msra.mxu0 0.0
  %2141 = vmatprep.subr.mxu0 0.0
  %2142 = vmatpush1.msra.mxu0 0.0
  %2143 = vmatprep.subr.mxu0 0.0
  %2144 = vmatpush1.msra.mxu0 0.0
  %2145 = vmatprep.subr.mxu0 0.0
  %2146 = vmatpush1.msra.mxu0 0.0
  %2147 = vmatprep.subr.mxu0 0.0
  %2148 = vmatpush1.msra.mxu0 0.0
  %2149 = vmatprep.subr.mxu0 0.0
  %2150 = vmatpush1.msra.mxu0 0.0
  %2151 = vmatprep.mubr.f32.mxu0 0.0
  %2152 = vmatmul.mubr.f32.gmra.mrb[0].mxu0 %v2085
  %v2153 = vpop.f32.mrb[0].mxu0
  %v2154 = vadd.f32 %v166, %v2153
  %v2155 = vpop.f32.mrb[0].mxu0
  %2156 = vdwg.mxu0
  %2157 = vmatprep.subr.mxu0 0.0
  %2158 = vmatpush1.msra.mxu0 %v13
  %2159 = vmatprep.subr.mxu0 0.0
  %2160 = vmatpush1.msra.mxu0 0.0
  %2161 = vmatprep.subr.mxu0 0.0
  %2162 = vmatpush1.msra.mxu0 0.0
  %2163 = vmatprep.subr.mxu0 0.0
  %2164 = vmatpush1.msra.mxu0 0.0
  %2165 = vmatprep.subr.mxu0 0.0
  %2166 = vmatpush1.msra.mxu0 0.0
  %2167 = vmatprep.subr.mxu0 0.0
  %2168 = vmatpush1.msra.mxu0 0.0
  %2169 = vmatprep.subr.mxu0 0.0
  %2170 = vmatpush1.msra.mxu0 0.0
  %2171 = vmatprep.subr.mxu0 0.0
  %2172 = vmatpush1.msra.mxu0 0.0
  %2173 = vmatprep.subr.mxu0 0.0
  %2174 = vmatpush1.msra.mxu0 0.0
  %2175 = vmatprep.subr.mxu0 0.0
  %2176 = vmatpush1.msra.mxu0 0.0
  %2177 = vmatprep.subr.mxu0 0.0
  %2178 = vmatpush1.msra.mxu0 0.0
  %2179 = vmatprep.subr.mxu0 0.0
  %2180 = vmatpush1.msra.mxu0 0.0
  %2181 = vmatprep.subr.mxu0 0.0
  %2182 = vmatpush1.msra.mxu0 0.0
  %2183 = vmatprep.subr.mxu0 0.0
  %2184 = vmatpush1.msra.mxu0 0.0
  %2185 = vmatprep.subr.mxu0 0.0
  %2186 = vmatpush1.msra.mxu0 0.0
  %2187 = vmatprep.subr.mxu0 0.0
  %2188 = vmatpush1.msra.mxu0 0.0
  %2189 = vmatprep.subr.mxu0 0.0
  %2190 = vmatpush1.msra.mxu0 0.0
  %2191 = vmatprep.subr.mxu0 0.0
  %2192 = vmatpush1.msra.mxu0 0.0
  %2193 = vmatprep.subr.mxu0 0.0
  %2194 = vmatpush1.msra.mxu0 0.0
  %2195 = vmatprep.subr.mxu0 0.0
  %2196 = vmatpush1.msra.mxu0 0.0
  %2197 = vmatprep.subr.mxu0 0.0
  %2198 = vmatpush1.msra.mxu0 0.0
  %2199 = vmatprep.subr.mxu0 0.0
  %2200 = vmatpush1.msra.mxu0 0.0
  %2201 = vmatprep.subr.mxu0 0.0
  %2202 = vmatpush1.msra.mxu0 0.0
  %2203 = vmatprep.subr.mxu0 0.0
  %2204 = vmatpush1.msra.mxu0 0.0
  %2205 = vmatprep.subr.mxu0 0.0
  %2206 = vmatpush1.msra.mxu0 0.0
  %2207 = vmatprep.subr.mxu0 0.0
  %2208 = vmatpush1.msra.mxu0 0.0
  %2209 = vmatprep.subr.mxu0 0.0
  %2210 = vmatpush1.msra.mxu0 0.0
  %2211 = vmatprep.subr.mxu0 0.0
  %2212 = vmatpush1.msra.mxu0 0.0
  %2213 = vmatprep.subr.mxu0 0.0
  %2214 = vmatpush1.msra.mxu0 0.0
  %2215 = vmatprep.subr.mxu0 0.0
  %2216 = vmatpush1.msra.mxu0 0.0
  %2217 = vmatprep.subr.mxu0 0.0
  %2218 = vmatpush1.msra.mxu0 0.0
  %2219 = vmatprep.subr.mxu0 0.0
  %2220 = vmatpush1.msra.mxu0 0.0
  %2221 = vmatprep.mubr.f32.mxu0 0.0
  %2222 = vmatmul.mubr.f32.gmra.mrb[0].mxu0 %v1984
  %v2223 = vpop.f32.mrb[0].mxu0
  %v2224 = vadd.f32 0.0, %v2223
  %v2225 = vpop.f32.mrb[0].mxu0
  %2226 = vdwg.mxu0
  %v2227 = vadd.f32 %v160, %v2224
  %v2228 = vxor.u32 %v2227, 2147483648
  %v2229 = vmul.f32 %v2228, 1.442695
  %v2230 = vpow.pop %v2229
  %v2231 = vadd.f32 %v2230, 1.0
  %v2232 = vrcp.pop %v2231
  %v2233 = vmul.f32 1.0, %v2232
  %v2234 = vmul.f32 %v2233, %v170
  %v2235 = vadd.f32 %v2234, %v174
  %v2236 = vmul.f32 %v2235, %v1974
  %2238 = vrot.lane.b32.xlu0 %v2235, 112
  %v2239 = vpop.permute.xlu0 %2238
  %v2241 = vmul.f32 %v2235, %v2239
  %2243 = vrot.lane.b32.xlu0 %v2241, 8
  %v2244 = vpop.permute.xlu0 %2243
  %v2246 = vadd.f32 %v2236, %v2244
  %v2247 = vtanh.pop %v2246
  %2249 = vrot.lane.b32.xlu0 %v2247, 16
  %v2250 = vpop.permute.xlu0 %2249
  %v2252 = vmul.f32 %v2235, %v2250
  %2254 = vrot.lane.b32.xlu0 %v2252, 104
  %v2255 = vpop.permute.xlu0 %2254
  %v2256 = vsel %vm179, %v2255, 0
  %2258 = vmatprep.subr.mxu0 0.0
  %2259 = vmatpush1.msra.mxu0 %v14
  %2260 = vmatprep.subr.mxu0 0.0
  %2261 = vmatpush1.msra.mxu0 0.0
  %2262 = vmatprep.subr.mxu0 0.0
  %2263 = vmatpush1.msra.mxu0 0.0
  %2264 = vmatprep.subr.mxu0 0.0
  %2265 = vmatpush1.msra.mxu0 0.0
  %2266 = vmatprep.subr.mxu0 0.0
  %2267 = vmatpush1.msra.mxu0 0.0
  %2268 = vmatprep.subr.mxu0 0.0
  %2269 = vmatpush1.msra.mxu0 0.0
  %2270 = vmatprep.subr.mxu0 0.0
  %2271 = vmatpush1.msra.mxu0 0.0
  %2272 = vmatprep.subr.mxu0 0.0
  %2273 = vmatpush1.msra.mxu0 0.0
  %2274 = vmatprep.subr.mxu0 0.0
  %2275 = vmatpush1.msra.mxu0 0.0
  %2276 = vmatprep.subr.mxu0 0.0
  %2277 = vmatpush1.msra.mxu0 0.0
  %2278 = vmatprep.subr.mxu0 0.0
  %2279 = vmatpush1.msra.mxu0 0.0
  %2280 = vmatprep.subr.mxu0 0.0
  %2281 = vmatpush1.msra.mxu0 0.0
  %2282 = vmatprep.subr.mxu0 0.0
  %2283 = vmatpush1.msra.mxu0 0.0
  %2284 = vmatprep.subr.mxu0 0.0
  %2285 = vmatpush1.msra.mxu0 0.0
  %2286 = vmatprep.subr.mxu0 0.0
  %2287 = vmatpush1.msra.mxu0 0.0
  %2288 = vmatprep.subr.mxu0 0.0
  %2289 = vmatpush1.msra.mxu0 0.0
  %2290 = vmatprep.subr.mxu0 0.0
  %2291 = vmatpush1.msra.mxu0 0.0
  %2292 = vmatprep.subr.mxu0 0.0
  %2293 = vmatpush1.msra.mxu0 0.0
  %2294 = vmatprep.subr.mxu0 0.0
  %2295 = vmatpush1.msra.mxu0 0.0
  %2296 = vmatprep.subr.mxu0 0.0
  %2297 = vmatpush1.msra.mxu0 0.0
  %2298 = vmatprep.subr.mxu0 0.0
  %2299 = vmatpush1.msra.mxu0 0.0
  %2300 = vmatprep.subr.mxu0 0.0
  %2301 = vmatpush1.msra.mxu0 0.0
  %2302 = vmatprep.subr.mxu0 0.0
  %2303 = vmatpush1.msra.mxu0 0.0
  %2304 = vmatprep.subr.mxu0 0.0
  %2305 = vmatpush1.msra.mxu0 0.0
  %2306 = vmatprep.subr.mxu0 0.0
  %2307 = vmatpush1.msra.mxu0 0.0
  %2308 = vmatprep.subr.mxu0 0.0
  %2309 = vmatpush1.msra.mxu0 0.0
  %2310 = vmatprep.subr.mxu0 0.0
  %2311 = vmatpush1.msra.mxu0 0.0
  %2312 = vmatprep.subr.mxu0 0.0
  %2313 = vmatpush1.msra.mxu0 0.0
  %2314 = vmatprep.subr.mxu0 0.0
  %2315 = vmatpush1.msra.mxu0 0.0
  %2316 = vmatprep.subr.mxu0 0.0
  %2317 = vmatpush1.msra.mxu0 0.0
  %2318 = vmatprep.subr.mxu0 0.0
  %2319 = vmatpush1.msra.mxu0 0.0
  %2320 = vmatprep.subr.mxu0 0.0
  %2321 = vmatpush1.msra.mxu0 0.0
  %2322 = vmatprep.mubr.f32.mxu0 0.0
  %2323 = vmatmul.mubr.f32.gmra.mrb[0].mxu0 %v2256
  %v2324 = vpop.f32.mrb[0].mxu0
  %v2325 = vadd.f32 0.0, %v2324
  %v2326 = vpop.f32.mrb[0].mxu0
  %2327 = vdwg.mxu0
  %v2328 = vadd.f32 %v2154, %v2325
  %v2329 = vxor.u32 %v2328, 2147483648
  %v2330 = vmul.f32 %v2329, 1.442695
  %v2331 = vpow.pop %v2330
  %v2332 = vadd.f32 %v2331, 1.0
  %v2333 = vrcp.pop %v2332
  %v2334 = vmul.f32 1.0, %v2333
  %v2335 = vmul.f32 %v2334, %v170
  %v2336 = vadd.f32 %v2335, %v174
  %v2337 = vmul.f32 %v2336, %v2075
  %2339 = vrot.lane.b32.xlu0 %v2336, 112
  %v2340 = vpop.permute.xlu0 %2339
  %v2342 = vmul.f32 %v2336, %v2340
  %2344 = vrot.lane.b32.xlu0 %v2342, 8
  %v2345 = vpop.permute.xlu0 %2344
  %v2347 = vadd.f32 %v2337, %v2345
  %v2348 = vtanh.pop %v2347
  %2350 = vrot.lane.b32.xlu0 %v2348, 16
  %v2351 = vpop.permute.xlu0 %2350
  %v2353 = vmul.f32 %v2336, %v2351
  %2355 = vrot.lane.b32.xlu0 %v2353, 104
  %v2356 = vpop.permute.xlu0 %2355
  %v2357 = vsel %vm179, %v2356, 0
  %2359 = vmatprep.subr.mxu0 0.0
  %2360 = vmatpush1.msra.mxu0 %v15
  %2361 = vmatprep.subr.mxu0 0.0
  %2362 = vmatpush1.msra.mxu0 0.0
  %2363 = vmatprep.subr.mxu0 0.0
  %2364 = vmatpush1.msra.mxu0 0.0
  %2365 = vmatprep.subr.mxu0 0.0
  %2366 = vmatpush1.msra.mxu0 0.0
  %2367 = vmatprep.subr.mxu0 0.0
  %2368 = vmatpush1.msra.mxu0 0.0
  %2369 = vmatprep.subr.mxu0 0.0
  %2370 = vmatpush1.msra.mxu0 0.0
  %2371 = vmatprep.subr.mxu0 0.0
  %2372 = vmatpush1.msra.mxu0 0.0
  %2373 = vmatprep.subr.mxu0 0.0
  %2374 = vmatpush1.msra.mxu0 0.0
  %2375 = vmatprep.subr.mxu0 0.0
  %2376 = vmatpush1.msra.mxu0 0.0
  %2377 = vmatprep.subr.mxu0 0.0
  %2378 = vmatpush1.msra.mxu0 0.0
  %2379 = vmatprep.subr.mxu0 0.0
  %2380 = vmatpush1.msra.mxu0 0.0
  %2381 = vmatprep.subr.mxu0 0.0
  %2382 = vmatpush1.msra.mxu0 0.0
  %2383 = vmatprep.subr.mxu0 0.0
  %2384 = vmatpush1.msra.mxu0 0.0
  %2385 = vmatprep.subr.mxu0 0.0
  %2386 = vmatpush1.msra.mxu0 0.0
  %2387 = vmatprep.subr.mxu0 0.0
  %2388 = vmatpush1.msra.mxu0 0.0
  %2389 = vmatprep.subr.mxu0 0.0
  %2390 = vmatpush1.msra.mxu0 0.0
  %2391 = vmatprep.subr.mxu0 0.0
  %2392 = vmatpush1.msra.mxu0 0.0
  %2393 = vmatprep.subr.mxu0 0.0
  %2394 = vmatpush1.msra.mxu0 0.0
  %2395 = vmatprep.subr.mxu0 0.0
  %2396 = vmatpush1.msra.mxu0 0.0
  %2397 = vmatprep.subr.mxu0 0.0
  %2398 = vmatpush1.msra.mxu0 0.0
  %2399 = vmatprep.subr.mxu0 0.0
  %2400 = vmatpush1.msra.mxu0 0.0
  %2401 = vmatprep.subr.mxu0 0.0
  %2402 = vmatpush1.msra.mxu0 0.0
  %2403 = vmatprep.subr.mxu0 0.0
  %2404 = vmatpush1.msra.mxu0 0.0
  %2405 = vmatprep.subr.mxu0 0.0
  %2406 = vmatpush1.msra.mxu0 0.0
  %2407 = vmatprep.subr.mxu0 0.0
  %2408 = vmatpush1.msra.mxu0 0.0
  %2409 = vmatprep.subr.mxu0 0.0
  %2410 = vmatpush1.msra.mxu0 0.0
  %2411 = vmatprep.subr.mxu0 0.0
  %2412 = vmatpush1.msra.mxu0 0.0
  %2413 = vmatprep.subr.mxu0 0.0
  %2414 = vmatpush1.msra.mxu0 0.0
  %2415 = vmatprep.subr.mxu0 0.0
  %2416 = vmatpush1.msra.mxu0 0.0
  %2417 = vmatprep.subr.mxu0 0.0
  %2418 = vmatpush1.msra.mxu0 0.0
  %2419 = vmatprep.subr.mxu0 0.0
  %2420 = vmatpush1.msra.mxu0 0.0
  %2421 = vmatprep.subr.mxu0 0.0
  %2422 = vmatpush1.msra.mxu0 0.0
  %2423 = vmatprep.mubr.f32.mxu0 0.0
  %2424 = vmatmul.mubr.f32.gmra.mrb[0].mxu0 %v2357
  %v2425 = vpop.f32.mrb[0].mxu0
  %v2426 = vadd.f32 %v166, %v2425
  %v2427 = vpop.f32.mrb[0].mxu0
  %2428 = vdwg.mxu0
  %2429 = vmatprep.subr.mxu0 0.0
  %2430 = vmatpush1.msra.mxu0 %v13
  %2431 = vmatprep.subr.mxu0 0.0
  %2432 = vmatpush1.msra.mxu0 0.0
  %2433 = vmatprep.subr.mxu0 0.0
  %2434 = vmatpush1.msra.mxu0 0.0
  %2435 = vmatprep.subr.mxu0 0.0
  %2436 = vmatpush1.msra.mxu0 0.0
  %2437 = vmatprep.subr.mxu0 0.0
  %2438 = vmatpush1.msra.mxu0 0.0
  %2439 = vmatprep.subr.mxu0 0.0
  %2440 = vmatpush1.msra.mxu0 0.0
  %2441 = vmatprep.subr.mxu0 0.0
  %2442 = vmatpush1.msra.mxu0 0.0
  %2443 = vmatprep.subr.mxu0 0.0
  %2444 = vmatpush1.msra.mxu0 0.0
  %2445 = vmatprep.subr.mxu0 0.0
  %2446 = vmatpush1.msra.mxu0 0.0
  %2447 = vmatprep.subr.mxu0 0.0
  %2448 = vmatpush1.msra.mxu0 0.0
  %2449 = vmatprep.subr.mxu0 0.0
  %2450 = vmatpush1.msra.mxu0 0.0
  %2451 = vmatprep.subr.mxu0 0.0
  %2452 = vmatpush1.msra.mxu0 0.0
  %2453 = vmatprep.subr.mxu0 0.0
  %2454 = vmatpush1.msra.mxu0 0.0
  %2455 = vmatprep.subr.mxu0 0.0
  %2456 = vmatpush1.msra.mxu0 0.0
  %2457 = vmatprep.subr.mxu0 0.0
  %2458 = vmatpush1.msra.mxu0 0.0
  %2459 = vmatprep.subr.mxu0 0.0
  %2460 = vmatpush1.msra.mxu0 0.0
  %2461 = vmatprep.subr.mxu0 0.0
  %2462 = vmatpush1.msra.mxu0 0.0
  %2463 = vmatprep.subr.mxu0 0.0
  %2464 = vmatpush1.msra.mxu0 0.0
  %2465 = vmatprep.subr.mxu0 0.0
  %2466 = vmatpush1.msra.mxu0 0.0
  %2467 = vmatprep.subr.mxu0 0.0
  %2468 = vmatpush1.msra.mxu0 0.0
  %2469 = vmatprep.subr.mxu0 0.0
  %2470 = vmatpush1.msra.mxu0 0.0
  %2471 = vmatprep.subr.mxu0 0.0
  %2472 = vmatpush1.msra.mxu0 0.0
  %2473 = vmatprep.subr.mxu0 0.0
  %2474 = vmatpush1.msra.mxu0 0.0
  %2475 = vmatprep.subr.mxu0 0.0
  %2476 = vmatpush1.msra.mxu0 0.0
  %2477 = vmatprep.subr.mxu0 0.0
  %2478 = vmatpush1.msra.mxu0 0.0
  %2479 = vmatprep.subr.mxu0 0.0
  %2480 = vmatpush1.msra.mxu0 0.0
  %2481 = vmatprep.subr.mxu0 0.0
  %2482 = vmatpush1.msra.mxu0 0.0
  %2483 = vmatprep.subr.mxu0 0.0
  %2484 = vmatpush1.msra.mxu0 0.0
  %2485 = vmatprep.subr.mxu0 0.0
  %2486 = vmatpush1.msra.mxu0 0.0
  %2487 = vmatprep.subr.mxu0 0.0
  %2488 = vmatpush1.msra.mxu0 0.0
  %2489 = vmatprep.subr.mxu0 0.0
  %2490 = vmatpush1.msra.mxu0 0.0
  %2491 = vmatprep.subr.mxu0 0.0
  %2492 = vmatpush1.msra.mxu0 0.0
  %2493 = vmatprep.mubr.f32.mxu0 0.0
  %2494 = vmatmul.mubr.f32.gmra.mrb[0].mxu0 %v2256
  %v2495 = vpop.f32.mrb[0].mxu0
  %v2496 = vadd.f32 0.0, %v2495
  %v2497 = vpop.f32.mrb[0].mxu0
  %2498 = vdwg.mxu0
  %v2499 = vadd.f32 %v145, %v2496
  %v2500 = vxor.u32 %v2499, 2147483648
  %v2501 = vmul.f32 %v2500, 1.442695
  %v2502 = vpow.pop %v2501
  %v2503 = vadd.f32 %v2502, 1.0
  %v2504 = vrcp.pop %v2503
  %v2505 = vmul.f32 1.0, %v2504
  %v2506 = vmul.f32 %v2505, %v170
  %v2507 = vadd.f32 %v2506, %v174
  %v2508 = vmul.f32 %v2507, %v2246
  %2510 = vrot.lane.b32.xlu0 %v2507, 112
  %v2511 = vpop.permute.xlu0 %2510
  %v2513 = vmul.f32 %v2507, %v2511
  %2515 = vrot.lane.b32.xlu0 %v2513, 8
  %v2516 = vpop.permute.xlu0 %2515
  %v2518 = vadd.f32 %v2508, %v2516
  %v2519 = vtanh.pop %v2518
  %2521 = vrot.lane.b32.xlu0 %v2519, 16
  %v2522 = vpop.permute.xlu0 %2521
  %v2524 = vmul.f32 %v2507, %v2522
  %2526 = vrot.lane.b32.xlu0 %v2524, 104
  %v2527 = vpop.permute.xlu0 %2526
  %v2528 = vsel %vm179, %v2527, 0
  %2530 = vmatprep.subr.mxu0 0.0
  %2531 = vmatpush1.msra.mxu0 %v14
  %2532 = vmatprep.subr.mxu0 0.0
  %2533 = vmatpush1.msra.mxu0 0.0
  %2534 = vmatprep.subr.mxu0 0.0
  %2535 = vmatpush1.msra.mxu0 0.0
  %2536 = vmatprep.subr.mxu0 0.0
  %2537 = vmatpush1.msra.mxu0 0.0
  %2538 = vmatprep.subr.mxu0 0.0
  %2539 = vmatpush1.msra.mxu0 0.0
  %2540 = vmatprep.subr.mxu0 0.0
  %2541 = vmatpush1.msra.mxu0 0.0
  %2542 = vmatprep.subr.mxu0 0.0
  %2543 = vmatpush1.msra.mxu0 0.0
  %2544 = vmatprep.subr.mxu0 0.0
  %2545 = vmatpush1.msra.mxu0 0.0
  %2546 = vmatprep.subr.mxu0 0.0
  %2547 = vmatpush1.msra.mxu0 0.0
  %2548 = vmatprep.subr.mxu0 0.0
  %2549 = vmatpush1.msra.mxu0 0.0
  %2550 = vmatprep.subr.mxu0 0.0
  %2551 = vmatpush1.msra.mxu0 0.0
  %2552 = vmatprep.subr.mxu0 0.0
  %2553 = vmatpush1.msra.mxu0 0.0
  %2554 = vmatprep.subr.mxu0 0.0
  %2555 = vmatpush1.msra.mxu0 0.0
  %2556 = vmatprep.subr.mxu0 0.0
  %2557 = vmatpush1.msra.mxu0 0.0
  %2558 = vmatprep.subr.mxu0 0.0
  %2559 = vmatpush1.msra.mxu0 0.0
  %2560 = vmatprep.subr.mxu0 0.0
  %2561 = vmatpush1.msra.mxu0 0.0
  %2562 = vmatprep.subr.mxu0 0.0
  %2563 = vmatpush1.msra.mxu0 0.0
  %2564 = vmatprep.subr.mxu0 0.0
  %2565 = vmatpush1.msra.mxu0 0.0
  %2566 = vmatprep.subr.mxu0 0.0
  %2567 = vmatpush1.msra.mxu0 0.0
  %2568 = vmatprep.subr.mxu0 0.0
  %2569 = vmatpush1.msra.mxu0 0.0
  %2570 = vmatprep.subr.mxu0 0.0
  %2571 = vmatpush1.msra.mxu0 0.0
  %2572 = vmatprep.subr.mxu0 0.0
  %2573 = vmatpush1.msra.mxu0 0.0
  %2574 = vmatprep.subr.mxu0 0.0
  %2575 = vmatpush1.msra.mxu0 0.0
  %2576 = vmatprep.subr.mxu0 0.0
  %2577 = vmatpush1.msra.mxu0 0.0
  %2578 = vmatprep.subr.mxu0 0.0
  %2579 = vmatpush1.msra.mxu0 0.0
  %2580 = vmatprep.subr.mxu0 0.0
  %2581 = vmatpush1.msra.mxu0 0.0
  %2582 = vmatprep.subr.mxu0 0.0
  %2583 = vmatpush1.msra.mxu0 0.0
  %2584 = vmatprep.subr.mxu0 0.0
  %2585 = vmatpush1.msra.mxu0 0.0
  %2586 = vmatprep.subr.mxu0 0.0
  %2587 = vmatpush1.msra.mxu0 0.0
  %2588 = vmatprep.subr.mxu0 0.0
  %2589 = vmatpush1.msra.mxu0 0.0
  %2590 = vmatprep.subr.mxu0 0.0
  %2591 = vmatpush1.msra.mxu0 0.0
  %2592 = vmatprep.subr.mxu0 0.0
  %2593 = vmatpush1.msra.mxu0 0.0
  %2594 = vmatprep.mubr.f32.mxu0 0.0
  %2595 = vmatmul.mubr.f32.gmra.mrb[0].mxu0 %v2528
  %v2596 = vpop.f32.mrb[0].mxu0
  %v2597 = vadd.f32 0.0, %v2596
  %v2598 = vpop.f32.mrb[0].mxu0
  %2599 = vdwg.mxu0
  %v2600 = vadd.f32 %v2426, %v2597
  %v2601 = vxor.u32 %v2600, 2147483648
  %v2602 = vmul.f32 %v2601, 1.442695
  %v2603 = vpow.pop %v2602
  %v2604 = vadd.f32 %v2603, 1.0
  %v2605 = vrcp.pop %v2604
  %v2606 = vmul.f32 1.0, %v2605
  %v2607 = vmul.f32 %v2606, %v170
  %v2608 = vadd.f32 %v2607, %v174
  %v2609 = vmul.f32 %v2608, %v2347
  %2611 = vrot.lane.b32.xlu0 %v2608, 112
  %v2612 = vpop.permute.xlu0 %2611
  %v2614 = vmul.f32 %v2608, %v2612
  %2616 = vrot.lane.b32.xlu0 %v2614, 8
  %v2617 = vpop.permute.xlu0 %2616
  %v2619 = vadd.f32 %v2609, %v2617
  %v2620 = vtanh.pop %v2619
  %2622 = vrot.lane.b32.xlu0 %v2620, 16
  %v2623 = vpop.permute.xlu0 %2622
  %v2625 = vmul.f32 %v2608, %v2623
  %2627 = vrot.lane.b32.xlu0 %v178, 24
  %v2628 = vpop.permute.xlu0 %2627
  %v2630 = vmul.f32 %v2625, %v2628
  %2632 = vrot.lane.b32.xlu0 %v2630, 104
  %v2633 = vpop.permute.xlu0 %2632
  %v2635 = vsel %vm179, %v2633, 0.0
  %2636 = vadd.xlane.f32.xlu0 %v2635
  %v2637 = vpop.xlane.xlu0 %2636
  %v2638 = vlaneseq
  %v2639 = vshrl.u32 %v2638, 7
  %v2640 = vsub.s32 3, %v2639
  %v2641 = vrot.slane %v16, %v2640
  %v2642 = vadd.f32 %v2637, %v2641
  %vm2643 = vcmask 7168
  %2644 = vst.msk [vmem:[%s2] sm:$0xff] %vm2643, %v2642
  // Predicated region
  $region10: #{tpu_custom_call.1} parent=0 // pred_check
    _
  $region11: #{tpu_custom_call.1} parent=0 // pred_check_branch
    %2646 = sbr.rel (0) target = $region13
  $region12: #{tpu_custom_call.1} parent=0 // pred_region
    _
  $region13: #{tpu_custom_call.1} parent=0 // pred_fallthru
    _
  // Predicated region
  $region14: #{tpu_custom_call.1} parent=0 // pred_check
    _
  $region15: #{tpu_custom_call.1} parent=0 // pred_check_branch
    %2648 = sbr.rel (0) target = $region17
  $region16: #{tpu_custom_call.1} parent=0 // pred_region
    _
  $region17: #{tpu_custom_call.1} parent=0 // pred_fallthru
    _

</llo_original>
